<compile_context>
chip_gen: v7x
topology: tpu7x:2x2x1
jax: 0.10.0
libtpu: 0.0.40
codegen_flags: <defaults>
</compile_context>

<pallas_src>
import functools

import jax
import jax.numpy as jnp
from jax import lax
from jax.experimental import pallas as pl
from jax.experimental.pallas import tpu as pltpu

EPS = 1e-5
MXU_DTYPE = jnp.bfloat16       # bf16 operands, f32 MXU accumulation
ACT_DTYPE = jnp.bfloat16       # inter-kernel activation / residual-stream dtype
VMEM_LIMIT = 64 * 1024 * 1024  # raise default scoped-VMEM cap (16 MiB v5e / 32 MiB v6e,v7x)


def _pick_tile(dim, pref, align):
    """Largest tile <= pref that is a multiple of `align` and divides `dim`.
    Falls back to the full dim (always a legal BlockSpec block).
    TODO(synk): switch to pl.cdiv-based grids with padding/masking so awkward
    M = B*S values get aligned tiles instead of the full-dim fallback."""
    if dim <= pref:
        return dim
    t = (pref // align) * align
    while t >= align:
        if dim % t == 0:
            return t
        t -= align
    return dim


# ----------------------------- LayerNorm (standalone, ln_pre) ----------------

def _layernorm_kernel(x_ref, g_ref, b_ref, o_ref):
    x = x_ref[...].astype(jnp.float32)
    mu = jnp.mean(x, axis=-1, keepdims=True)
    var = jnp.mean(jnp.square(x - mu), axis=-1, keepdims=True)
    y = (x - mu) * lax.rsqrt(var + EPS)
    o_ref[...] = (y * g_ref[...].astype(jnp.float32)
                  + b_ref[...].astype(jnp.float32)).astype(o_ref.dtype)


def layernorm(x2d, gamma, beta, tm_pref=1024):
    M, D = x2d.shape
    tm = _pick_tile(M, tm_pref, 16)
    return pl.pallas_call(
        _layernorm_kernel,
        out_shape=jax.ShapeDtypeStruct((M, D), x2d.dtype),
        grid=(M // tm,),
        in_specs=[pl.BlockSpec((tm, D), lambda i: (i, 0)),
                  pl.BlockSpec((1, D), lambda i: (0, 0)),
                  pl.BlockSpec((1, D), lambda i: (0, 0))],
        out_specs=pl.BlockSpec((tm, D), lambda i: (i, 0)),
        compiler_params=pltpu.CompilerParams(
            dimension_semantics=("parallel",),
            vmem_limit_bytes=VMEM_LIMIT),
    )(x2d, gamma.reshape(1, D), beta.reshape(1, D))


# ------------- Fused LayerNorm + Linear (LN computed once per row tile) ------

def _ln_linear_kernel(x_ref, g_ref, b_ref, w_ref, bias_ref, o_ref, xn_ref):
    @pl.when(pl.program_id(1) == 0)
    def _():
        x = x_ref[...].astype(jnp.float32)
        mu = jnp.mean(x, axis=-1, keepdims=True)
        var = jnp.mean(jnp.square(x - mu), axis=-1, keepdims=True)
        xn = (x - mu) * lax.rsqrt(var + EPS)
        xn = xn * g_ref[...].astype(jnp.float32) + b_ref[...].astype(jnp.float32)
        xn_ref[...] = xn.astype(MXU_DTYPE)        # reused across all N tiles

    y = jnp.dot(xn_ref[...], w_ref[...], preferred_element_type=jnp.float32)
    y = y + bias_ref[...].astype(jnp.float32)
    o_ref[...] = y.astype(o_ref.dtype)


def ln_linear(x2d, gamma, beta, w_bf16, bias, tm_pref=512, tn_pref=512):
    M, K = x2d.shape
    N = w_bf16.shape[1]
    tm = _pick_tile(M, tm_pref, 16)
    tn = _pick_tile(N, tn_pref, 128)
    return pl.pallas_call(
        _ln_linear_kernel,
        out_shape=jax.ShapeDtypeStruct((M, N), ACT_DTYPE),
        grid=(M // tm, N // tn),
        in_specs=[pl.BlockSpec((tm, K), lambda i, j: (i, 0)),
                  pl.BlockSpec((1, K), lambda i, j: (0, 0)),
                  pl.BlockSpec((1, K), lambda i, j: (0, 0)),
                  pl.BlockSpec((K, tn), lambda i, j: (0, j)),
                  pl.BlockSpec((1, tn), lambda i, j: (0, j))],
        out_specs=pl.BlockSpec((tm, tn), lambda i, j: (i, j)),
        scratch_shapes=[pltpu.VMEM((tm, K), MXU_DTYPE)],
        compiler_params=pltpu.CompilerParams(
            dimension_semantics=("parallel", "arbitrary"),
            vmem_limit_bytes=VMEM_LIMIT),
    )(x2d, gamma.reshape(1, K), beta.reshape(1, K), w_bf16, bias.reshape(1, N))


# -------------- Tiled Linear with fused residual add (out projection) --------

def _linear_res_kernel(x_ref, w_ref, b_ref, res_ref, o_ref, acc_ref):
    @pl.when(pl.program_id(2) == 0)
    def _():
        acc_ref[...] = jnp.zeros_like(acc_ref)

    acc_ref[...] += jnp.dot(x_ref[...], w_ref[...],
                            preferred_element_type=jnp.float32)

    @pl.when(pl.program_id(2) == pl.num_programs(2) - 1)
    def _():
        y = (acc_ref[...] + b_ref[...].astype(jnp.float32)
             + res_ref[...].astype(jnp.float32))          # fused residual
        o_ref[...] = y.astype(o_ref.dtype)


def linear_residual(x2d, w_bf16, bias, res2d,
                    tm_pref=512, tn_pref=512, tk_pref=512):
    M, K = x2d.shape
    N = w_bf16.shape[1]
    tm = _pick_tile(M, tm_pref, 16)
    tn = _pick_tile(N, tn_pref, 128)
    tk = _pick_tile(K, tk_pref, 128)
    return pl.pallas_call(
        _linear_res_kernel,
        out_shape=jax.ShapeDtypeStruct((M, N), ACT_DTYPE),
        grid=(M // tm, N // tn, K // tk),
        in_specs=[pl.BlockSpec((tm, tk), lambda i, j, k: (i, k)),
                  pl.BlockSpec((tk, tn), lambda i, j, k: (k, j)),
                  pl.BlockSpec((1, tn), lambda i, j, k: (0, j)),
                  pl.BlockSpec((tm, tn), lambda i, j, k: (i, j))],
        out_specs=pl.BlockSpec((tm, tn), lambda i, j, k: (i, j)),
        scratch_shapes=[pltpu.VMEM((tm, tn), jnp.float32)],
        compiler_params=pltpu.CompilerParams(
            dimension_semantics=("parallel", "parallel", "arbitrary"),
            vmem_limit_bytes=VMEM_LIMIT),
    )(x2d, w_bf16, bias.reshape(1, N), res2d)


# ------ Fused MLP block: ln_2 + c_fc + QuickGELU + c_proj + residual ---------
# Hidden (4*D) is K-tiled with an f32 accumulator so neither the full hidden
# nor both full weights need to be resident in VMEM (v7x 64 MiB safe).

def _mlp_kernel(x_ref, g_ref, b_ref, wfc_ref, bfc_ref, wcp_ref, bcp_ref, o_ref,
                xn_ref, acc_ref):
    @pl.when(pl.program_id(1) == 0)
    def _():
        x = x_ref[...].astype(jnp.float32)
        mu = jnp.mean(x, axis=-1, keepdims=True)
        var = jnp.mean(jnp.square(x - mu), axis=-1, keepdims=True)
        xn = (x - mu) * lax.rsqrt(var + EPS)
        xn = xn * g_ref[...].astype(jnp.float32) + b_ref[...].astype(jnp.float32)
        xn_ref[...] = xn.astype(MXU_DTYPE)
        acc_ref[...] = jnp.zeros_like(acc_ref)

    h = jnp.dot(xn_ref[...], wfc_ref[...], preferred_element_type=jnp.float32)
    h = h + bfc_ref[...].astype(jnp.float32)
    h = h * jax.nn.sigmoid(1.702 * h)                       # QuickGELU
    acc_ref[...] += jnp.dot(h.astype(MXU_DTYPE), wcp_ref[...],
                            preferred_element_type=jnp.float32)

    @pl.when(pl.program_id(1) == pl.num_programs(1) - 1)
    def _():
        y = (acc_ref[...] + bcp_ref[...].astype(jnp.float32)
             + x_ref[...].astype(jnp.float32))              # fused residual
        o_ref[...] = y.astype(o_ref.dtype)


def mlp_block_residual(x2d, gamma, beta, w_fc, b_fc, w_cproj, b_cproj,
                       tm_pref=256, th_pref=1024):
    M, D = x2d.shape
    D4 = w_fc.shape[1]
    tm = _pick_tile(M, tm_pref, 16)
    th = _pick_tile(D4, th_pref, 128)
    return pl.pallas_call(
        _mlp_kernel,
        out_shape=jax.ShapeDtypeStruct((M, D), ACT_DTYPE),
        grid=(M // tm, D4 // th),
        in_specs=[pl.BlockSpec((tm, D), lambda i, h: (i, 0)),
                  pl.BlockSpec((1, D), lambda i, h: (0, 0)),
                  pl.BlockSpec((1, D), lambda i, h: (0, 0)),
                  pl.BlockSpec((D, th), lambda i, h: (0, h)),
                  pl.BlockSpec((1, th), lambda i, h: (0, h)),
                  pl.BlockSpec((th, D), lambda i, h: (h, 0)),
                  pl.BlockSpec((1, D), lambda i, h: (0, 0))],
        out_specs=pl.BlockSpec((tm, D), lambda i, h: (i, 0)),
        scratch_shapes=[pltpu.VMEM((tm, D), MXU_DTYPE),     # ln_2(x) reused per h-tile
                        pltpu.VMEM((tm, D), jnp.float32)],  # c_proj accumulator
        compiler_params=pltpu.CompilerParams(
            dimension_semantics=("parallel", "arbitrary"),
            vmem_limit_bytes=VMEM_LIMIT),
    )(x2d, gamma.reshape(1, D), beta.reshape(1, D),
      w_fc, b_fc.reshape(1, D4), w_cproj, b_cproj.reshape(1, D))


# -------------------- Attention core (per-batch, per-head) -------------------
# Reads the fused [S, 3D] QKV slab directly (no XLA split/transpose) and writes
# a lane-dense [S, D] output that feeds the out projection with no transpose.
# One head at a time keeps the [S, S] score small in VMEM/vregs.

def _attn_kernel(qkv_ref, o_ref, *, n_head, d_head, d_model):
    # 1/sqrt(Dh) is already folded into the q projection weights.
    for h in range(n_head):
        q = qkv_ref[0, :, h * d_head:(h + 1) * d_head]                         # [S, Dh]
        k = qkv_ref[0, :, d_model + h * d_head:d_model + (h + 1) * d_head]     # [S, Dh]
        v = qkv_ref[0, :, 2 * d_model + h * d_head:2 * d_model + (h + 1) * d_head]
        s = lax.dot_general(q, k, (((1,), (1,)), ((), ())),
                            preferred_element_type=jnp.float32)                # [S, S]
        m = jnp.max(s, axis=-1, keepdims=True)
        p = jnp.exp(s - m)
        denom = jnp.sum(p, axis=-1, keepdims=True)
        o = lax.dot_general(p.astype(MXU_DTYPE), v, (((1,), (0,)), ((), ())),
                            preferred_element_type=jnp.float32)                # [S, Dh]
        o = o * pl.reciprocal(denom, approx=True)
        o_ref[0, :, h * d_head:(h + 1) * d_head] = o.astype(o_ref.dtype)
    # TODO(synk): flash-style KV blocking for S >= 1024 to cap the [S, S] score.


def attention_core(qkv3, n_head):
    # qkv3: [B, S, 3*D]  (feature axis layout: q heads | k heads | v heads)
    B, S, threeD = qkv3.shape
    D = threeD // 3
    d_head = D // n_head
    return pl.pallas_call(
        functools.partial(_attn_kernel, n_head=n_head, d_head=d_head, d_model=D),
        out_shape=jax.ShapeDtypeStruct((B, S, D), ACT_DTYPE),
        grid=(B,),
        in_specs=[pl.BlockSpec((1, S, threeD), lambda b: (b, 0, 0))],
        out_specs=pl.BlockSpec((1, S, D), lambda b: (b, 0, 0)),
        compiler_params=pltpu.CompilerParams(
            dimension_semantics=("parallel",),
            vmem_limit_bytes=VMEM_LIMIT),
    )(qkv3)


# --------------------------- model (JAX glue) -------------------------------

def multihead_attention_residual(x, blk, n_head):
    """y = x + out_proj(attention(ln_1(x) @ W_qkv))  — all Pallas kernels."""
    B, S, D = x.shape
    x2 = x.reshape(B * S, D)
    qkv = ln_linear(x2, blk["ln1_g"], blk["ln1_b"], blk["w_qkv"], blk["b_qkv"])
    attn = attention_core(qkv.reshape(B, S, 3 * D), n_head)   # [B, S, D] lane-dense
    y = linear_residual(attn.reshape(B * S, D), blk["wo"], blk["bo"], x2)
    return y.reshape(B, S, D)


def resblock(x, blk, n_head):
    # CLIP ResidualAttentionBlock: x += attn(ln_1(x)); x += mlp(ln_2(x))
    B, S, D = x.shape
    x = multihead_attention_residual(x, blk, n_head)
    y = mlp_block_residual(x.reshape(B * S, D), blk["ln2_g"], blk["ln2_b"],
                           blk["w_fc"], blk["b_fc"],
                           blk["w_cproj"], blk["b_cproj"])
    return y.reshape(B, S, D)


def vision_encoder_forward(x, ctx_v, params, *, n_pro, layer_p, n_head):
    """x: [B, N, D] patch+cls tokens; ctx_v: [B, layer_p, n_pro, D] prompts."""
    B, N, D = x.shape
    # torch.cat([x, ctx_v[:, 0]], dim=1); residual stream kept in bf16
    x = jnp.concatenate([x.astype(ACT_DTYPE), ctx_v[:, 0].astype(ACT_DTYPE)], axis=1)
    S = N + n_pro
    x = layernorm(x.reshape(B * S, D),
                  params["ln_pre_g"], params["ln_pre_b"]).reshape(B, S, D)
    for i, blk in enumerate(params["blocks"]):
        if 1 <= i < layer_p:
            # overwrite the last n_pro tokens in place (no full-tensor concat)
            x = lax.dynamic_update_slice(x, ctx_v[:, i].astype(x.dtype),
                                         (0, S - n_pro, 0))
        x = resblock(x, blk, n_head)
    cls = x[:, 0, :]                                          # [B, D]
    # ln_post fused with the output projection (x @ proj, no bias)
    out = ln_linear(cls, params["ln_post_g"], params["ln_post_b"],
                    params["proj"], params["proj_bias"])
    return out.astype(jnp.float32)


# ----------------------------- params ----------------------------------------

def init_params(key, *, depth, d_model, d_out):
    def nrm(k, shape, scale=0.02):
        return (scale * jax.random.normal(k, shape)).astype(jnp.float32)

    keys = iter(jax.random.split(key, 8 + depth * 16))
    params = {
        "ln_pre_g": 1.0 + nrm(next(keys), (d_model,)),
        "ln_pre_b": nrm(next(keys), (d_model,)),
        "ln_post_g": 1.0 + nrm(next(keys), (d_model,)),
        "ln_post_b": nrm(next(keys), (d_model,)),
        "proj": nrm(next(keys), (d_model, d_out)),
        "blocks": [],
    }
    for _ in range(depth):
        blk = {
            "ln1_g": 1.0 + nrm(next(keys), (d_model,)),
            "ln1_b": nrm(next(keys), (d_model,)),
            # fused QKV projection weight [D, 3D], bias [3D] (order: q | k | v)
            "w_qkv": nrm(next(keys), (d_model, 3 * d_model)),
            "b_qkv": nrm(next(keys), (3 * d_model,)),
            "wo": nrm(next(keys), (d_model, d_model)),
            "bo": nrm(next(keys), (d_model,)),
            "ln2_g": 1.0 + nrm(next(keys), (d_model,)),
            "ln2_b": nrm(next(keys), (d_model,)),
            "w_fc": nrm(next(keys), (d_model, 4 * d_model)),
            "b_fc": nrm(next(keys), (4 * d_model,)),
            "w_cproj": nrm(next(keys), (4 * d_model, d_model)),
            "b_cproj": nrm(next(keys), (d_model,)),
        }
        params["blocks"].append(blk)
    return params


def prepare_params(params, *, n_head):
    """Fold 1/sqrt(Dh) into the q slice of W_qkv/b_qkv and pre-cast all GEMM
    weights to bf16 once (halves weight HBM traffic, removes per-tile casts).
    LayerNorm params and biases stay f32 (added in the f32 accumulator)."""
    d_model, d_out = params["proj"].shape
    scale = 1.0 / ((d_model // n_head) ** 0.5)
    out = {
        "ln_pre_g": params["ln_pre_g"], "ln_pre_b": params["ln_pre_b"],
        "ln_post_g": params["ln_post_g"], "ln_post_b": params["ln_post_b"],
        "proj": params["proj"].astype(MXU_DTYPE),
        "proj_bias": jnp.zeros((d_out,), jnp.float32),
        "blocks": [],
    }
    for blk in params["blocks"]:
        w_qkv = blk["w_qkv"].at[:, :d_model].multiply(scale)
        b_qkv = blk["b_qkv"].at[:d_model].multiply(scale)
        out["blocks"].append({
            "ln1_g": blk["ln1_g"], "ln1_b": blk["ln1_b"],
            "w_qkv": w_qkv.astype(MXU_DTYPE), "b_qkv": b_qkv,
            "wo": blk["wo"].astype(MXU_DTYPE), "bo": blk["bo"],
            "ln2_g": blk["ln2_g"], "ln2_b": blk["ln2_b"],
            "w_fc": blk["w_fc"].astype(MXU_DTYPE), "b_fc": blk["b_fc"],
            "w_cproj": blk["w_cproj"].astype(MXU_DTYPE), "b_cproj": blk["b_cproj"],
        })
    return out


# --------------------------------- main --------------------------------------

if __name__ == "__main__":
    B = 2          # batch
    N = 8          # tokens already embedded (cls + patches)
    D = 32         # width
    H = 4          # attention heads
    N_PRO = 4      # prompt tokens per layer
    LAYERS = 4     # transformer depth
    LAYER_P = 3    # prompt-replacement depth
    D_OUT = 16     # projection output dim

    key = jax.random.PRNGKey(0)
    k_x, k_ctx, k_p = jax.random.split(key, 3)
    x = jax.random.normal(k_x, (B, N, D), dtype=jnp.float32)
    ctx_v = jax.random.normal(k_ctx, (B, LAYER_P, N_PRO, D), dtype=jnp.float32)
    params = prepare_params(init_params(k_p, depth=LAYERS, d_model=D, d_out=D_OUT),
                            n_head=H)

    fwd = jax.jit(functools.partial(vision_encoder_forward,
                                    n_pro=N_PRO, layer_p=LAYER_P, n_head=H))
    out = jax.block_until_ready(fwd(x, ctx_v, params))
    assert out.shape == (B, D_OUT), out.shape
    assert jnp.all(jnp.isfinite(out))
    print("KERNEL_OK")
</pallas_src>

<mosaic_0001>
module attributes {stable_mosaic.version = 11 : i64} {
  func.func @_linear_res_kernel(%arg0: i32, %arg1: i32, %arg2: i32, %arg3: memref<24x32xbf16, #tpu.memory_space<vmem>>, %arg4: memref<32x32xbf16, #tpu.memory_space<vmem>>, %arg5: memref<1x32xf32, #tpu.memory_space<vmem>>, %arg6: memref<24x32xbf16, #tpu.memory_space<vmem>>, %arg7: memref<24x32xbf16, #tpu.memory_space<vmem>>, %arg8: memref<24x32xf32, #tpu.memory_space<vmem>>) attributes {dimension_semantics = [#tpu.dimension_semantics<parallel>, #tpu.dimension_semantics<parallel>, #tpu.dimension_semantics<arbitrary>], iteration_bounds = array<i64: 1, 1, 1>, scalar_prefetch = 0 : i64, scratch_operands = 1 : i64, tpu.core_type = #tpu.core_type<tc>, window_params = [{transform_indices = @transform_0, window_bounds = array<i64: 24, 32>}, {transform_indices = @transform_1, window_bounds = array<i64: 32, 32>}, {transform_indices = @transform_2, window_bounds = array<i64: 1, 32>}, {transform_indices = @transform_3, window_bounds = array<i64: 24, 32>}, {transform_indices = @transform_4, window_bounds = array<i64: 24, 32>}]} {
    %c0_i32 = arith.constant 0 : i32
    %0 = arith.cmpi eq, %arg2, %c0_i32 : i32
    %1 = arith.extui %0 : i1 to i32
    %c0_i32_0 = arith.constant 0 : i32
    %2 = arith.cmpi ne, %1, %c0_i32_0 : i32
    scf.if %2 {
      %cst_10 = arith.constant 0.000000e+00 : f32
      %12 = vector.broadcast %cst_10 : f32 to vector<24x32xf32>
      %c0_11 = arith.constant 0 : index
      %c0_12 = arith.constant 0 : index
      %13 = vector.load %arg8[%c0_11, %c0_12] : memref<24x32xf32, #tpu.memory_space<vmem>>, vector<24x32xf32>
      tpu.vector_store %arg8[%c0_11, %c0_12], %12 {strides = array<i32>} : memref<24x32xf32, #tpu.memory_space<vmem>>, vector<24x32xf32>,
    } else {
    }
    %c0 = arith.constant 0 : index
    %c0_1 = arith.constant 0 : index
    %3 = vector.load %arg8[%c0, %c0_1] : memref<24x32xf32, #tpu.memory_space<vmem>>, vector<24x32xf32>
    %c0_2 = arith.constant 0 : index
    %c0_3 = arith.constant 0 : index
    %4 = vector.load %arg3[%c0_2, %c0_3] : memref<24x32xbf16, #tpu.memory_space<vmem>>, vector<24x32xbf16>
    %c0_4 = arith.constant 0 : index
    %c0_5 = arith.constant 0 : index
    %5 = vector.load %arg4[%c0_4, %c0_5] : memref<32x32xbf16, #tpu.memory_space<vmem>>, vector<32x32xbf16>
    %cst = arith.constant dense<0.000000e+00> : vector<24x32xf32>
    %6 = tpu.matmul %4, %5, %cst {dimension_numbers = #tpu.dot_dimension_numbers<[1], [0], [0], [1], [0, 0, 1, 1], [], []>} : vector<24x32xbf16>, vector<32x32xbf16>, vector<24x32xf32> -> vector<24x32xf32>
    %7 = arith.addf %3, %6 : vector<24x32xf32>
    %c0_6 = arith.constant 0 : index
    %c0_7 = arith.constant 0 : index
    %8 = vector.load %arg8[%c0_6, %c0_7] : memref<24x32xf32, #tpu.memory_space<vmem>>, vector<24x32xf32>
    tpu.vector_store %arg8[%c0_6, %c0_7], %7 {strides = array<i32>} : memref<24x32xf32, #tpu.memory_space<vmem>>, vector<24x32xf32>,
    %c0_i32_8 = arith.constant 0 : i32
    %9 = arith.cmpi eq, %arg2, %c0_i32_8 : i32
    %10 = arith.extui %9 : i1 to i32
    %c0_i32_9 = arith.constant 0 : i32
    %11 = arith.cmpi ne, %10, %c0_i32_9 : i32
    scf.if %11 {
      %c0_10 = arith.constant 0 : index
      %c0_11 = arith.constant 0 : index
      %12 = vector.load %arg8[%c0_10, %c0_11] : memref<24x32xf32, #tpu.memory_space<vmem>>, vector<24x32xf32>
      %c0_12 = arith.constant 0 : index
      %c0_13 = arith.constant 0 : index
      %13 = vector.load %arg5[%c0_12, %c0_13] : memref<1x32xf32, #tpu.memory_space<vmem>>, vector<1x32xf32>
      %14 = vector.broadcast %13 : vector<1x32xf32> to vector<24x32xf32>
      %15 = arith.addf %12, %14 : vector<24x32xf32>
      %c0_14 = arith.constant 0 : index
      %c0_15 = arith.constant 0 : index
      %16 = vector.load %arg6[%c0_14, %c0_15] : memref<24x32xbf16, #tpu.memory_space<vmem>>, vector<24x32xbf16>
      %17 = arith.extf %16 : vector<24x32xbf16> to vector<24x32xf32>
      %18 = arith.addf %15, %17 : vector<24x32xf32>
      %19 = arith.truncf %18 : vector<24x32xf32> to vector<24x32xbf16>
      %c0_16 = arith.constant 0 : index
      %c0_17 = arith.constant 0 : index
      %20 = vector.load %arg7[%c0_16, %c0_17] : memref<24x32xbf16, #tpu.memory_space<vmem>>, vector<24x32xbf16>
      tpu.vector_store %arg7[%c0_16, %c0_17], %19 {strides = array<i32>} : memref<24x32xbf16, #tpu.memory_space<vmem>>, vector<24x32xbf16>,
    } else {
    }
    return
  }
  func.func @transform_0(%arg0: i32, %arg1: i32, %arg2: i32) -> (i32, i32) {
    %c0_i32 = arith.constant 0 : i32
    return %arg0, %arg2 : i32, i32
  }
  func.func @transform_1(%arg0: i32, %arg1: i32, %arg2: i32) -> (i32, i32) {
    %c0_i32 = arith.constant 0 : i32
    return %arg2, %arg1 : i32, i32
  }
  func.func @transform_2(%arg0: i32, %arg1: i32, %arg2: i32) -> (i32, i32) {
    %c0_i32 = arith.constant 0 : i32
    %c0_i32_0 = arith.constant 0 : i32
    return %c0_i32, %arg1 : i32, i32
  }
  func.func @transform_3(%arg0: i32, %arg1: i32, %arg2: i32) -> (i32, i32) {
    %c0_i32 = arith.constant 0 : i32
    return %arg0, %arg1 : i32, i32
  }
  func.func @transform_4(%arg0: i32, %arg1: i32, %arg2: i32) -> (i32, i32) {
    %c0_i32 = arith.constant 0 : i32
    return %arg0, %arg1 : i32, i32
  }
}

module attributes {stable_mosaic.version = 11 : i64} {
  func.func @_ln_linear_kernel(%arg0: i32, %arg1: i32, %arg2: memref<24x32xbf16, #tpu.memory_space<vmem>>, %arg3: memref<1x32xf32, #tpu.memory_space<vmem>>, %arg4: memref<1x32xf32, #tpu.memory_space<vmem>>, %arg5: memref<32x96xbf16, #tpu.memory_space<vmem>>, %arg6: memref<1x96xf32, #tpu.memory_space<vmem>>, %arg7: memref<24x96xbf16, #tpu.memory_space<vmem>>, %arg8: memref<24x32xbf16, #tpu.memory_space<vmem>>) attributes {dimension_semantics = [#tpu.dimension_semantics<parallel>, #tpu.dimension_semantics<arbitrary>], iteration_bounds = array<i64: 1, 1>, scalar_prefetch = 0 : i64, scratch_operands = 1 : i64, tpu.core_type = #tpu.core_type<tc>, window_params = [{transform_indices = @transform_0, window_bounds = array<i64: 24, 32>}, {pipeline_mode = #tpu.pipeline_mode<synchronous>, transform_indices = @transform_1, window_bounds = array<i64: 1, 32>}, {pipeline_mode = #tpu.pipeline_mode<synchronous>, transform_indices = @transform_2, window_bounds = array<i64: 1, 32>}, {transform_indices = @transform_3, window_bounds = array<i64: 32, 96>}, {transform_indices = @transform_4, window_bounds = array<i64: 1, 96>}, {transform_indices = @transform_5, window_bounds = array<i64: 24, 96>}]} {
    %c0_i32 = arith.constant 0 : i32
    %0 = arith.cmpi eq, %arg1, %c0_i32 : i32
    %1 = arith.extui %0 : i1 to i32
    %c0_i32_0 = arith.constant 0 : i32
    %2 = arith.cmpi ne, %1, %c0_i32_0 : i32
    scf.if %2 {
      %c0_8 = arith.constant 0 : index
      %c0_9 = arith.constant 0 : index
      %11 = vector.load %arg2[%c0_8, %c0_9] : memref<24x32xbf16, #tpu.memory_space<vmem>>, vector<24x32xbf16>
      %12 = arith.extf %11 : vector<24x32xbf16> to vector<24x32xf32>
      %cst_10 = arith.constant dense<0.000000e+00> : vector<24xf32>
      %13 = vector.multi_reduction <add>, %12, %cst_10 [1] : vector<24x32xf32> to vector<24xf32>
      %14 = vector.shape_cast %13 : vector<24xf32> to vector<24x1xf32>
      %cst_11 = arith.constant 3.200000e+01 : f32
      %15 = vector.broadcast %cst_11 : f32 to vector<24x1xf32>
      %16 = arith.divf %14, %15 : vector<24x1xf32>
      %17 = vector.broadcast %16 : vector<24x1xf32> to vector<24x32xf32>
      %18 = arith.subf %12, %17 : vector<24x32xf32>
      %19 = arith.mulf %18, %18 : vector<24x32xf32>
      %cst_12 = arith.constant dense<0.000000e+00> : vector<24xf32>
      %20 = vector.multi_reduction <add>, %19, %cst_12 [1] : vector<24x32xf32> to vector<24xf32>
      %21 = vector.shape_cast %20 : vector<24xf32> to vector<24x1xf32>
      %cst_13 = arith.constant 3.200000e+01 : f32
      %22 = vector.broadcast %cst_13 : f32 to vector<24x1xf32>
      %23 = arith.divf %21, %22 : vector<24x1xf32>
      %24 = vector.broadcast %16 : vector<24x1xf32> to vector<24x32xf32>
      %25 = arith.subf %12, %24 : vector<24x32xf32>
      %cst_14 = arith.constant 9.99999974E-6 : f32
      %26 = vector.broadcast %cst_14 : f32 to vector<24x1xf32>
      %27 = arith.addf %23, %26 : vector<24x1xf32>
      %28 = math.rsqrt %27 : vector<24x1xf32>
      %29 = vector.broadcast %28 : vector<24x1xf32> to vector<24x32xf32>
      %30 = arith.mulf %25, %29 : vector<24x32xf32>
      %c0_15 = arith.constant 0 : index
      %c0_16 = arith.constant 0 : index
      %31 = vector.load %arg3[%c0_15, %c0_16] : memref<1x32xf32, #tpu.memory_space<vmem>>, vector<1x32xf32>
      %32 = vector.broadcast %31 : vector<1x32xf32> to vector<24x32xf32>
      %33 = arith.mulf %30, %32 : vector<24x32xf32>
      %c0_17 = arith.constant 0 : index
      %c0_18 = arith.constant 0 : index
      %34 = vector.load %arg4[%c0_17, %c0_18] : memref<1x32xf32, #tpu.memory_space<vmem>>, vector<1x32xf32>
      %35 = vector.broadcast %34 : vector<1x32xf32> to vector<24x32xf32>
      %36 = arith.addf %33, %35 : vector<24x32xf32>
      %37 = arith.truncf %36 : vector<24x32xf32> to vector<24x32xbf16>
      %c0_19 = arith.constant 0 : index
      %c0_20 = arith.constant 0 : index
      %38 = vector.load %arg8[%c0_19, %c0_20] : memref<24x32xbf16, #tpu.memory_space<vmem>>, vector<24x32xbf16>
      tpu.vector_store %arg8[%c0_19, %c0_20], %37 {strides = array<i32>} : memref<24x32xbf16, #tpu.memory_space<vmem>>, vector<24x32xbf16>,
    } else {
    }
    %c0 = arith.constant 0 : index
    %c0_1 = arith.constant 0 : index
    %3 = vector.load %arg8[%c0, %c0_1] : memref<24x32xbf16, #tpu.memory_space<vmem>>, vector<24x32xbf16>
    %c0_2 = arith.constant 0 : index
    %c0_3 = arith.constant 0 : index
    %4 = vector.load %arg5[%c0_2, %c0_3] : memref<32x96xbf16, #tpu.memory_space<vmem>>, vector<32x96xbf16>
    %cst = arith.constant dense<0.000000e+00> : vector<24x96xf32>
    %5 = tpu.matmul %3, %4, %cst {dimension_numbers = #tpu.dot_dimension_numbers<[1], [0], [0], [1], [0, 0, 1, 1], [], []>} : vector<24x32xbf16>, vector<32x96xbf16>, vector<24x96xf32> -> vector<24x96xf32>
    %c0_4 = arith.constant 0 : index
    %c0_5 = arith.constant 0 : index
    %6 = vector.load %arg6[%c0_4, %c0_5] : memref<1x96xf32, #tpu.memory_space<vmem>>, vector<1x96xf32>
    %7 = vector.broadcast %6 : vector<1x96xf32> to vector<24x96xf32>
    %8 = arith.addf %5, %7 : vector<24x96xf32>
    %9 = arith.truncf %8 : vector<24x96xf32> to vector<24x96xbf16>
    %c0_6 = arith.constant 0 : index
    %c0_7 = arith.constant 0 : index
    %10 = vector.load %arg7[%c0_6, %c0_7] : memref<24x96xbf16, #tpu.memory_space<vmem>>, vector<24x96xbf16>
    tpu.vector_store %arg7[%c0_6, %c0_7], %9 {strides = array<i32>} : memref<24x96xbf16, #tpu.memory_space<vmem>>, vector<24x96xbf16>,
    return
  }
  func.func @transform_0(%arg0: i32, %arg1: i32) -> (i32, i32) {
    %c0_i32 = arith.constant 0 : i32
    %c0_i32_0 = arith.constant 0 : i32
    return %arg0, %c0_i32 : i32, i32
  }
  func.func @transform_1(%arg0: i32, %arg1: i32) -> (i32, i32) {
    %c0_i32 = arith.constant 0 : i32
    %c0_i32_0 = arith.constant 0 : i32
    %c0_i32_1 = arith.constant 0 : i32
    return %c0_i32, %c0_i32_0 : i32, i32
  }
  func.func @transform_2(%arg0: i32, %arg1: i32) -> (i32, i32) {
    %c0_i32 = arith.constant 0 : i32
    %c0_i32_0 = arith.constant 0 : i32
    %c0_i32_1 = arith.constant 0 : i32
    return %c0_i32, %c0_i32_0 : i32, i32
  }
  func.func @transform_3(%arg0: i32, %arg1: i32) -> (i32, i32) {
    %c0_i32 = arith.constant 0 : i32
    %c0_i32_0 = arith.constant 0 : i32
    return %c0_i32, %arg1 : i32, i32
  }
  func.func @transform_4(%arg0: i32, %arg1: i32) -> (i32, i32) {
    %c0_i32 = arith.constant 0 : i32
    %c0_i32_0 = arith.constant 0 : i32
    return %c0_i32, %arg1 : i32, i32
  }
  func.func @transform_5(%arg0: i32, %arg1: i32) -> (i32, i32) {
    %c0_i32 = arith.constant 0 : i32
    return %arg0, %arg1 : i32, i32
  }
}

module attributes {stable_mosaic.version = 11 : i64} {
  func.func @_attn_kernel(%arg0: i32, %arg1: memref<1x12x96xbf16, #tpu.memory_space<vmem>>, %arg2: memref<1x12x32xbf16, #tpu.memory_space<vmem>>) attributes {dimension_semantics = [#tpu.dimension_semantics<parallel>], iteration_bounds = array<i64: 2>, scalar_prefetch = 0 : i64, scratch_operands = 0 : i64, tpu.core_type = #tpu.core_type<tc>, window_params = [{transform_indices = @transform_0, window_bounds = array<i64: 1, 12, 96>}, {transform_indices = @transform_1, window_bounds = array<i64: 1, 12, 32>}]} {
    %c0 = arith.constant 0 : index
    %c0_0 = arith.constant 0 : index
    %c0_1 = arith.constant 0 : index
    %0 = vector.load %arg1[%c0, %c0_0, %c0_1] : memref<1x12x96xbf16, #tpu.memory_space<vmem>>, vector<1x12x8xbf16>
    %1 = vector.shape_cast %0 : vector<1x12x8xbf16> to vector<12x8xbf16>
    %c0_2 = arith.constant 0 : index
    %c0_3 = arith.constant 0 : index
    %c32 = arith.constant 32 : index
    %2 = vector.load %arg1[%c0_2, %c0_3, %c32] : memref<1x12x96xbf16, #tpu.memory_space<vmem>>, vector<1x12x8xbf16>
    %3 = vector.shape_cast %2 : vector<1x12x8xbf16> to vector<12x8xbf16>
    %c0_4 = arith.constant 0 : index
    %c0_5 = arith.constant 0 : index
    %c64 = arith.constant 64 : index
    %4 = vector.load %arg1[%c0_4, %c0_5, %c64] : memref<1x12x96xbf16, #tpu.memory_space<vmem>>, vector<1x12x8xbf16>
    %5 = vector.shape_cast %4 : vector<1x12x8xbf16> to vector<12x8xbf16>
    %cst = arith.constant dense<0.000000e+00> : vector<12x12xf32>
    %6 = tpu.matmul %1, %3, %cst {dimension_numbers = #tpu.dot_dimension_numbers<[1], [1], [0], [0], [0, 0, 1, 0], [], []>} : vector<12x8xbf16>, vector<12x8xbf16>, vector<12x12xf32> -> vector<12x12xf32>
    %cst_6 = arith.constant dense<0xFF800000> : vector<12xf32>
    %7 = vector.multi_reduction <maximumf>, %6, %cst_6 [1] : vector<12x12xf32> to vector<12xf32>
    %8 = vector.shape_cast %7 : vector<12xf32> to vector<12x1xf32>
    %9 = vector.broadcast %8 : vector<12x1xf32> to vector<12x12xf32>
    %10 = arith.subf %6, %9 : vector<12x12xf32>
    %11 = math.exp %10 : vector<12x12xf32>
    %cst_7 = arith.constant dense<0.000000e+00> : vector<12xf32>
    %12 = vector.multi_reduction <add>, %11, %cst_7 [1] : vector<12x12xf32> to vector<12xf32>
    %13 = vector.shape_cast %12 : vector<12xf32> to vector<12x1xf32>
    %14 = arith.truncf %11 : vector<12x12xf32> to vector<12x12xbf16>
    %cst_8 = arith.constant dense<0.000000e+00> : vector<12x8xf32>
    %15 = tpu.matmul %14, %5, %cst_8 {dimension_numbers = #tpu.dot_dimension_numbers<[1], [0], [0], [1], [0, 0, 1, 1], [], []>} : vector<12x12xbf16>, vector<12x8xbf16>, vector<12x8xf32> -> vector<12x8xf32>
    %16 = tpu.reciprocal %13 {approx = true} : vector<12x1xf32> -> vector<12x1xf32>
    %17 = vector.broadcast %16 : vector<12x1xf32> to vector<12x8xf32>
    %18 = arith.mulf %15, %17 : vector<12x8xf32>
    %19 = arith.truncf %18 : vector<12x8xf32> to vector<12x8xbf16>
    %c0_9 = arith.constant 0 : index
    %c0_10 = arith.constant 0 : index
    %c0_11 = arith.constant 0 : index
    %20 = vector.load %arg2[%c0_9, %c0_10, %c0_11] : memref<1x12x32xbf16, #tpu.memory_space<vmem>>, vector<1x12x8xbf16>
    %21 = vector.shape_cast %20 : vector<1x12x8xbf16> to vector<12x8xbf16>
    %22 = vector.shape_cast %19 : vector<12x8xbf16> to vector<1x12x8xbf16>
    tpu.vector_store %arg2[%c0_9, %c0_10, %c0_11], %22 {strides = array<i32>} : memref<1x12x32xbf16, #tpu.memory_space<vmem>>, vector<1x12x8xbf16>,
    %c0_12 = arith.constant 0 : index
    %c0_13 = arith.constant 0 : index
    %c8 = arith.constant 8 : index
    %23 = vector.load %arg1[%c0_12, %c0_13, %c8] : memref<1x12x96xbf16, #tpu.memory_space<vmem>>, vector<1x12x8xbf16>
    %24 = vector.shape_cast %23 : vector<1x12x8xbf16> to vector<12x8xbf16>
    %c0_14 = arith.constant 0 : index
    %c0_15 = arith.constant 0 : index
    %c40 = arith.constant 40 : index
    %25 = vector.load %arg1[%c0_14, %c0_15, %c40] : memref<1x12x96xbf16, #tpu.memory_space<vmem>>, vector<1x12x8xbf16>
    %26 = vector.shape_cast %25 : vector<1x12x8xbf16> to vector<12x8xbf16>
    %c0_16 = arith.constant 0 : index
    %c0_17 = arith.constant 0 : index
    %c72 = arith.constant 72 : index
    %27 = vector.load %arg1[%c0_16, %c0_17, %c72] : memref<1x12x96xbf16, #tpu.memory_space<vmem>>, vector<1x12x8xbf16>
    %28 = vector.shape_cast %27 : vector<1x12x8xbf16> to vector<12x8xbf16>
    %cst_18 = arith.constant dense<0.000000e+00> : vector<12x12xf32>
    %29 = tpu.matmul %24, %26, %cst_18 {dimension_numbers = #tpu.dot_dimension_numbers<[1], [1], [0], [0], [0, 0, 1, 0], [], []>} : vector<12x8xbf16>, vector<12x8xbf16>, vector<12x12xf32> -> vector<12x12xf32>
    %cst_19 = arith.constant dense<0xFF800000> : vector<12xf32>
    %30 = vector.multi_reduction <maximumf>, %29, %cst_19 [1] : vector<12x12xf32> to vector<12xf32>
    %31 = vector.shape_cast %30 : vector<12xf32> to vector<12x1xf32>
    %32 = vector.broadcast %31 : vector<12x1xf32> to vector<12x12xf32>
    %33 = arith.subf %29, %32 : vector<12x12xf32>
    %34 = math.exp %33 : vector<12x12xf32>
    %cst_20 = arith.constant dense<0.000000e+00> : vector<12xf32>
    %35 = vector.multi_reduction <add>, %34, %cst_20 [1] : vector<12x12xf32> to vector<12xf32>
    %36 = vector.shape_cast %35 : vector<12xf32> to vector<12x1xf32>
    %37 = arith.truncf %34 : vector<12x12xf32> to vector<12x12xbf16>
    %cst_21 = arith.constant dense<0.000000e+00> : vector<12x8xf32>
    %38 = tpu.matmul %37, %28, %cst_21 {dimension_numbers = #tpu.dot_dimension_numbers<[1], [0], [0], [1], [0, 0, 1, 1], [], []>} : vector<12x12xbf16>, vector<12x8xbf16>, vector<12x8xf32> -> vector<12x8xf32>
    %39 = tpu.reciprocal %36 {approx = true} : vector<12x1xf32> -> vector<12x1xf32>
    %40 = vector.broadcast %39 : vector<12x1xf32> to vector<12x8xf32>
    %41 = arith.mulf %38, %40 : vector<12x8xf32>
    %42 = arith.truncf %41 : vector<12x8xf32> to vector<12x8xbf16>
    %c0_22 = arith.constant 0 : index
    %c0_23 = arith.constant 0 : index
    %c8_24 = arith.constant 8 : index
    %43 = vector.load %arg2[%c0_22, %c0_23, %c8_24] : memref<1x12x32xbf16, #tpu.memory_space<vmem>>, vector<1x12x8xbf16>
    %44 = vector.shape_cast %43 : vector<1x12x8xbf16> to vector<12x8xbf16>
    %45 = vector.shape_cast %42 : vector<12x8xbf16> to vector<1x12x8xbf16>
    tpu.vector_store %arg2[%c0_22, %c0_23, %c8_24], %45 {strides = array<i32>} : memref<1x12x32xbf16, #tpu.memory_space<vmem>>, vector<1x12x8xbf16>,
    %c0_25 = arith.constant 0 : index
    %c0_26 = arith.constant 0 : index
    %c16 = arith.constant 16 : index
    %46 = vector.load %arg1[%c0_25, %c0_26, %c16] : memref<1x12x96xbf16, #tpu.memory_space<vmem>>, vector<1x12x8xbf16>
    %47 = vector.shape_cast %46 : vector<1x12x8xbf16> to vector<12x8xbf16>
    %c0_27 = arith.constant 0 : index
    %c0_28 = arith.constant 0 : index
    %c48 = arith.constant 48 : index
    %48 = vector.load %arg1[%c0_27, %c0_28, %c48] : memref<1x12x96xbf16, #tpu.memory_space<vmem>>, vector<1x12x8xbf16>
    %49 = vector.shape_cast %48 : vector<1x12x8xbf16> to vector<12x8xbf16>
    %c0_29 = arith.constant 0 : index
    %c0_30 = arith.constant 0 : index
    %c80 = arith.constant 80 : index
    %50 = vector.load %arg1[%c0_29, %c0_30, %c80] : memref<1x12x96xbf16, #tpu.memory_space<vmem>>, vector<1x12x8xbf16>
    %51 = vector.shape_cast %50 : vector<1x12x8xbf16> to vector<12x8xbf16>
    %cst_31 = arith.constant dense<0.000000e+00> : vector<12x12xf32>
    %52 = tpu.matmul %47, %49, %cst_31 {dimension_numbers = #tpu.dot_dimension_numbers<[1], [1], [0], [0], [0, 0, 1, 0], [], []>} : vector<12x8xbf16>, vector<12x8xbf16>, vector<12x12xf32> -> vector<12x12xf32>
    %cst_32 = arith.constant dense<0xFF800000> : vector<12xf32>
    %53 = vector.multi_reduction <maximumf>, %52, %cst_32 [1] : vector<12x12xf32> to vector<12xf32>
    %54 = vector.shape_cast %53 : vector<12xf32> to vector<12x1xf32>
    %55 = vector.broadcast %54 : vector<12x1xf32> to vector<12x12xf32>
    %56 = arith.subf %52, %55 : vector<12x12xf32>
    %57 = math.exp %56 : vector<12x12xf32>
    %cst_33 = arith.constant dense<0.000000e+00> : vector<12xf32>
    %58 = vector.multi_reduction <add>, %57, %cst_33 [1] : vector<12x12xf32> to vector<12xf32>
    %59 = vector.shape_cast %58 : vector<12xf32> to vector<12x1xf32>
    %60 = arith.truncf %57 : vector<12x12xf32> to vector<12x12xbf16>
    %cst_34 = arith.constant dense<0.000000e+00> : vector<12x8xf32>
    %61 = tpu.matmul %60, %51, %cst_34 {dimension_numbers = #tpu.dot_dimension_numbers<[1], [0], [0], [1], [0, 0, 1, 1], [], []>} : vector<12x12xbf16>, vector<12x8xbf16>, vector<12x8xf32> -> vector<12x8xf32>
    %62 = tpu.reciprocal %59 {approx = true} : vector<12x1xf32> -> vector<12x1xf32>
    %63 = vector.broadcast %62 : vector<12x1xf32> to vector<12x8xf32>
    %64 = arith.mulf %61, %63 : vector<12x8xf32>
    %65 = arith.truncf %64 : vector<12x8xf32> to vector<12x8xbf16>
    %c0_35 = arith.constant 0 : index
    %c0_36 = arith.constant 0 : index
    %c16_37 = arith.constant 16 : index
    %66 = vector.load %arg2[%c0_35, %c0_36, %c16_37] : memref<1x12x32xbf16, #tpu.memory_space<vmem>>, vector<1x12x8xbf16>
    %67 = vector.shape_cast %66 : vector<1x12x8xbf16> to vector<12x8xbf16>
    %68 = vector.shape_cast %65 : vector<12x8xbf16> to vector<1x12x8xbf16>
    tpu.vector_store %arg2[%c0_35, %c0_36, %c16_37], %68 {strides = array<i32>} : memref<1x12x32xbf16, #tpu.memory_space<vmem>>, vector<1x12x8xbf16>,
    %c0_38 = arith.constant 0 : index
    %c0_39 = arith.constant 0 : index
    %c24 = arith.constant 24 : index
    %69 = vector.load %arg1[%c0_38, %c0_39, %c24] : memref<1x12x96xbf16, #tpu.memory_space<vmem>>, vector<1x12x8xbf16>
    %70 = vector.shape_cast %69 : vector<1x12x8xbf16> to vector<12x8xbf16>
    %c0_40 = arith.constant 0 : index
    %c0_41 = arith.constant 0 : index
    %c56 = arith.constant 56 : index
    %71 = vector.load %arg1[%c0_40, %c0_41, %c56] : memref<1x12x96xbf16, #tpu.memory_space<vmem>>, vector<1x12x8xbf16>
    %72 = vector.shape_cast %71 : vector<1x12x8xbf16> to vector<12x8xbf16>
    %c0_42 = arith.constant 0 : index
    %c0_43 = arith.constant 0 : index
    %c88 = arith.constant 88 : index
    %73 = vector.load %arg1[%c0_42, %c0_43, %c88] : memref<1x12x96xbf16, #tpu.memory_space<vmem>>, vector<1x12x8xbf16>
    %74 = vector.shape_cast %73 : vector<1x12x8xbf16> to vector<12x8xbf16>
    %cst_44 = arith.constant dense<0.000000e+00> : vector<12x12xf32>
    %75 = tpu.matmul %70, %72, %cst_44 {dimension_numbers = #tpu.dot_dimension_numbers<[1], [1], [0], [0], [0, 0, 1, 0], [], []>} : vector<12x8xbf16>, vector<12x8xbf16>, vector<12x12xf32> -> vector<12x12xf32>
    %cst_45 = arith.constant dense<0xFF800000> : vector<12xf32>
    %76 = vector.multi_reduction <maximumf>, %75, %cst_45 [1] : vector<12x12xf32> to vector<12xf32>
    %77 = vector.shape_cast %76 : vector<12xf32> to vector<12x1xf32>
    %78 = vector.broadcast %77 : vector<12x1xf32> to vector<12x12xf32>
    %79 = arith.subf %75, %78 : vector<12x12xf32>
    %80 = math.exp %79 : vector<12x12xf32>
    %cst_46 = arith.constant dense<0.000000e+00> : vector<12xf32>
    %81 = vector.multi_reduction <add>, %80, %cst_46 [1] : vector<12x12xf32> to vector<12xf32>
    %82 = vector.shape_cast %81 : vector<12xf32> to vector<12x1xf32>
    %83 = arith.truncf %80 : vector<12x12xf32> to vector<12x12xbf16>
    %cst_47 = arith.constant dense<0.000000e+00> : vector<12x8xf32>
    %84 = tpu.matmul %83, %74, %cst_47 {dimension_numbers = #tpu.dot_dimension_numbers<[1], [0], [0], [1], [0, 0, 1, 1], [], []>} : vector<12x12xbf16>, vector<12x8xbf16>, vector<12x8xf32> -> vector<12x8xf32>
    %85 = tpu.reciprocal %82 {approx = true} : vector<12x1xf32> -> vector<12x1xf32>
    %86 = vector.broadcast %85 : vector<12x1xf32> to vector<12x8xf32>
    %87 = arith.mulf %84, %86 : vector<12x8xf32>
    %88 = arith.truncf %87 : vector<12x8xf32> to vector<12x8xbf16>
    %c0_48 = arith.constant 0 : index
    %c0_49 = arith.constant 0 : index
    %c24_50 = arith.constant 24 : index
    %89 = vector.load %arg2[%c0_48, %c0_49, %c24_50] : memref<1x12x32xbf16, #tpu.memory_space<vmem>>, vector<1x12x8xbf16>
    %90 = vector.shape_cast %89 : vector<1x12x8xbf16> to vector<12x8xbf16>
    %91 = vector.shape_cast %88 : vector<12x8xbf16> to vector<1x12x8xbf16>
    tpu.vector_store %arg2[%c0_48, %c0_49, %c24_50], %91 {strides = array<i32>} : memref<1x12x32xbf16, #tpu.memory_space<vmem>>, vector<1x12x8xbf16>,
    return
  }
  func.func @transform_0(%arg0: i32) -> (i32, i32, i32) {
    %c0_i32 = arith.constant 0 : i32
    %c0_i32_0 = arith.constant 0 : i32
    %c0_i32_1 = arith.constant 0 : i32
    return %arg0, %c0_i32, %c0_i32_0 : i32, i32, i32
  }
  func.func @transform_1(%arg0: i32) -> (i32, i32, i32) {
    %c0_i32 = arith.constant 0 : i32
    %c0_i32_0 = arith.constant 0 : i32
    %c0_i32_1 = arith.constant 0 : i32
    return %arg0, %c0_i32, %c0_i32_0 : i32, i32, i32
  }
}

module attributes {stable_mosaic.version = 11 : i64} {
  func.func @_layernorm_kernel(%arg0: i32, %arg1: memref<24x32xbf16, #tpu.memory_space<vmem>>, %arg2: memref<1x32xf32, #tpu.memory_space<vmem>>, %arg3: memref<1x32xf32, #tpu.memory_space<vmem>>, %arg4: memref<24x32xbf16, #tpu.memory_space<vmem>>) attributes {dimension_semantics = [#tpu.dimension_semantics<parallel>], iteration_bounds = array<i64: 1>, scalar_prefetch = 0 : i64, scratch_operands = 0 : i64, tpu.core_type = #tpu.core_type<tc>, window_params = [{transform_indices = @transform_0, window_bounds = array<i64: 24, 32>}, {pipeline_mode = #tpu.pipeline_mode<synchronous>, transform_indices = @transform_1, window_bounds = array<i64: 1, 32>}, {pipeline_mode = #tpu.pipeline_mode<synchronous>, transform_indices = @transform_2, window_bounds = array<i64: 1, 32>}, {transform_indices = @transform_3, window_bounds = array<i64: 24, 32>}]} {
    %c0 = arith.constant 0 : index
    %c0_0 = arith.constant 0 : index
    %0 = vector.load %arg1[%c0, %c0_0] : memref<24x32xbf16, #tpu.memory_space<vmem>>, vector<24x32xbf16>
    %1 = arith.extf %0 : vector<24x32xbf16> to vector<24x32xf32>
    %cst = arith.constant dense<0.000000e+00> : vector<24xf32>
    %2 = vector.multi_reduction <add>, %1, %cst [1] : vector<24x32xf32> to vector<24xf32>
    %3 = vector.shape_cast %2 : vector<24xf32> to vector<24x1xf32>
    %cst_1 = arith.constant 3.200000e+01 : f32
    %4 = vector.broadcast %cst_1 : f32 to vector<24x1xf32>
    %5 = arith.divf %3, %4 : vector<24x1xf32>
    %6 = vector.broadcast %5 : vector<24x1xf32> to vector<24x32xf32>
    %7 = arith.subf %1, %6 : vector<24x32xf32>
    %8 = arith.mulf %7, %7 : vector<24x32xf32>
    %cst_2 = arith.constant dense<0.000000e+00> : vector<24xf32>
    %9 = vector.multi_reduction <add>, %8, %cst_2 [1] : vector<24x32xf32> to vector<24xf32>
    %10 = vector.shape_cast %9 : vector<24xf32> to vector<24x1xf32>
    %cst_3 = arith.constant 3.200000e+01 : f32
    %11 = vector.broadcast %cst_3 : f32 to vector<24x1xf32>
    %12 = arith.divf %10, %11 : vector<24x1xf32>
    %13 = vector.broadcast %5 : vector<24x1xf32> to vector<24x32xf32>
    %14 = arith.subf %1, %13 : vector<24x32xf32>
    %cst_4 = arith.constant 9.99999974E-6 : f32
    %15 = vector.broadcast %cst_4 : f32 to vector<24x1xf32>
    %16 = arith.addf %12, %15 : vector<24x1xf32>
    %17 = math.rsqrt %16 : vector<24x1xf32>
    %18 = vector.broadcast %17 : vector<24x1xf32> to vector<24x32xf32>
    %19 = arith.mulf %14, %18 : vector<24x32xf32>
    %c0_5 = arith.constant 0 : index
    %c0_6 = arith.constant 0 : index
    %20 = vector.load %arg2[%c0_5, %c0_6] : memref<1x32xf32, #tpu.memory_space<vmem>>, vector<1x32xf32>
    %21 = vector.broadcast %20 : vector<1x32xf32> to vector<24x32xf32>
    %22 = arith.mulf %19, %21 : vector<24x32xf32>
    %c0_7 = arith.constant 0 : index
    %c0_8 = arith.constant 0 : index
    %23 = vector.load %arg3[%c0_7, %c0_8] : memref<1x32xf32, #tpu.memory_space<vmem>>, vector<1x32xf32>
    %24 = vector.broadcast %23 : vector<1x32xf32> to vector<24x32xf32>
    %25 = arith.addf %22, %24 : vector<24x32xf32>
    %26 = arith.truncf %25 : vector<24x32xf32> to vector<24x32xbf16>
    %c0_9 = arith.constant 0 : index
    %c0_10 = arith.constant 0 : index
    %27 = vector.load %arg4[%c0_9, %c0_10] : memref<24x32xbf16, #tpu.memory_space<vmem>>, vector<24x32xbf16>
    tpu.vector_store %arg4[%c0_9, %c0_10], %26 {strides = array<i32>} : memref<24x32xbf16, #tpu.memory_space<vmem>>, vector<24x32xbf16>,
    return
  }
  func.func @transform_0(%arg0: i32) -> (i32, i32) {
    %c0_i32 = arith.constant 0 : i32
    %c0_i32_0 = arith.constant 0 : i32
    return %arg0, %c0_i32 : i32, i32
  }
  func.func @transform_1(%arg0: i32) -> (i32, i32) {
    %c0_i32 = arith.constant 0 : i32
    %c0_i32_0 = arith.constant 0 : i32
    %c0_i32_1 = arith.constant 0 : i32
    return %c0_i32, %c0_i32_0 : i32, i32
  }
  func.func @transform_2(%arg0: i32) -> (i32, i32) {
    %c0_i32 = arith.constant 0 : i32
    %c0_i32_0 = arith.constant 0 : i32
    %c0_i32_1 = arith.constant 0 : i32
    return %c0_i32, %c0_i32_0 : i32, i32
  }
  func.func @transform_3(%arg0: i32) -> (i32, i32) {
    %c0_i32 = arith.constant 0 : i32
    %c0_i32_0 = arith.constant 0 : i32
    return %arg0, %c0_i32 : i32, i32
  }
}

module attributes {stable_mosaic.version = 11 : i64} {
  func.func @_mlp_kernel(%arg0: i32, %arg1: i32, %arg2: memref<24x32xbf16, #tpu.memory_space<vmem>>, %arg3: memref<1x32xf32, #tpu.memory_space<vmem>>, %arg4: memref<1x32xf32, #tpu.memory_space<vmem>>, %arg5: memref<32x128xbf16, #tpu.memory_space<vmem>>, %arg6: memref<1x128xf32, #tpu.memory_space<vmem>>, %arg7: memref<128x32xbf16, #tpu.memory_space<vmem>>, %arg8: memref<1x32xf32, #tpu.memory_space<vmem>>, %arg9: memref<24x32xbf16, #tpu.memory_space<vmem>>, %arg10: memref<24x32xbf16, #tpu.memory_space<vmem>>, %arg11: memref<24x32xf32, #tpu.memory_space<vmem>>) attributes {dimension_semantics = [#tpu.dimension_semantics<parallel>, #tpu.dimension_semantics<arbitrary>], iteration_bounds = array<i64: 1, 1>, scalar_prefetch = 0 : i64, scratch_operands = 2 : i64, tpu.core_type = #tpu.core_type<tc>, window_params = [{transform_indices = @transform_0, window_bounds = array<i64: 24, 32>}, {pipeline_mode = #tpu.pipeline_mode<synchronous>, transform_indices = @transform_1, window_bounds = array<i64: 1, 32>}, {pipeline_mode = #tpu.pipeline_mode<synchronous>, transform_indices = @transform_2, window_bounds = array<i64: 1, 32>}, {transform_indices = @transform_3, window_bounds = array<i64: 32, 128>}, {transform_indices = @transform_4, window_bounds = array<i64: 1, 128>}, {transform_indices = @transform_5, window_bounds = array<i64: 128, 32>}, {pipeline_mode = #tpu.pipeline_mode<synchronous>, transform_indices = @transform_6, window_bounds = array<i64: 1, 32>}, {transform_indices = @transform_7, window_bounds = array<i64: 24, 32>}]} {
    %c0_i32 = arith.constant 0 : i32
    %0 = arith.cmpi eq, %arg1, %c0_i32 : i32
    %1 = arith.extui %0 : i1 to i32
    %c0_i32_0 = arith.constant 0 : i32
    %2 = arith.cmpi ne, %1, %c0_i32_0 : i32
    scf.if %2 {
      %c0_17 = arith.constant 0 : index
      %c0_18 = arith.constant 0 : index
      %26 = vector.load %arg2[%c0_17, %c0_18] : memref<24x32xbf16, #tpu.memory_space<vmem>>, vector<24x32xbf16>
      %27 = arith.extf %26 : vector<24x32xbf16> to vector<24x32xf32>
      %cst_19 = arith.constant dense<0.000000e+00> : vector<24xf32>
      %28 = vector.multi_reduction <add>, %27, %cst_19 [1] : vector<24x32xf32> to vector<24xf32>
      %29 = vector.shape_cast %28 : vector<24xf32> to vector<24x1xf32>
      %cst_20 = arith.constant 3.200000e+01 : f32
      %30 = vector.broadcast %cst_20 : f32 to vector<24x1xf32>
      %31 = arith.divf %29, %30 : vector<24x1xf32>
      %32 = vector.broadcast %31 : vector<24x1xf32> to vector<24x32xf32>
      %33 = arith.subf %27, %32 : vector<24x32xf32>
      %34 = arith.mulf %33, %33 : vector<24x32xf32>
      %cst_21 = arith.constant dense<0.000000e+00> : vector<24xf32>
      %35 = vector.multi_reduction <add>, %34, %cst_21 [1] : vector<24x32xf32> to vector<24xf32>
      %36 = vector.shape_cast %35 : vector<24xf32> to vector<24x1xf32>
      %cst_22 = arith.constant 3.200000e+01 : f32
      %37 = vector.broadcast %cst_22 : f32 to vector<24x1xf32>
      %38 = arith.divf %36, %37 : vector<24x1xf32>
      %39 = vector.broadcast %31 : vector<24x1xf32> to vector<24x32xf32>
      %40 = arith.subf %27, %39 : vector<24x32xf32>
      %cst_23 = arith.constant 9.99999974E-6 : f32
      %41 = vector.broadcast %cst_23 : f32 to vector<24x1xf32>
      %42 = arith.addf %38, %41 : vector<24x1xf32>
      %43 = math.rsqrt %42 : vector<24x1xf32>
      %44 = vector.broadcast %43 : vector<24x1xf32> to vector<24x32xf32>
      %45 = arith.mulf %40, %44 : vector<24x32xf32>
      %c0_24 = arith.constant 0 : index
      %c0_25 = arith.constant 0 : index
      %46 = vector.load %arg3[%c0_24, %c0_25] : memref<1x32xf32, #tpu.memory_space<vmem>>, vector<1x32xf32>
      %47 = vector.broadcast %46 : vector<1x32xf32> to vector<24x32xf32>
      %48 = arith.mulf %45, %47 : vector<24x32xf32>
      %c0_26 = arith.constant 0 : index
      %c0_27 = arith.constant 0 : index
      %49 = vector.load %arg4[%c0_26, %c0_27] : memref<1x32xf32, #tpu.memory_space<vmem>>, vector<1x32xf32>
      %50 = vector.broadcast %49 : vector<1x32xf32> to vector<24x32xf32>
      %51 = arith.addf %48, %50 : vector<24x32xf32>
      %52 = arith.truncf %51 : vector<24x32xf32> to vector<24x32xbf16>
      %c0_28 = arith.constant 0 : index
      %c0_29 = arith.constant 0 : index
      %53 = vector.load %arg10[%c0_28, %c0_29] : memref<24x32xbf16, #tpu.memory_space<vmem>>, vector<24x32xbf16>
      tpu.vector_store %arg10[%c0_28, %c0_29], %52 {strides = array<i32>} : memref<24x32xbf16, #tpu.memory_space<vmem>>, vector<24x32xbf16>,
      %cst_30 = arith.constant 0.000000e+00 : f32
      %54 = vector.broadcast %cst_30 : f32 to vector<24x32xf32>
      %c0_31 = arith.constant 0 : index
      %c0_32 = arith.constant 0 : index
      %55 = vector.load %arg11[%c0_31, %c0_32] : memref<24x32xf32, #tpu.memory_space<vmem>>, vector<24x32xf32>
      tpu.vector_store %arg11[%c0_31, %c0_32], %54 {strides = array<i32>} : memref<24x32xf32, #tpu.memory_space<vmem>>, vector<24x32xf32>,
    } else {
    }
    %c0 = arith.constant 0 : index
    %c0_1 = arith.constant 0 : index
    %3 = vector.load %arg10[%c0, %c0_1] : memref<24x32xbf16, #tpu.memory_space<vmem>>, vector<24x32xbf16>
    %c0_2 = arith.constant 0 : index
    %c0_3 = arith.constant 0 : index
    %4 = vector.load %arg5[%c0_2, %c0_3] : memref<32x128xbf16, #tpu.memory_space<vmem>>, vector<32x128xbf16>
    %cst = arith.constant dense<0.000000e+00> : vector<24x128xf32>
    %5 = tpu.matmul %3, %4, %cst {dimension_numbers = #tpu.dot_dimension_numbers<[1], [0], [0], [1], [0, 0, 1, 1], [], []>} : vector<24x32xbf16>, vector<32x128xbf16>, vector<24x128xf32> -> vector<24x128xf32>
    %c0_4 = arith.constant 0 : index
    %c0_5 = arith.constant 0 : index
    %6 = vector.load %arg6[%c0_4, %c0_5] : memref<1x128xf32, #tpu.memory_space<vmem>>, vector<1x128xf32>
    %7 = vector.broadcast %6 : vector<1x128xf32> to vector<24x128xf32>
    %8 = arith.addf %5, %7 : vector<24x128xf32>
    %cst_6 = arith.constant 1.702000e+00 : f32
    %9 = vector.broadcast %cst_6 : f32 to vector<24x128xf32>
    %10 = arith.mulf %9, %8 : vector<24x128xf32>
    %11 = arith.negf %10 : vector<24x128xf32>
    %12 = math.exp %11 : vector<24x128xf32>
    %cst_7 = arith.constant 1.000000e+00 : f32
    %13 = vector.broadcast %cst_7 : f32 to vector<24x128xf32>
    %14 = arith.addf %13, %12 : vector<24x128xf32>
    %15 = arith.divf %13, %14 : vector<24x128xf32>
    %16 = arith.mulf %8, %15 : vector<24x128xf32>
    %c0_8 = arith.constant 0 : index
    %c0_9 = arith.constant 0 : index
    %17 = vector.load %arg11[%c0_8, %c0_9] : memref<24x32xf32, #tpu.memory_space<vmem>>, vector<24x32xf32>
    %18 = arith.truncf %16 : vector<24x128xf32> to vector<24x128xbf16>
    %c0_10 = arith.constant 0 : index
    %c0_11 = arith.constant 0 : index
    %19 = vector.load %arg7[%c0_10, %c0_11] : memref<128x32xbf16, #tpu.memory_space<vmem>>, vector<128x32xbf16>
    %cst_12 = arith.constant dense<0.000000e+00> : vector<24x32xf32>
    %20 = tpu.matmul %18, %19, %cst_12 {dimension_numbers = #tpu.dot_dimension_numbers<[1], [0], [0], [1], [0, 0, 1, 1], [], []>} : vector<24x128xbf16>, vector<128x32xbf16>, vector<24x32xf32> -> vector<24x32xf32>
    %21 = arith.addf %17, %20 : vector<24x32xf32>
    %c0_13 = arith.constant 0 : index
    %c0_14 = arith.constant 0 : index
    %22 = vector.load %arg11[%c0_13, %c0_14] : memref<24x32xf32, #tpu.memory_space<vmem>>, vector<24x32xf32>
    tpu.vector_store %arg11[%c0_13, %c0_14], %21 {strides = array<i32>} : memref<24x32xf32, #tpu.memory_space<vmem>>, vector<24x32xf32>,
    %c0_i32_15 = arith.constant 0 : i32
    %23 = arith.cmpi eq, %arg1, %c0_i32_15 : i32
    %24 = arith.extui %23 : i1 to i32
    %c0_i32_16 = arith.constant 0 : i32
    %25 = arith.cmpi ne, %24, %c0_i32_16 : i32
    scf.if %25 {
      %c0_17 = arith.constant 0 : index
      %c0_18 = arith.constant 0 : index
      %26 = vector.load %arg11[%c0_17, %c0_18] : memref<24x32xf32, #tpu.memory_space<vmem>>, vector<24x32xf32>
      %c0_19 = arith.constant 0 : index
      %c0_20 = arith.constant 0 : index
      %27 = vector.load %arg8[%c0_19, %c0_20] : memref<1x32xf32, #tpu.memory_space<vmem>>, vector<1x32xf32>
      %28 = vector.broadcast %27 : vector<1x32xf32> to vector<24x32xf32>
      %29 = arith.addf %26, %28 : vector<24x32xf32>
      %c0_21 = arith.constant 0 : index
      %c0_22 = arith.constant 0 : index
      %30 = vector.load %arg2[%c0_21, %c0_22] : memref<24x32xbf16, #tpu.memory_space<vmem>>, vector<24x32xbf16>
      %31 = arith.extf %30 : vector<24x32xbf16> to vector<24x32xf32>
      %32 = arith.addf %29, %31 : vector<24x32xf32>
      %33 = arith.truncf %32 : vector<24x32xf32> to vector<24x32xbf16>
      %c0_23 = arith.constant 0 : index
      %c0_24 = arith.constant 0 : index
      %34 = vector.load %arg9[%c0_23, %c0_24] : memref<24x32xbf16, #tpu.memory_space<vmem>>, vector<24x32xbf16>
      tpu.vector_store %arg9[%c0_23, %c0_24], %33 {strides = array<i32>} : memref<24x32xbf16, #tpu.memory_space<vmem>>, vector<24x32xbf16>,
    } else {
    }
    return
  }
  func.func @transform_0(%arg0: i32, %arg1: i32) -> (i32, i32) {
    %c0_i32 = arith.constant 0 : i32
    %c0_i32_0 = arith.constant 0 : i32
    return %arg0, %c0_i32 : i32, i32
  }
  func.func @transform_1(%arg0: i32, %arg1: i32) -> (i32, i32) {
    %c0_i32 = arith.constant 0 : i32
    %c0_i32_0 = arith.constant 0 : i32
    %c0_i32_1 = arith.constant 0 : i32
    return %c0_i32, %c0_i32_0 : i32, i32
  }
  func.func @transform_2(%arg0: i32, %arg1: i32) -> (i32, i32) {
    %c0_i32 = arith.constant 0 : i32
    %c0_i32_0 = arith.constant 0 : i32
    %c0_i32_1 = arith.constant 0 : i32
    return %c0_i32, %c0_i32_0 : i32, i32
  }
  func.func @transform_3(%arg0: i32, %arg1: i32) -> (i32, i32) {
    %c0_i32 = arith.constant 0 : i32
    %c0_i32_0 = arith.constant 0 : i32
    return %c0_i32, %arg1 : i32, i32
  }
  func.func @transform_4(%arg0: i32, %arg1: i32) -> (i32, i32) {
    %c0_i32 = arith.constant 0 : i32
    %c0_i32_0 = arith.constant 0 : i32
    return %c0_i32, %arg1 : i32, i32
  }
  func.func @transform_5(%arg0: i32, %arg1: i32) -> (i32, i32) {
    %c0_i32 = arith.constant 0 : i32
    %c0_i32_0 = arith.constant 0 : i32
    return %arg1, %c0_i32 : i32, i32
  }
  func.func @transform_6(%arg0: i32, %arg1: i32) -> (i32, i32) {
    %c0_i32 = arith.constant 0 : i32
    %c0_i32_0 = arith.constant 0 : i32
    %c0_i32_1 = arith.constant 0 : i32
    return %c0_i32, %c0_i32_0 : i32, i32
  }
  func.func @transform_7(%arg0: i32, %arg1: i32) -> (i32, i32) {
    %c0_i32 = arith.constant 0 : i32
    %c0_i32_0 = arith.constant 0 : i32
    return %arg0, %c0_i32 : i32, i32
  }
}

module attributes {stable_mosaic.version = 11 : i64} {
  func.func @_ln_linear_kernel(%arg0: i32, %arg1: i32, %arg2: memref<2x32xbf16, #tpu.memory_space<vmem>>, %arg3: memref<1x32xf32, #tpu.memory_space<vmem>>, %arg4: memref<1x32xf32, #tpu.memory_space<vmem>>, %arg5: memref<32x16xbf16, #tpu.memory_space<vmem>>, %arg6: memref<1x16xf32, #tpu.memory_space<vmem>>, %arg7: memref<2x16xbf16, #tpu.memory_space<vmem>>, %arg8: memref<2x32xbf16, #tpu.memory_space<vmem>>) attributes {dimension_semantics = [#tpu.dimension_semantics<parallel>, #tpu.dimension_semantics<arbitrary>], iteration_bounds = array<i64: 1, 1>, scalar_prefetch = 0 : i64, scratch_operands = 1 : i64, tpu.core_type = #tpu.core_type<tc>, window_params = [{transform_indices = @transform_0, window_bounds = array<i64: 2, 32>}, {pipeline_mode = #tpu.pipeline_mode<synchronous>, transform_indices = @transform_1, window_bounds = array<i64: 1, 32>}, {pipeline_mode = #tpu.pipeline_mode<synchronous>, transform_indices = @transform_2, window_bounds = array<i64: 1, 32>}, {transform_indices = @transform_3, window_bounds = array<i64: 32, 16>}, {transform_indices = @transform_4, window_bounds = array<i64: 1, 16>}, {transform_indices = @transform_5, window_bounds = array<i64: 2, 16>}]} {
    %c0_i32 = arith.constant 0 : i32
    %0 = arith.cmpi eq, %arg1, %c0_i32 : i32
    %1 = arith.extui %0 : i1 to i32
    %c0_i32_0 = arith.constant 0 : i32
    %2 = arith.cmpi ne, %1, %c0_i32_0 : i32
    scf.if %2 {
      %c0_8 = arith.constant 0 : index
      %c0_9 = arith.constant 0 : index
      %11 = vector.load %arg2[%c0_8, %c0_9] : memref<2x32xbf16, #tpu.memory_space<vmem>>, vector<2x32xbf16>
      %12 = arith.extf %11 : vector<2x32xbf16> to vector<2x32xf32>
      %cst_10 = arith.constant dense<0.000000e+00> : vector<2xf32>
      %13 = vector.multi_reduction <add>, %12, %cst_10 [1] : vector<2x32xf32> to vector<2xf32>
      %14 = vector.shape_cast %13 : vector<2xf32> to vector<2x1xf32>
      %cst_11 = arith.constant 3.200000e+01 : f32
      %15 = vector.broadcast %cst_11 : f32 to vector<2x1xf32>
      %16 = arith.divf %14, %15 : vector<2x1xf32>
      %17 = vector.broadcast %16 : vector<2x1xf32> to vector<2x32xf32>
      %18 = arith.subf %12, %17 : vector<2x32xf32>
      %19 = arith.mulf %18, %18 : vector<2x32xf32>
      %cst_12 = arith.constant dense<0.000000e+00> : vector<2xf32>
      %20 = vector.multi_reduction <add>, %19, %cst_12 [1] : vector<2x32xf32> to vector<2xf32>
      %21 = vector.shape_cast %20 : vector<2xf32> to vector<2x1xf32>
      %cst_13 = arith.constant 3.200000e+01 : f32
      %22 = vector.broadcast %cst_13 : f32 to vector<2x1xf32>
      %23 = arith.divf %21, %22 : vector<2x1xf32>
      %24 = vector.broadcast %16 : vector<2x1xf32> to vector<2x32xf32>
      %25 = arith.subf %12, %24 : vector<2x32xf32>
      %cst_14 = arith.constant 9.99999974E-6 : f32
      %26 = vector.broadcast %cst_14 : f32 to vector<2x1xf32>
      %27 = arith.addf %23, %26 : vector<2x1xf32>
      %28 = math.rsqrt %27 : vector<2x1xf32>
      %29 = vector.broadcast %28 : vector<2x1xf32> to vector<2x32xf32>
      %30 = arith.mulf %25, %29 : vector<2x32xf32>
      %c0_15 = arith.constant 0 : index
      %c0_16 = arith.constant 0 : index
      %31 = vector.load %arg3[%c0_15, %c0_16] : memref<1x32xf32, #tpu.memory_space<vmem>>, vector<1x32xf32>
      %32 = vector.broadcast %31 : vector<1x32xf32> to vector<2x32xf32>
      %33 = arith.mulf %30, %32 : vector<2x32xf32>
      %c0_17 = arith.constant 0 : index
      %c0_18 = arith.constant 0 : index
      %34 = vector.load %arg4[%c0_17, %c0_18] : memref<1x32xf32, #tpu.memory_space<vmem>>, vector<1x32xf32>
      %35 = vector.broadcast %34 : vector<1x32xf32> to vector<2x32xf32>
      %36 = arith.addf %33, %35 : vector<2x32xf32>
      %37 = arith.truncf %36 : vector<2x32xf32> to vector<2x32xbf16>
      %c0_19 = arith.constant 0 : index
      %c0_20 = arith.constant 0 : index
      %38 = vector.load %arg8[%c0_19, %c0_20] : memref<2x32xbf16, #tpu.memory_space<vmem>>, vector<2x32xbf16>
      tpu.vector_store %arg8[%c0_19, %c0_20], %37 {strides = array<i32>} : memref<2x32xbf16, #tpu.memory_space<vmem>>, vector<2x32xbf16>,
    } else {
    }
    %c0 = arith.constant 0 : index
    %c0_1 = arith.constant 0 : index
    %3 = vector.load %arg8[%c0, %c0_1] : memref<2x32xbf16, #tpu.memory_space<vmem>>, vector<2x32xbf16>
    %c0_2 = arith.constant 0 : index
    %c0_3 = arith.constant 0 : index
    %4 = vector.load %arg5[%c0_2, %c0_3] : memref<32x16xbf16, #tpu.memory_space<vmem>>, vector<32x16xbf16>
    %cst = arith.constant dense<0.000000e+00> : vector<2x16xf32>
    %5 = tpu.matmul %3, %4, %cst {dimension_numbers = #tpu.dot_dimension_numbers<[1], [0], [0], [1], [0, 0, 1, 1], [], []>} : vector<2x32xbf16>, vector<32x16xbf16>, vector<2x16xf32> -> vector<2x16xf32>
    %c0_4 = arith.constant 0 : index
    %c0_5 = arith.constant 0 : index
    %6 = vector.load %arg6[%c0_4, %c0_5] : memref<1x16xf32, #tpu.memory_space<vmem>>, vector<1x16xf32>
    %7 = vector.broadcast %6 : vector<1x16xf32> to vector<2x16xf32>
    %8 = arith.addf %5, %7 : vector<2x16xf32>
    %9 = arith.truncf %8 : vector<2x16xf32> to vector<2x16xbf16>
    %c0_6 = arith.constant 0 : index
    %c0_7 = arith.constant 0 : index
    %10 = vector.load %arg7[%c0_6, %c0_7] : memref<2x16xbf16, #tpu.memory_space<vmem>>, vector<2x16xbf16>
    tpu.vector_store %arg7[%c0_6, %c0_7], %9 {strides = array<i32>} : memref<2x16xbf16, #tpu.memory_space<vmem>>, vector<2x16xbf16>,
    return
  }
  func.func @transform_0(%arg0: i32, %arg1: i32) -> (i32, i32) {
    %c0_i32 = arith.constant 0 : i32
    %c0_i32_0 = arith.constant 0 : i32
    return %arg0, %c0_i32 : i32, i32
  }
  func.func @transform_1(%arg0: i32, %arg1: i32) -> (i32, i32) {
    %c0_i32 = arith.constant 0 : i32
    %c0_i32_0 = arith.constant 0 : i32
    %c0_i32_1 = arith.constant 0 : i32
    return %c0_i32, %c0_i32_0 : i32, i32
  }
  func.func @transform_2(%arg0: i32, %arg1: i32) -> (i32, i32) {
    %c0_i32 = arith.constant 0 : i32
    %c0_i32_0 = arith.constant 0 : i32
    %c0_i32_1 = arith.constant 0 : i32
    return %c0_i32, %c0_i32_0 : i32, i32
  }
  func.func @transform_3(%arg0: i32, %arg1: i32) -> (i32, i32) {
    %c0_i32 = arith.constant 0 : i32
    %c0_i32_0 = arith.constant 0 : i32
    return %c0_i32, %arg1 : i32, i32
  }
  func.func @transform_4(%arg0: i32, %arg1: i32) -> (i32, i32) {
    %c0_i32 = arith.constant 0 : i32
    %c0_i32_0 = arith.constant 0 : i32
    return %c0_i32, %arg1 : i32, i32
  }
  func.func @transform_5(%arg0: i32, %arg1: i32) -> (i32, i32) {
    %c0_i32 = arith.constant 0 : i32
    return %arg0, %arg1 : i32, i32
  }
}

</mosaic_0001>

<llo_original>
// kernel: vision_encoder_forward.21
$region0: #{vision_encoder_forward.21}
  #allocation0 [shape = 'u32[]', space=smem, size = 0x4, offset = 0x4, fixed_abs, tag = 'smem constant byte address 0x4 - core index']
  #allocation1 [shape = 'u32[144,128]{1,0:T(1,128)}', space=vmem, size = 0x12000, scoped, tag = 'internal scratch']
  #allocation2 [shape = 'f32[24,32]{1,0:T(8,128)}', space=vmem, size = 0x3000, scoped, tag = 'scratch operand']
  %s0 = inlined_call_operand.hbm [shape: bf16[24,32], index: 0, kind: input, shape index: {}]
  %s1 = inlined_call_operand.hbm [shape: bf16[32,32], index: 1, kind: input, shape index: {}]
  %s2 = inlined_call_operand.hbm [shape: f32[1,32], index: 2, kind: input, shape index: {}]
  %s3 = inlined_call_operand.hbm [shape: bf16[24,32], index: 3, kind: input, shape index: {}]
  %s4 = inlined_call_operand.hbm [shape: bf16[24,32], index: 4, kind: output, shape index: {}]
  %s5 = sld [smem:[#allocation0]]
  $region50: #{vision_encoder_forward.21} parent=0
    _
  %s7 = ssub.s32 1, %s5
  %s8 = scalar_select 0, %s7, %s5
  $region1: #{vision_encoder_forward.21} parent=0
    #allocation3 [shape = 'u8[6144]{0}', space=vmem, size = 0x1800, scoped, tag = 'input window, operand 0, single buffered']
    #allocation4 [shape = 's32[1]{0}', space=sflag, size = 0x4, scoped, tag = 'scoped memory for vision_encoder_forward.21']
    #allocation5 [shape = 's32[1]{0}', space=sflag, size = 0x4, scoped, tag = 'scoped memory for vision_encoder_forward.21']
    #allocation6 [shape = 'u8[8192]{0}', space=vmem, size = 0x2000, scoped, tag = 'input window, operand 1, single buffered']
    #allocation7 [shape = 's32[1]{0}', space=sflag, size = 0x4, scoped, tag = 'scoped memory for vision_encoder_forward.21']
    #allocation8 [shape = 'u8[512]{0}', space=vmem, size = 0x400, scoped, tag = 'input window, operand 2, single buffered']
    #allocation9 [shape = 'u8[6144]{0}', space=vmem, size = 0x1800, scoped, tag = 'input window, operand 3, single buffered']
    #allocation10 [shape = 's32[1]{0}', space=sflag, size = 0x4, scoped, tag = 'scoped memory for vision_encoder_forward.21']
    #allocation11 [shape = 'u8[6144]{0}', space=vmem, size = 0x1800, scoped, tag = 'output window, operand 0, single buffered']
    %9 = vsyncpa [#allocation4], 0
    %10 = vsyncpa [#allocation7], 0
    %11 = vsyncpa [#allocation10], 0
    %12 = vsyncpa [#allocation5], 0
    // Predicated region
    $region2: #{vision_encoder_forward.21} parent=1 // pred_check
      _
    $region3: #{vision_encoder_forward.21} parent=1 // pred_check_branch
      %14 = sbr.rel (0) target = $region5
    $region4: #{vision_encoder_forward.21} parent=1 // pred_region
      %s16 = ssub.s32 192, 192
      %17 = vsyncadd [#allocation4], %s16
      %s18 = sshll.u32 [#allocation3], 4
      %s19 = int_to_ptr.vmem [resolvable:$true] %s18
      %24 = dma.hbm_to_vmem [thread:$0]  %s0, 192, %s19, [#allocation4], 64, 64, 4
    $region5: #{vision_encoder_forward.21} parent=1 // pred_fallthru
      _
    // Predicated region
    $region6: #{vision_encoder_forward.21} parent=1 // pred_check
      _
    $region7: #{vision_encoder_forward.21} parent=1 // pred_check_branch
      %26 = sbr.rel (0) target = $region9
    $region8: #{vision_encoder_forward.21} parent=1 // pred_region
      %s28 = ssub.s32 256, 256
      %29 = vsyncadd [#allocation7], %s28
      %s30 = sshll.u32 [#allocation6], 4
      %s31 = int_to_ptr.vmem [resolvable:$true] %s30
      %36 = dma.hbm_to_vmem [thread:$0]  %s1, 256, %s31, [#allocation7], 64, 64, 4
    $region9: #{vision_encoder_forward.21} parent=1 // pred_fallthru
      _
    // Predicated region
    $region10: #{vision_encoder_forward.21} parent=1 // pred_check
      _
    $region11: #{vision_encoder_forward.21} parent=1 // pred_check_branch
      %38 = sbr.rel (0) target = $region13
    $region12: #{vision_encoder_forward.21} parent=1 // pred_region
      %s40 = ssub.s32 16, 16
      %41 = vsyncadd [#allocation7], %s40
      %s43 = sshll.u32 [#allocation8], 4
      %s44 = int_to_ptr.vmem [resolvable:$true] %s43
      %46 = dma.hbm_to_vmem [thread:$0]  %s2, 16, %s44, [#allocation7]
    $region13: #{vision_encoder_forward.21} parent=1 // pred_fallthru
      _
    // Predicated region
    $region14: #{vision_encoder_forward.21} parent=1 // pred_check
      _
    $region15: #{vision_encoder_forward.21} parent=1 // pred_check_branch
      %48 = sbr.rel (0) target = $region17
    $region16: #{vision_encoder_forward.21} parent=1 // pred_region
      %s50 = ssub.s32 192, 192
      %51 = vsyncadd [#allocation10], %s50
      %s52 = sshll.u32 [#allocation9], 4
      %s53 = int_to_ptr.vmem [resolvable:$true] %s52
      %58 = dma.hbm_to_vmem [thread:$0]  %s3, 192, %s53, [#allocation10], 64, 64, 4
    $region17: #{vision_encoder_forward.21} parent=1 // pred_fallthru
      _
    // Predicated region
    $region18: #{vision_encoder_forward.21} parent=1 // pred_check
      _
    $region19: #{vision_encoder_forward.21} parent=1 // pred_check_branch
      %60 = sbr.rel (0) target = $region21
    $region20: #{vision_encoder_forward.21} parent=1 // pred_region
      %61 = dma.done [#allocation4], 192
    $region21: #{vision_encoder_forward.21} parent=1 // pred_fallthru
      _
    // Predicated region
    $region22: #{vision_encoder_forward.21} parent=1 // pred_check
      _
    $region23: #{vision_encoder_forward.21} parent=1 // pred_check_branch
      %63 = sbr.rel (0) target = $region25
    $region24: #{vision_encoder_forward.21} parent=1 // pred_region
      %64 = dma.done [#allocation7], 256
    $region25: #{vision_encoder_forward.21} parent=1 // pred_fallthru
      _
    // Predicated region
    $region26: #{vision_encoder_forward.21} parent=1 // pred_check
      _
    $region27: #{vision_encoder_forward.21} parent=1 // pred_check_branch
      %66 = sbr.rel (0) target = $region29
    $region28: #{vision_encoder_forward.21} parent=1 // pred_region
      %67 = dma.done [#allocation7], 16
    $region29: #{vision_encoder_forward.21} parent=1 // pred_fallthru
      _
    // Predicated region
    $region30: #{vision_encoder_forward.21} parent=1 // pred_check
      _
    $region31: #{vision_encoder_forward.21} parent=1 // pred_check_branch
      %69 = sbr.rel (0) target = $region33
    $region32: #{vision_encoder_forward.21} parent=1 // pred_region
      %70 = dma.done [#allocation10], 192
    $region33: #{vision_encoder_forward.21} parent=1 // pred_fallthru
      _
    %p72 = scmp.eq.s32.totalorder 0, 0
    // Predicated region
    $region34: #{vision_encoder_forward.21} parent=1 // pred_check
      %p73 = pneg %p72
    $region35: #{vision_encoder_forward.21} parent=1 // pred_check_branch
      %75 = sbr.rel (%p73) target = $region37
    $region36: #{vision_encoder_forward.21} parent=1 // pred_region
      %vm76 = vcmask 261120
      %77 = vst.msk [vmem:[#allocation2] sm:$0xff] %vm76, 0.0
      %78 = vst.msk [vmem:[#allocation2 + $0x8] sm:$0xff] %vm76, 0.0
      %79 = vst.msk [vmem:[#allocation2 + $0x10] sm:$0xff] %vm76, 0.0
    $region37: #{vision_encoder_forward.21} parent=1 // pred_fallthru
      _
    %v80 = vld [vmem:[#allocation2] sm:$0xff]
    %v81 = vld [vmem:[#allocation2 + $0x8] sm:$0xff]
    %v82 = vld [vmem:[#allocation2 + $0x10] sm:$0xff]
    %v83 = vld [vmem:[#allocation3] sm:$0xf]
    %v84 = vld [vmem:[#allocation3 + $0x4] sm:$0xf]
    %v85 = vld [vmem:[#allocation3 + $0x8] sm:$0xf]
    %v86 = vld [vmem:[#allocation6] sm:$0xf]
    %v87 = vld [vmem:[#allocation6 + $0x4] sm:$0xf]
    %v88 = vld [vmem:[#allocation6 + $0x8] sm:$0xf]
    %v89 = vld [vmem:[#allocation6 + $0xc] sm:$0xf]
    %v93 = vunpack.c.l.b16 %v83
    %v94 = vunpack.c.l.b16 %v84
    %v95 = vunpack.c.l.b16 %v85
    %v96 = vpack.c.b16 %v94, %v93
    %v97 = vpack.c.b16 %v95, %v95
    %v102 = vunpack.c.l.b16 %v86
    %v103 = vunpack.c.l.b16 %v87
    %v104 = vunpack.c.l.b16 %v88
    %v105 = vunpack.c.l.b16 %v89
    %v106 = vpack.c.b16 %v103, %v102
    %v107 = vpack.c.b16 %v105, %v104
    %vm110 = vcmask 261120
    %v112 = vsel %vm110, %v96, 0
    %v115 = vsel %vm110, %v97, 0
    %117 = vmatprep.subr.bf16.mxu0 0
    %118 = vmatpush1.bf16.msra.mxu0 %v106
    %119 = vmatprep.subr.bf16.mxu0 0
    %120 = vmatpush1.bf16.msra.mxu0 %v107
    %121 = vmatprep.subr.bf16.mxu0 0
    %122 = vmatpush1.bf16.msra.mxu0 0
    %123 = vmatprep.subr.bf16.mxu0 0
    %124 = vmatpush1.bf16.msra.mxu0 0
    %125 = vmatprep.subr.bf16.mxu0 0
    %126 = vmatpush1.bf16.msra.mxu0 0
    %127 = vmatprep.subr.bf16.mxu0 0
    %128 = vmatpush1.bf16.msra.mxu0 0
    %129 = vmatprep.subr.bf16.mxu0 0
    %130 = vmatpush1.bf16.msra.mxu0 0
    %131 = vmatprep.subr.bf16.mxu0 0
    %132 = vmatpush1.bf16.msra.mxu0 0
    %133 = vmatprep.subr.bf16.mxu0 0
    %134 = vmatpush1.bf16.msra.mxu0 0
    %135 = vmatprep.subr.bf16.mxu0 0
    %136 = vmatpush1.bf16.msra.mxu0 0
    %137 = vmatprep.subr.bf16.mxu0 0
    %138 = vmatpush1.bf16.msra.mxu0 0
    %139 = vmatprep.subr.bf16.mxu0 0
    %140 = vmatpush1.bf16.msra.mxu0 0
    %141 = vmatprep.subr.bf16.mxu0 0
    %142 = vmatpush1.bf16.msra.mxu0 0
    %143 = vmatprep.subr.bf16.mxu0 0
    %144 = vmatpush1.bf16.msra.mxu0 0
    %145 = vmatprep.subr.bf16.mxu0 0
    %146 = vmatpush1.bf16.msra.mxu0 0
    %147 = vmatprep.subr.bf16.mxu0 0
    %148 = vmatpush1.bf16.msra.mxu0 0
    %149 = vmatprep.mubr.bf16.mxu0 0
    %150 = vmatmul.mubr.bf16.gmra.mrb[0].mxu0 %v112
    %v151 = vpop.f32.mrb[0].mxu0
    %v152 = vadd.f32 0.0, %v151
    %v153 = vpop.f32.mrb[0].mxu0
    %v154 = vpop.f32.mrb[0].mxu0
    %v155 = vadd.f32 0.0, %v154
    %v156 = vpop.f32.mrb[0].mxu0
    %157 = vmatprep.mubr.bf16.mxu0 0
    %158 = vmatmul.mubr.bf16.gmra.mrb[0].mxu0 %v115
    %v159 = vpop.f32.mrb[0].mxu0
    %v160 = vadd.f32 0.0, %v159
    %v161 = vpop.f32.mrb[0].mxu0
    %v162 = vpop.f32.mrb[0].mxu0
    %v163 = vpop.f32.mrb[0].mxu0
    %164 = vdwg.mxu0
    %v165 = vadd.f32 %v80, %v152
    %v166 = vadd.f32 %v81, %v155
    %v167 = vadd.f32 %v82, %v160
    %168 = vst.msk [vmem:[#allocation2] sm:$0xff] %vm110, %v165
    %169 = vst.msk [vmem:[#allocation2 + $0x8] sm:$0xff] %vm110, %v166
    %170 = vst.msk [vmem:[#allocation2 + $0x10] sm:$0xff] %vm110, %v167
    // Predicated region
    $region38: #{vision_encoder_forward.21} parent=1 // pred_check
      %p171 = pneg %p72
    $region39: #{vision_encoder_forward.21} parent=1 // pred_check_branch
      %173 = sbr.rel (%p171) target = $region41
    $region40: #{vision_encoder_forward.21} parent=1 // pred_region
      %v174 = vld [vmem:[#allocation2] sm:$0xff]
      %v175 = vld [vmem:[#allocation2 + $0x8] sm:$0xff]
      %v176 = vld [vmem:[#allocation2 + $0x10] sm:$0xff]
      %v177 = vld [vmem:[#allocation8] sm:$0x1]
      %v179 = vlaneseq
      %v180 = vshrl.u32 %v179, 7
      %v181 = vsub.s32 0, %v180
      %v182 = vrot.slane %v177, %v181
      %v184 = vadd.f32 %v174, %v182
      %v185 = vadd.f32 %v175, %v182
      %v186 = vadd.f32 %v176, %v182
      %v187 = vld [vmem:[#allocation9] sm:$0xf]
      %v188 = vld [vmem:[#allocation9 + $0x4] sm:$0xf]
      %v189 = vld [vmem:[#allocation9 + $0x8] sm:$0xf]
      %v190 = vunpack.c.l.bf16 %v187
      %v191 = vunpack.c.l.bf16 %v188
      %v192 = vunpack.c.l.bf16 %v189
      %v193 = vadd.f32 %v184, %v190
      %v194 = vadd.f32 %v185, %v191
      %v195 = vadd.f32 %v186, %v192
      %v196 = vpack.c.bf16 %v194, %v193
      %v197 = vpack.c.bf16 %v195, %v195
      %v200 = vunpack.c.l.b16 %v196
      %v201 = vunpack.c.h.b16 %v196
      %v202 = vunpack.c.l.b16 %v197
      %v203 = vpack.c.b16 %v200, %v200
      %v204 = vpack.c.b16 %v201, %v201
      %v205 = vpack.c.b16 %v202, %v202
      %vm209 = vcmask 257024
      %210 = vst.msk [vmem:[#allocation11] sm:$0xf] %vm209, %v203
      %211 = vst.msk [vmem:[#allocation11 + $0x4] sm:$0xf] %vm209, %v204
      %212 = vst.msk [vmem:[#allocation11 + $0x8] sm:$0xf] %vm209, %v205
    $region41: #{vision_encoder_forward.21} parent=1 // pred_fallthru
      _
    // Predicated region
    $region42: #{vision_encoder_forward.21} parent=1 // pred_check
      _
    $region43: #{vision_encoder_forward.21} parent=1 // pred_check_branch
      %214 = sbr.rel (0) target = $region45
    $region44: #{vision_encoder_forward.21} parent=1 // pred_region
      %s216 = ssub.s32 192, 192
      %217 = vsyncadd [#allocation5], %s216
      %s218 = sshll.u32 [#allocation11], 4
      %s219 = int_to_ptr.vmem [resolvable:$true] %s218
      %224 = dma.vmem_to_hbm [thread:$0]  %s219, 192, %s4, [#allocation5], 64, 64, 4
    $region45: #{vision_encoder_forward.21} parent=1 // pred_fallthru
      _
    // Predicated region
    $region46: #{vision_encoder_forward.21} parent=1 // pred_check
      _
    $region47: #{vision_encoder_forward.21} parent=1 // pred_check_branch
      %226 = sbr.rel (0) target = $region49
    $region48: #{vision_encoder_forward.21} parent=1 // pred_region
      %227 = dma.done [#allocation5], 192
    $region49: #{vision_encoder_forward.21} parent=1 // pred_fallthru
      _
    %228 = vsyncpa [#allocation4], 1
    %229 = vsyncpa [#allocation7], 1
    %230 = vsyncpa [#allocation10], 1
    %231 = vsyncpa [#allocation5], 1

// kernel: vision_encoder_forward.18
$region0: #{vision_encoder_forward.18}
  #allocation0 [shape = 'u32[]', space=smem, size = 0x4, offset = 0x4, fixed_abs, tag = 'smem constant byte address 0x4 - core index']
  #allocation1 [shape = 'u32[144,128]{1,0:T(1,128)}', space=vmem, size = 0x12000, scoped, tag = 'internal scratch']
  %s0 = inlined_call_operand.hbm [shape: bf16[24,32], index: 0, kind: input, shape index: {}]
  %s1 = inlined_call_operand.hbm [shape: f32[1,32], index: 1, kind: input, shape index: {}]
  %s2 = inlined_call_operand.hbm [shape: f32[1,32], index: 2, kind: input, shape index: {}]
  %s3 = inlined_call_operand.hbm [shape: bf16[24,32], index: 3, kind: output, shape index: {}]
  %s4 = sld [smem:[#allocation0]]
  $region34: #{vision_encoder_forward.18} parent=0
    _
  %s6 = ssub.s32 1, %s4
  %s7 = scalar_select 0, %s6, %s4
  $region1: #{vision_encoder_forward.18} parent=0
    #allocation2 [shape = 'u8[6144]{0}', space=vmem, size = 0x1800, scoped, tag = 'input window, operand 0, single buffered']
    #allocation3 [shape = 's32[1]{0}', space=sflag, size = 0x4, scoped, tag = 'scoped memory for vision_encoder_forward.18']
    #allocation4 [shape = 's32[1]{0}', space=sflag, size = 0x4, scoped, tag = 'scoped memory for vision_encoder_forward.18']
    #allocation5 [shape = 'u8[512]{0}', space=vmem, size = 0x400, scoped, tag = 'input window, operand 1, single buffered']
    #allocation6 [shape = 's32[1]{0}', space=sflag, size = 0x4, scoped, tag = 'scoped memory for vision_encoder_forward.18']
    #allocation7 [shape = 'u8[512]{0}', space=vmem, size = 0x400, scoped, tag = 'input window, operand 2, single buffered']
    #allocation8 [shape = 'u8[6144]{0}', space=vmem, size = 0x1800, scoped, tag = 'output window, operand 0, single buffered']
    %8 = vsyncpa [#allocation3], 0
    %9 = vsyncpa [#allocation6], 0
    %10 = vsyncpa [#allocation4], 0
    // Predicated region
    $region2: #{vision_encoder_forward.18} parent=1 // pred_check
      _
    $region3: #{vision_encoder_forward.18} parent=1 // pred_check_branch
      %12 = sbr.rel (0) target = $region5
    $region4: #{vision_encoder_forward.18} parent=1 // pred_region
      %s14 = ssub.s32 192, 192
      %15 = vsyncadd [#allocation3], %s14
      %s16 = sshll.u32 [#allocation2], 4
      %s17 = int_to_ptr.vmem [resolvable:$true] %s16
      %22 = dma.hbm_to_vmem [thread:$0]  %s0, 192, %s17, [#allocation3], 64, 64, 4
    $region5: #{vision_encoder_forward.18} parent=1 // pred_fallthru
      _
    // Predicated region
    $region6: #{vision_encoder_forward.18} parent=1 // pred_check
      _
    $region7: #{vision_encoder_forward.18} parent=1 // pred_check_branch
      %24 = sbr.rel (0) target = $region9
    $region8: #{vision_encoder_forward.18} parent=1 // pred_region
      %s26 = ssub.s32 16, 16
      %27 = vsyncadd [#allocation6], %s26
      %s29 = sshll.u32 [#allocation5], 4
      %s30 = int_to_ptr.vmem [resolvable:$true] %s29
      %32 = dma.hbm_to_vmem [thread:$0]  %s1, 16, %s30, [#allocation6]
    $region9: #{vision_encoder_forward.18} parent=1 // pred_fallthru
      _
    // Predicated region
    $region10: #{vision_encoder_forward.18} parent=1 // pred_check
      _
    $region11: #{vision_encoder_forward.18} parent=1 // pred_check_branch
      %34 = sbr.rel (0) target = $region13
    $region12: #{vision_encoder_forward.18} parent=1 // pred_region
      %s36 = ssub.s32 16, 16
      %37 = vsyncadd [#allocation6], %s36
      %s39 = sshll.u32 [#allocation7], 4
      %s40 = int_to_ptr.vmem [resolvable:$true] %s39
      %42 = dma.hbm_to_vmem [thread:$0]  %s2, 16, %s40, [#allocation6]
    $region13: #{vision_encoder_forward.18} parent=1 // pred_fallthru
      _
    // Predicated region
    $region14: #{vision_encoder_forward.18} parent=1 // pred_check
      _
    $region15: #{vision_encoder_forward.18} parent=1 // pred_check_branch
      %44 = sbr.rel (0) target = $region17
    $region16: #{vision_encoder_forward.18} parent=1 // pred_region
      %45 = dma.done [#allocation3], 192
    $region17: #{vision_encoder_forward.18} parent=1 // pred_fallthru
      _
    // Predicated region
    $region18: #{vision_encoder_forward.18} parent=1 // pred_check
      _
    $region19: #{vision_encoder_forward.18} parent=1 // pred_check_branch
      %47 = sbr.rel (0) target = $region21
    $region20: #{vision_encoder_forward.18} parent=1 // pred_region
      %48 = dma.done [#allocation6], 16
    $region21: #{vision_encoder_forward.18} parent=1 // pred_fallthru
      _
    // Predicated region
    $region22: #{vision_encoder_forward.18} parent=1 // pred_check
      _
    $region23: #{vision_encoder_forward.18} parent=1 // pred_check_branch
      %50 = sbr.rel (0) target = $region25
    $region24: #{vision_encoder_forward.18} parent=1 // pred_region
      %51 = dma.done [#allocation6], 16
    $region25: #{vision_encoder_forward.18} parent=1 // pred_fallthru
      _
    %v52 = vld [vmem:[#allocation2] sm:$0xf]
    %v53 = vld [vmem:[#allocation2 + $0x4] sm:$0xf]
    %v54 = vld [vmem:[#allocation2 + $0x8] sm:$0xf]
    %v55 = vunpack.c.l.bf16 %v52
    %v56 = vunpack.c.l.bf16 %v53
    %v57 = vunpack.c.l.bf16 %v54
    %vm58 = vcmask 261120
    %v59 = vsel %vm58, %v55, 0.0
    %60 = vadd.xlane.f32.xlu0 %v59
    %v61 = vpop.xlane.xlu0 %60
    %v62 = vsel %vm58, %v56, 0.0
    %63 = vadd.xlane.f32.xlu0 %v62
    %v64 = vpop.xlane.xlu0 %63
    %v65 = vsel %vm58, %v57, 0.0
    %66 = vadd.xlane.f32.xlu0 %v65
    %v67 = vpop.xlane.xlu0 %66
    %v68 = vrcp.pop 32.0
    %v69 = vmul.f32 %v61, %v68
    %v70 = vmul.f32 %v64, %v68
    %v71 = vmul.f32 %v67, %v68
    %v72 = vsub.f32 %v55, %v69
    %v73 = vsub.f32 %v56, %v70
    %v74 = vsub.f32 %v57, %v71
    %v75 = vmul.f32 %v72, %v72
    %v76 = vmul.f32 %v73, %v73
    %v77 = vmul.f32 %v74, %v74
    %v78 = vsel %vm58, %v75, 0.0
    %79 = vadd.xlane.f32.xlu0 %v78
    %v80 = vpop.xlane.xlu0 %79
    %v81 = vsel %vm58, %v76, 0.0
    %82 = vadd.xlane.f32.xlu0 %v81
    %v83 = vpop.xlane.xlu0 %82
    %v84 = vsel %vm58, %v77, 0.0
    %85 = vadd.xlane.f32.xlu0 %v84
    %v86 = vpop.xlane.xlu0 %85
    %v87 = vmul.f32 %v80, %v68
    %v88 = vmul.f32 %v83, %v68
    %v89 = vmul.f32 %v86, %v68
    %v90 = vadd.f32 %v87, 1e-05
    %v91 = vadd.f32 %v88, 1e-05
    %v92 = vadd.f32 %v89, 1e-05
    %v93 = vrsqrt.pop %v90
    %v94 = vrsqrt.pop %v91
    %v95 = vrsqrt.pop %v92
    %v96 = vmul.f32 %v72, %v93
    %v97 = vmul.f32 %v73, %v94
    %v98 = vmul.f32 %v74, %v95
    %v99 = vld [vmem:[#allocation5] sm:$0x1]
    %v101 = vlaneseq
    %v102 = vshrl.u32 %v101, 7
    %v103 = vsub.s32 0, %v102
    %v104 = vrot.slane %v99, %v103
    %v106 = vmul.f32 %v96, %v104
    %v107 = vmul.f32 %v97, %v104
    %v108 = vmul.f32 %v98, %v104
    %v109 = vld [vmem:[#allocation7] sm:$0x1]
    %v111 = vlaneseq
    %v112 = vshrl.u32 %v111, 7
    %v113 = vsub.s32 0, %v112
    %v114 = vrot.slane %v109, %v113
    %v116 = vadd.f32 %v106, %v114
    %v117 = vadd.f32 %v107, %v114
    %v118 = vadd.f32 %v108, %v114
    %v119 = vpack.c.bf16 %v117, %v116
    %v120 = vpack.c.bf16 %v118, %v118
    %v123 = vunpack.c.l.b16 %v119
    %v124 = vunpack.c.h.b16 %v119
    %v125 = vunpack.c.l.b16 %v120
    %v126 = vpack.c.b16 %v123, %v123
    %v127 = vpack.c.b16 %v124, %v124
    %v128 = vpack.c.b16 %v125, %v125
    %vm132 = vcmask 257024
    %133 = vst.msk [vmem:[#allocation8] sm:$0xf] %vm132, %v126
    %134 = vst.msk [vmem:[#allocation8 + $0x4] sm:$0xf] %vm132, %v127
    %135 = vst.msk [vmem:[#allocation8 + $0x8] sm:$0xf] %vm132, %v128
    // Predicated region
    $region26: #{vision_encoder_forward.18} parent=1 // pred_check
      _
    $region27: #{vision_encoder_forward.18} parent=1 // pred_check_branch
      %137 = sbr.rel (0) target = $region29
    $region28: #{vision_encoder_forward.18} parent=1 // pred_region
      %s139 = ssub.s32 192, 192
      %140 = vsyncadd [#allocation4], %s139
      %s141 = sshll.u32 [#allocation8], 4
      %s142 = int_to_ptr.vmem [resolvable:$true] %s141
      %147 = dma.vmem_to_hbm [thread:$0]  %s142, 192, %s3, [#allocation4], 64, 64, 4
    $region29: #{vision_encoder_forward.18} parent=1 // pred_fallthru
      _
    // Predicated region
    $region30: #{vision_encoder_forward.18} parent=1 // pred_check
      _
    $region31: #{vision_encoder_forward.18} parent=1 // pred_check_branch
      %149 = sbr.rel (0) target = $region33
    $region32: #{vision_encoder_forward.18} parent=1 // pred_region
      %150 = dma.done [#allocation4], 192
    $region33: #{vision_encoder_forward.18} parent=1 // pred_fallthru
      _
    %151 = vsyncpa [#allocation3], 1
    %152 = vsyncpa [#allocation6], 1
    %153 = vsyncpa [#allocation4], 1

// kernel: vision_encoder_forward.19
$region0: #{vision_encoder_forward.19}
  #allocation0 [shape = 'u32[]', space=smem, size = 0x4, offset = 0x4, fixed_abs, tag = 'smem constant byte address 0x4 - core index']
  #allocation1 [shape = 'u32[144,128]{1,0:T(1,128)}', space=vmem, size = 0x12000, scoped, tag = 'internal scratch']
  #allocation2 [shape = 'bf16[24,32]{1,0:T(8,128)(2,1)}', space=vmem, size = 0x1800, scoped, tag = 'scratch operand']
  %s0 = inlined_call_operand.hbm [shape: bf16[24,32], index: 0, kind: input, shape index: {}]
  %s1 = inlined_call_operand.hbm [shape: f32[1,32], index: 1, kind: input, shape index: {}]
  %s2 = inlined_call_operand.hbm [shape: f32[1,32], index: 2, kind: input, shape index: {}]
  %s3 = inlined_call_operand.hbm [shape: bf16[32,96], index: 3, kind: input, shape index: {}]
  %s4 = inlined_call_operand.hbm [shape: f32[1,96], index: 4, kind: input, shape index: {}]
  %s5 = inlined_call_operand.hbm [shape: bf16[24,96], index: 5, kind: output, shape index: {}]
  %s6 = sld [smem:[#allocation0]]
  $region54: #{vision_encoder_forward.19} parent=0
    _
  %s8 = ssub.s32 1, %s6
  %s9 = scalar_select 0, %s8, %s6
  $region1: #{vision_encoder_forward.19} parent=0
    #allocation3 [shape = 'u8[6144]{0}', space=vmem, size = 0x1800, scoped, tag = 'input window, operand 0, single buffered']
    #allocation4 [shape = 's32[1]{0}', space=sflag, size = 0x4, scoped, tag = 'scoped memory for vision_encoder_forward.19']
    #allocation5 [shape = 's32[1]{0}', space=sflag, size = 0x4, scoped, tag = 'scoped memory for vision_encoder_forward.19']
    #allocation6 [shape = 'u8[512]{0}', space=vmem, size = 0x400, scoped, tag = 'input window, operand 1, single buffered']
    #allocation7 [shape = 's32[1]{0}', space=sflag, size = 0x4, scoped, tag = 'scoped memory for vision_encoder_forward.19']
    #allocation8 [shape = 'u8[512]{0}', space=vmem, size = 0x400, scoped, tag = 'input window, operand 2, single buffered']
    #allocation9 [shape = 'u8[8192]{0}', space=vmem, size = 0x2000, scoped, tag = 'input window, operand 3, single buffered']
    #allocation10 [shape = 's32[1]{0}', space=sflag, size = 0x4, scoped, tag = 'scoped memory for vision_encoder_forward.19']
    #allocation11 [shape = 'u8[512]{0}', space=vmem, size = 0x400, scoped, tag = 'input window, operand 4, single buffered']
    #allocation12 [shape = 'u8[6144]{0}', space=vmem, size = 0x1800, scoped, tag = 'output window, operand 0, single buffered']
    %10 = vsyncpa [#allocation4], 0
    %11 = vsyncpa [#allocation7], 0
    %12 = vsyncpa [#allocation10], 0
    %13 = vsyncpa [#allocation5], 0
    // Predicated region
    $region2: #{vision_encoder_forward.19} parent=1 // pred_check
      _
    $region3: #{vision_encoder_forward.19} parent=1 // pred_check_branch
      %15 = sbr.rel (0) target = $region5
    $region4: #{vision_encoder_forward.19} parent=1 // pred_region
      %s17 = ssub.s32 192, 192
      %18 = vsyncadd [#allocation4], %s17
      %s19 = sshll.u32 [#allocation3], 4
      %s20 = int_to_ptr.vmem [resolvable:$true] %s19
      %25 = dma.hbm_to_vmem [thread:$0]  %s0, 192, %s20, [#allocation4], 64, 64, 4
    $region5: #{vision_encoder_forward.19} parent=1 // pred_fallthru
      _
    // Predicated region
    $region6: #{vision_encoder_forward.19} parent=1 // pred_check
      _
    $region7: #{vision_encoder_forward.19} parent=1 // pred_check_branch
      %27 = sbr.rel (0) target = $region9
    $region8: #{vision_encoder_forward.19} parent=1 // pred_region
      %s29 = ssub.s32 16, 16
      %30 = vsyncadd [#allocation7], %s29
      %s32 = sshll.u32 [#allocation6], 4
      %s33 = int_to_ptr.vmem [resolvable:$true] %s32
      %35 = dma.hbm_to_vmem [thread:$0]  %s1, 16, %s33, [#allocation7]
    $region9: #{vision_encoder_forward.19} parent=1 // pred_fallthru
      _
    // Predicated region
    $region10: #{vision_encoder_forward.19} parent=1 // pred_check
      _
    $region11: #{vision_encoder_forward.19} parent=1 // pred_check_branch
      %37 = sbr.rel (0) target = $region13
    $region12: #{vision_encoder_forward.19} parent=1 // pred_region
      %s39 = ssub.s32 16, 16
      %40 = vsyncadd [#allocation7], %s39
      %s42 = sshll.u32 [#allocation8], 4
      %s43 = int_to_ptr.vmem [resolvable:$true] %s42
      %45 = dma.hbm_to_vmem [thread:$0]  %s2, 16, %s43, [#allocation7]
    $region13: #{vision_encoder_forward.19} parent=1 // pred_fallthru
      _
    // Predicated region
    $region14: #{vision_encoder_forward.19} parent=1 // pred_check
      _
    $region15: #{vision_encoder_forward.19} parent=1 // pred_check_branch
      %47 = sbr.rel (0) target = $region17
    $region16: #{vision_encoder_forward.19} parent=1 // pred_region
      %s49 = ssub.s32 256, 256
      %50 = vsyncadd [#allocation10], %s49
      %s51 = sshll.u32 [#allocation9], 4
      %s52 = int_to_ptr.vmem [resolvable:$true] %s51
      %57 = dma.hbm_to_vmem [thread:$0]  %s3, 256, %s52, [#allocation10], 64, 64, 4
    $region17: #{vision_encoder_forward.19} parent=1 // pred_fallthru
      _
    // Predicated region
    $region18: #{vision_encoder_forward.19} parent=1 // pred_check
      _
    $region19: #{vision_encoder_forward.19} parent=1 // pred_check_branch
      %59 = sbr.rel (0) target = $region21
    $region20: #{vision_encoder_forward.19} parent=1 // pred_region
      %s61 = ssub.s32 16, 16
      %62 = vsyncadd [#allocation10], %s61
      %s64 = sshll.u32 [#allocation11], 4
      %s65 = int_to_ptr.vmem [resolvable:$true] %s64
      %67 = dma.hbm_to_vmem [thread:$0]  %s4, 16, %s65, [#allocation10]
    $region21: #{vision_encoder_forward.19} parent=1 // pred_fallthru
      _
    // Predicated region
    $region22: #{vision_encoder_forward.19} parent=1 // pred_check
      _
    $region23: #{vision_encoder_forward.19} parent=1 // pred_check_branch
      %69 = sbr.rel (0) target = $region25
    $region24: #{vision_encoder_forward.19} parent=1 // pred_region
      %70 = dma.done [#allocation4], 192
    $region25: #{vision_encoder_forward.19} parent=1 // pred_fallthru
      _
    // Predicated region
    $region26: #{vision_encoder_forward.19} parent=1 // pred_check
      _
    $region27: #{vision_encoder_forward.19} parent=1 // pred_check_branch
      %72 = sbr.rel (0) target = $region29
    $region28: #{vision_encoder_forward.19} parent=1 // pred_region
      %73 = dma.done [#allocation7], 16
    $region29: #{vision_encoder_forward.19} parent=1 // pred_fallthru
      _
    // Predicated region
    $region30: #{vision_encoder_forward.19} parent=1 // pred_check
      _
    $region31: #{vision_encoder_forward.19} parent=1 // pred_check_branch
      %75 = sbr.rel (0) target = $region33
    $region32: #{vision_encoder_forward.19} parent=1 // pred_region
      %76 = dma.done [#allocation7], 16
    $region33: #{vision_encoder_forward.19} parent=1 // pred_fallthru
      _
    // Predicated region
    $region34: #{vision_encoder_forward.19} parent=1 // pred_check
      _
    $region35: #{vision_encoder_forward.19} parent=1 // pred_check_branch
      %78 = sbr.rel (0) target = $region37
    $region36: #{vision_encoder_forward.19} parent=1 // pred_region
      %79 = dma.done [#allocation10], 256
    $region37: #{vision_encoder_forward.19} parent=1 // pred_fallthru
      _
    // Predicated region
    $region38: #{vision_encoder_forward.19} parent=1 // pred_check
      _
    $region39: #{vision_encoder_forward.19} parent=1 // pred_check_branch
      %81 = sbr.rel (0) target = $region41
    $region40: #{vision_encoder_forward.19} parent=1 // pred_region
      %82 = dma.done [#allocation10], 16
    $region41: #{vision_encoder_forward.19} parent=1 // pred_fallthru
      _
    %p84 = scmp.eq.s32.totalorder 0, 0
    // Predicated region
    $region42: #{vision_encoder_forward.19} parent=1 // pred_check
      %p85 = pneg %p84
    $region43: #{vision_encoder_forward.19} parent=1 // pred_check_branch
      %87 = sbr.rel (%p85) target = $region45
    $region44: #{vision_encoder_forward.19} parent=1 // pred_region
      %v88 = vld [vmem:[#allocation3] sm:$0xf]
      %v89 = vld [vmem:[#allocation3 + $0x4] sm:$0xf]
      %v90 = vld [vmem:[#allocation3 + $0x8] sm:$0xf]
      %v91 = vunpack.c.l.bf16 %v88
      %v92 = vunpack.c.l.bf16 %v89
      %v93 = vunpack.c.l.bf16 %v90
      %vm94 = vcmask 261120
      %v95 = vsel %vm94, %v91, 0.0
      %96 = vadd.xlane.f32.xlu0 %v95
      %v97 = vpop.xlane.xlu0 %96
      %v98 = vsel %vm94, %v92, 0.0
      %99 = vadd.xlane.f32.xlu0 %v98
      %v100 = vpop.xlane.xlu0 %99
      %v101 = vsel %vm94, %v93, 0.0
      %102 = vadd.xlane.f32.xlu0 %v101
      %v103 = vpop.xlane.xlu0 %102
      %v104 = vrcp.pop 32.0
      %v105 = vmul.f32 %v97, %v104
      %v106 = vmul.f32 %v100, %v104
      %v107 = vmul.f32 %v103, %v104
      %v108 = vsub.f32 %v91, %v105
      %v109 = vsub.f32 %v92, %v106
      %v110 = vsub.f32 %v93, %v107
      %v111 = vmul.f32 %v108, %v108
      %v112 = vmul.f32 %v109, %v109
      %v113 = vmul.f32 %v110, %v110
      %v114 = vsel %vm94, %v111, 0.0
      %115 = vadd.xlane.f32.xlu0 %v114
      %v116 = vpop.xlane.xlu0 %115
      %v117 = vsel %vm94, %v112, 0.0
      %118 = vadd.xlane.f32.xlu0 %v117
      %v119 = vpop.xlane.xlu0 %118
      %v120 = vsel %vm94, %v113, 0.0
      %121 = vadd.xlane.f32.xlu0 %v120
      %v122 = vpop.xlane.xlu0 %121
      %v123 = vmul.f32 %v116, %v104
      %v124 = vmul.f32 %v119, %v104
      %v125 = vmul.f32 %v122, %v104
      %v126 = vadd.f32 %v123, 1e-05
      %v127 = vadd.f32 %v124, 1e-05
      %v128 = vadd.f32 %v125, 1e-05
      %v129 = vrsqrt.pop %v126
      %v130 = vrsqrt.pop %v127
      %v131 = vrsqrt.pop %v128
      %v132 = vmul.f32 %v108, %v129
      %v133 = vmul.f32 %v109, %v130
      %v134 = vmul.f32 %v110, %v131
      %v135 = vld [vmem:[#allocation6] sm:$0x1]
      %v137 = vlaneseq
      %v138 = vshrl.u32 %v137, 7
      %v139 = vsub.s32 0, %v138
      %v140 = vrot.slane %v135, %v139
      %v142 = vmul.f32 %v132, %v140
      %v143 = vmul.f32 %v133, %v140
      %v144 = vmul.f32 %v134, %v140
      %v145 = vld [vmem:[#allocation8] sm:$0x1]
      %v147 = vlaneseq
      %v148 = vshrl.u32 %v147, 7
      %v149 = vsub.s32 0, %v148
      %v150 = vrot.slane %v145, %v149
      %v152 = vadd.f32 %v142, %v150
      %v153 = vadd.f32 %v143, %v150
      %v154 = vadd.f32 %v144, %v150
      %v155 = vpack.c.bf16 %v153, %v152
      %v156 = vpack.c.bf16 %v154, %v154
      %v159 = vunpack.c.l.b16 %v155
      %v160 = vunpack.c.h.b16 %v155
      %v161 = vunpack.c.l.b16 %v156
      %v162 = vpack.c.b16 %v159, %v159
      %v163 = vpack.c.b16 %v160, %v160
      %v164 = vpack.c.b16 %v161, %v161
      %vm168 = vcmask 257024
      %169 = vst.msk [vmem:[#allocation2] sm:$0xf] %vm168, %v162
      %170 = vst.msk [vmem:[#allocation2 + $0x4] sm:$0xf] %vm168, %v163
      %171 = vst.msk [vmem:[#allocation2 + $0x8] sm:$0xf] %vm168, %v164
    $region45: #{vision_encoder_forward.19} parent=1 // pred_fallthru
      _
    %v172 = vld [vmem:[#allocation2] sm:$0xf]
    %v173 = vld [vmem:[#allocation2 + $0x4] sm:$0xf]
    %v174 = vld [vmem:[#allocation2 + $0x8] sm:$0xf]
    %v175 = vld [vmem:[#allocation9] sm:$0xf]
    %v176 = vld [vmem:[#allocation9 + $0x4] sm:$0xf]
    %v177 = vld [vmem:[#allocation9 + $0x8] sm:$0xf]
    %v178 = vld [vmem:[#allocation9 + $0xc] sm:$0xf]
    %v179 = vld [vmem:[#allocation11] sm:$0x1]
    %v181 = vlaneseq
    %v182 = vshrl.u32 %v181, 7
    %v183 = vsub.s32 0, %v182
    %v184 = vrot.slane %v179, %v183
    %v189 = vunpack.c.l.b16 %v172
    %v190 = vunpack.c.l.b16 %v173
    %v191 = vunpack.c.l.b16 %v174
    %v192 = vpack.c.b16 %v190, %v189
    %v193 = vpack.c.b16 %v191, %v191
    %v198 = vunpack.c.l.b16 %v175
    %v199 = vunpack.c.l.b16 %v176
    %v200 = vunpack.c.l.b16 %v177
    %v201 = vunpack.c.l.b16 %v178
    %v202 = vpack.c.b16 %v199, %v198
    %v203 = vpack.c.b16 %v201, %v200
    %vm206 = vcmask 261120
    %v208 = vsel %vm206, %v192, 0
    %v211 = vsel %vm206, %v193, 0
    %213 = vmatprep.subr.bf16.mxu0 0
    %214 = vmatpush1.bf16.msra.mxu0 %v202
    %215 = vmatprep.subr.bf16.mxu0 0
    %216 = vmatpush1.bf16.msra.mxu0 %v203
    %217 = vmatprep.subr.bf16.mxu0 0
    %218 = vmatpush1.bf16.msra.mxu0 0
    %219 = vmatprep.subr.bf16.mxu0 0
    %220 = vmatpush1.bf16.msra.mxu0 0
    %221 = vmatprep.subr.bf16.mxu0 0
    %222 = vmatpush1.bf16.msra.mxu0 0
    %223 = vmatprep.subr.bf16.mxu0 0
    %224 = vmatpush1.bf16.msra.mxu0 0
    %225 = vmatprep.subr.bf16.mxu0 0
    %226 = vmatpush1.bf16.msra.mxu0 0
    %227 = vmatprep.subr.bf16.mxu0 0
    %228 = vmatpush1.bf16.msra.mxu0 0
    %229 = vmatprep.subr.bf16.mxu0 0
    %230 = vmatpush1.bf16.msra.mxu0 0
    %231 = vmatprep.subr.bf16.mxu0 0
    %232 = vmatpush1.bf16.msra.mxu0 0
    %233 = vmatprep.subr.bf16.mxu0 0
    %234 = vmatpush1.bf16.msra.mxu0 0
    %235 = vmatprep.subr.bf16.mxu0 0
    %236 = vmatpush1.bf16.msra.mxu0 0
    %237 = vmatprep.subr.bf16.mxu0 0
    %238 = vmatpush1.bf16.msra.mxu0 0
    %239 = vmatprep.subr.bf16.mxu0 0
    %240 = vmatpush1.bf16.msra.mxu0 0
    %241 = vmatprep.subr.bf16.mxu0 0
    %242 = vmatpush1.bf16.msra.mxu0 0
    %243 = vmatprep.subr.bf16.mxu0 0
    %244 = vmatpush1.bf16.msra.mxu0 0
    %245 = vmatprep.mubr.bf16.mxu0 0
    %246 = vmatmul.mubr.bf16.gmra.mrb[0].mxu0 %v208
    %v247 = vpop.f32.mrb[0].mxu0
    %v248 = vadd.f32 %v184, %v247
    %v249 = vpop.f32.mrb[0].mxu0
    %v250 = vpop.f32.mrb[0].mxu0
    %v251 = vadd.f32 %v184, %v250
    %v252 = vpop.f32.mrb[0].mxu0
    %253 = vmatprep.mubr.bf16.mxu0 0
    %254 = vmatmul.mubr.bf16.gmra.mrb[0].mxu0 %v211
    %v255 = vpop.f32.mrb[0].mxu0
    %v256 = vadd.f32 %v184, %v255
    %v257 = vpop.f32.mrb[0].mxu0
    %v258 = vpop.f32.mrb[0].mxu0
    %v259 = vpop.f32.mrb[0].mxu0
    %260 = vdwg.mxu0
    %v261 = vpack.c.bf16 %v251, %v248
    %v262 = vpack.c.bf16 %v256, %v256
    %v265 = vunpack.c.l.b16 %v261
    %v266 = vunpack.c.h.b16 %v261
    %v267 = vunpack.c.l.b16 %v262
    %v268 = vpack.c.b16 %v265, %v265
    %v269 = vpack.c.b16 %v266, %v266
    %v270 = vpack.c.b16 %v267, %v267
    %vm274 = vcmask 781312
    %275 = vst.msk [vmem:[#allocation12] sm:$0xf] %vm274, %v268
    %276 = vst.msk [vmem:[#allocation12 + $0x4] sm:$0xf] %vm274, %v269
    %277 = vst.msk [vmem:[#allocation12 + $0x8] sm:$0xf] %vm274, %v270
    // Predicated region
    $region46: #{vision_encoder_forward.19} parent=1 // pred_check
      _
    $region47: #{vision_encoder_forward.19} parent=1 // pred_check_branch
      %279 = sbr.rel (0) target = $region49
    $region48: #{vision_encoder_forward.19} parent=1 // pred_region
      %s281 = ssub.s32 192, 192
      %282 = vsyncadd [#allocation5], %s281
      %s283 = sshll.u32 [#allocation12], 4
      %s284 = int_to_ptr.vmem [resolvable:$true] %s283
      %289 = dma.vmem_to_hbm [thread:$0]  %s284, 192, %s5, [#allocation5], 64, 64, 4
    $region49: #{vision_encoder_forward.19} parent=1 // pred_fallthru
      _
    // Predicated region
    $region50: #{vision_encoder_forward.19} parent=1 // pred_check
      _
    $region51: #{vision_encoder_forward.19} parent=1 // pred_check_branch
      %291 = sbr.rel (0) target = $region53
    $region52: #{vision_encoder_forward.19} parent=1 // pred_region
      %292 = dma.done [#allocation5], 192
    $region53: #{vision_encoder_forward.19} parent=1 // pred_fallthru
      _
    %293 = vsyncpa [#allocation4], 1
    %294 = vsyncpa [#allocation7], 1
    %295 = vsyncpa [#allocation10], 1
    %296 = vsyncpa [#allocation5], 1

// kernel: vision_encoder_forward.20
$region0: #{vision_encoder_forward.20}
  #allocation0 [shape = 'u32[]', space=smem, size = 0x4, offset = 0x4, fixed_abs, tag = 'smem constant byte address 0x4 - core index']
  #allocation1 [shape = 'u32[144,128]{1,0:T(1,128)}', space=vmem, size = 0x12000, scoped, tag = 'internal scratch']
  %s0 = inlined_call_operand.hbm [shape: bf16[2,12,96], index: 0, kind: input, shape index: {}]
  %s1 = inlined_call_operand.hbm [shape: bf16[2,12,32], index: 1, kind: output, shape index: {}]
  %s2 = sld [smem:[#allocation0]]
  $region41: #{vision_encoder_forward.20} parent=0
    _
  %s4 = ssub.s32 1, %s2
  %s5 = scalar_select 0, %s4, %s2
  $region1: #{vision_encoder_forward.20} parent=0
    #allocation2 [shape = 'u8[8192]{0}', space=vmem, size = 0x2000, scoped, tag = 'input window, operand 0']
    #allocation3 [shape = 's32[2]{0}', space=sflag, size = 0x8, scoped, tag = 'scoped memory for vision_encoder_forward.20']
    #allocation4 [shape = 's32[2]{0}', space=sflag, size = 0x8, scoped, tag = 'scoped memory for vision_encoder_forward.20']
    #allocation5 [shape = 'u8[8192]{0}', space=vmem, size = 0x2000, scoped, tag = 'output window, operand 0']
    %6 = vsyncpa [#allocation3], 0
    %s7 = scalar_lea.sflag [#allocation3], 1
    %8 = vsyncpa %s7, 0
    %9 = vsyncpa [#allocation4], 0
    %s10 = scalar_lea.sflag [#allocation4], 1
    %11 = vsyncpa %s10, 0
    loop: start=0, step=1, limit=4
    $region2: #{vision_encoder_forward.20} parent=1 // loop_pre_header
      _
    $region3: #{vision_encoder_forward.20} parent=1 // loop_header
      %s13 = sphi 0, %s17
      %p14 = scmp.ge.s32.totalorder %s13, 4
      %s23 = sphi 0, %s25
      %s26 = sphi 0, %s23
      %s27 = sphi 0, %s26
      %s43 = sphi 0, %s27
      %s49 = sphi 0, %s51
      %s52 = sphi 0, %s49
      %s53 = sphi 0, %s52
      %s69 = sphi 0, %s53
    $region4: #{vision_encoder_forward.20} parent=1 // loop_header_branch
      %16 = sbr.rel (%p14) target = $region8
    $region5: #{vision_encoder_forward.20} parent=1 // loop_body
      %s18 = ssub.s32 %s13, 1
      %s19 = ssub.s32 %s13, 2
      %s20 = sadd.s32 %s13, 1
      %s21 = ssub.s32 %s13, %s20
      %p22 = scmp.eq.s32.totalorder %s21, 0
      %s24 = sadd.s32 %s23, 1
      %s25 = scalar_select %p22, %s23, %s24
      %p28 = pneg %p22
      %p29 = scmp.eq.s32.totalorder %s13, 1
      %p30 = por %p28, %p29
      %p31 = scmp.ne.s32.totalorder %s23, %s26
      %p32 = scmp.eq.s32.totalorder %s13, 0
      %p33 = por %p31, %p32
      %p34 = scmp.ne.s32.totalorder %s23, %s26
      %p35 = scmp.eq.s32.totalorder %s18, 1
      %p36 = por %p34, %p35
      %p37 = scmp.ne.s32.totalorder %s26, %s27
      %p38 = scmp.eq.s32.totalorder %s18, 0
      %p39 = por %p37, %p38
      %p40 = scmp.ne.s32.totalorder %s26, %s27
      %p41 = scmp.eq.s32.totalorder %s19, 1
      %p42 = por %p40, %p41
      %p44 = scmp.ne.s32.totalorder %s27, %s43
      %p45 = scmp.eq.s32.totalorder %s19, 0
      %p46 = por %p44, %p45
      %s47 = ssub.s32 %s13, %s20
      %p48 = scmp.eq.s32.totalorder %s47, 0
      %s50 = sadd.s32 %s49, 1
      %s51 = scalar_select %p48, %s49, %s50
      %p54 = pneg %p48
      %p55 = scmp.eq.s32.totalorder %s13, 1
      %p56 = por %p54, %p55
      %p57 = scmp.ne.s32.totalorder %s49, %s52
      %p58 = scmp.eq.s32.totalorder %s13, 0
      %p59 = por %p57, %p58
      %p60 = scmp.ne.s32.totalorder %s49, %s52
      %p61 = scmp.eq.s32.totalorder %s18, 1
      %p62 = por %p60, %p61
      %p63 = scmp.ne.s32.totalorder %s52, %s53
      %p64 = scmp.eq.s32.totalorder %s18, 0
      %p65 = por %p63, %p64
      %p66 = scmp.ne.s32.totalorder %s52, %s53
      %p67 = scmp.eq.s32.totalorder %s19, 1
      %p68 = por %p66, %p67
      %p70 = scmp.ne.s32.totalorder %s53, %s69
      %p71 = scmp.eq.s32.totalorder %s19, 0
      %p72 = por %p70, %p71
      %p73 = scmp.le.s32.totalorder 1, %s13
      %p74 = scmp.lt.s32.totalorder %s13, 3
      %p75 = pnand %p73, %p74
      %p76 = pneg %p75
      // Predicated region
      $region9: #{vision_encoder_forward.20} parent=5 // pred_check
        _
      $region10: #{vision_encoder_forward.20} parent=5 // pred_check_branch
        %78 = sbr.rel (%p75) target = $region12
      $region11: #{vision_encoder_forward.20} parent=5 // pred_region
        %s79 = ssub.s32 %s13, 1
      $region12: #{vision_encoder_forward.20} parent=5 // pred_fallthru
        _
      %p80 = scmp.lt.s32.totalorder %s13, 2
      // Predicated region
      $region13: #{vision_encoder_forward.20} parent=5 // pred_check
        %p81 = pneg %p80
      $region14: #{vision_encoder_forward.20} parent=5 // pred_check_branch
        %83 = sbr.rel (%p81) target = $region16
      $region15: #{vision_encoder_forward.20} parent=5 // pred_region
        // Predicated region
        $region17: #{vision_encoder_forward.20} parent=15 // pred_check
          %p84 = pneg %p33
        $region18: #{vision_encoder_forward.20} parent=15 // pred_check_branch
          %86 = sbr.rel (%p84) target = $region20
        $region19: #{vision_encoder_forward.20} parent=15 // pred_region
          %s87 = sand.u32 %s23, 1
          %s88 = scalar_lea.sflag [#allocation3], %s87
          %s89 = sand.u32 %s23, 1
          %s90 = smul.addr %s89, 8
          %s91 = scalar_lea.vmem [#allocation2], %s90
          %s93 = ssub.s32 128, 128
          %94 = vsyncadd %s88, %s93
          %s95 = smul.addr %s13, 2
          %s96 = smul.addr %s95, 64
          %s97 = scalar_lea.hbm %s0, %s96
          %s98 = sshll.u32 %s91, 4
          %s99 = int_to_ptr.vmem [resolvable:$true] %s98
          %104 = dma.hbm_to_vmem [thread:$0]  %s97, 128, %s99, %s88, 64, 64, 4
        $region20: #{vision_encoder_forward.20} parent=15 // pred_fallthru
          _
      $region16: #{vision_encoder_forward.20} parent=5 // pred_fallthru
        _
      %p105 = scmp.le.s32.totalorder 1, %s13
      %p106 = scmp.lt.s32.totalorder %s13, 3
      %p107 = pnand %p105, %p106
      %p108 = pneg %p107
      // Predicated region
      $region21: #{vision_encoder_forward.20} parent=5 // pred_check
        _
      $region22: #{vision_encoder_forward.20} parent=5 // pred_check_branch
        %110 = sbr.rel (%p107) target = $region24
      $region23: #{vision_encoder_forward.20} parent=5 // pred_region
        %s111 = ssub.s32 %s13, 1
        %s112 = sand.u32 %s26, 1
        %s113 = scalar_lea.sflag [#allocation3], %s112
        %s114 = sand.u32 %s26, 1
        %s115 = smul.addr %s114, 8
        %s116 = scalar_lea.vmem [#allocation2], %s115
        // Predicated region
        $region25: #{vision_encoder_forward.20} parent=23 // pred_check
          %p117 = pneg %p39
        $region26: #{vision_encoder_forward.20} parent=23 // pred_check_branch
          %119 = sbr.rel (%p117) target = $region28
        $region27: #{vision_encoder_forward.20} parent=23 // pred_region
          %120 = dma.done %s113, 128
        $region28: #{vision_encoder_forward.20} parent=23 // pred_fallthru
          _
        %s121 = sand.u32 %s26, 1
        %s122 = scalar_lea.sflag [#allocation3], %s121
        %s123 = sand.u32 %s26, 1
        %s124 = smul.addr %s123, 8
        %s125 = scalar_lea.vmem [#allocation2], %s124
        %p126 = pneg %p39
        %p127 = pneg %p36
        %p128 = pneg %p65
        %p129 = pneg %p62
        %s130 = sand.u32 %s52, 1
        %s131 = scalar_lea.sflag [#allocation4], %s130
        %s132 = sand.u32 %s52, 1
        %s133 = smul.addr %s132, 8
        %s134 = scalar_lea.vmem [#allocation5], %s133
        %v136 = vld [vmem:[%s116] sm:$0xf]
        %v137 = vld [vmem:[%s116 + $0x4] sm:$0x3]
        %v140 = vunpack.c.l.b16 %v136
        %v141 = vunpack.c.l.b16 %v137
        %v142 = vpack.c.b16 %v141, %v140
        %143 = vrot.lane.b32.xlu0 %v142, 96
        %v144 = vpop.permute.xlu0 %143
        %vm145 = vcmask 64512
        %v147 = vsel %vm145, %v142, 0
        %v150 = vsel %vm145, %v144, 0
        %152 = vmatprep.subr.bf16.mxu0 0
        %153 = vmatpush1.bf16.xpose.msra.mxu0 %v150
        %154 = vmatprep.subr.bf16.mxu0 0
        %155 = vmatpush1.bf16.xpose.msra.mxu0 0
        %156 = vmatprep.subr.bf16.mxu0 0
        %157 = vmatpush1.bf16.xpose.msra.mxu0 0
        %158 = vmatprep.subr.bf16.mxu0 0
        %159 = vmatpush1.bf16.xpose.msra.mxu0 0
        %160 = vmatprep.subr.bf16.mxu0 0
        %161 = vmatpush1.bf16.xpose.msra.mxu0 0
        %162 = vmatprep.subr.bf16.mxu0 0
        %163 = vmatpush1.bf16.xpose.msra.mxu0 0
        %164 = vmatprep.subr.bf16.mxu0 0
        %165 = vmatpush1.bf16.xpose.msra.mxu0 0
        %166 = vmatprep.subr.bf16.mxu0 0
        %167 = vmatpush1.bf16.xpose.msra.mxu0 0
        %168 = vmatprep.subr.bf16.mxu0 0
        %169 = vmatpush1.bf16.xpose.msra.mxu0 0
        %170 = vmatprep.subr.bf16.mxu0 0
        %171 = vmatpush1.bf16.xpose.msra.mxu0 0
        %172 = vmatprep.subr.bf16.mxu0 0
        %173 = vmatpush1.bf16.xpose.msra.mxu0 0
        %174 = vmatprep.subr.bf16.mxu0 0
        %175 = vmatpush1.bf16.xpose.msra.mxu0 0
        %176 = vmatprep.subr.bf16.mxu0 0
        %177 = vmatpush1.bf16.xpose.msra.mxu0 0
        %178 = vmatprep.subr.bf16.mxu0 0
        %179 = vmatpush1.bf16.xpose.msra.mxu0 0
        %180 = vmatprep.subr.bf16.mxu0 0
        %181 = vmatpush1.bf16.xpose.msra.mxu0 0
        %182 = vmatprep.subr.bf16.mxu0 0
        %183 = vmatpush1.bf16.xpose.msra.mxu0 0
        %184 = vmatprep.mubr.bf16.mxu0 0
        %185 = vmatmul.mubr.bf16.gmra.mrb[0].mxu0 %v147
        %v186 = vpop.f32.mrb[0].mxu0
        %v187 = vadd.f32 0.0, %v186
        %v188 = vpop.f32.mrb[0].mxu0
        %v189 = vpop.f32.mrb[0].mxu0
        %v190 = vadd.f32 0.0, %v189
        %v191 = vpop.f32.mrb[0].mxu0
        %192 = vdwg.mxu0
        %vm193 = vcmask 97280
        %v194 = vsel %vm193, %v187, -inf
        %195 = vmax.xlane.f32.xlu0 %v194
        %v196 = vpop.xlane.xlu0 %195
        %vm197 = vcmask 93184
        %v198 = vsel %vm197, %v190, -inf
        %199 = vmax.xlane.f32.xlu0 %v198
        %v200 = vpop.xlane.xlu0 %199
        %v201 = vsub.f32 %v187, %v196
        %v202 = vsub.f32 %v190, %v200
        %v203 = vmul.f32 %v201, 1.442695
        %v204 = vpow.pop %v203
        %v205 = vmul.f32 %v202, 1.442695
        %v206 = vpow.pop %v205
        %v207 = vsel %vm193, %v204, 0.0
        %208 = vadd.xlane.f32.xlu0 %v207
        %v209 = vpop.xlane.xlu0 %208
        %v210 = vsel %vm197, %v206, 0.0
        %211 = vadd.xlane.f32.xlu0 %v210
        %v212 = vpop.xlane.xlu0 %211
        %v213 = vpack.c.bf16 %v206, %v204
        %214 = vrot.lane.b32.xlu0 %v142, 64
        %v215 = vpop.permute.xlu0 %214
        %v217 = vsel %vm193, %v213, 0
        %vm219 = vcmask 1045504
        %v221 = vsel %vm219, %v215, 0
        %223 = vmatprep.subr.bf16.mxu0 0
        %224 = vmatpush1.bf16.msra.mxu0 %v221
        %225 = vmatprep.subr.bf16.mxu0 0
        %226 = vmatpush1.bf16.msra.mxu0 0
        %227 = vmatprep.subr.bf16.mxu0 0
        %228 = vmatpush1.bf16.msra.mxu0 0
        %229 = vmatprep.subr.bf16.mxu0 0
        %230 = vmatpush1.bf16.msra.mxu0 0
        %231 = vmatprep.subr.bf16.mxu0 0
        %232 = vmatpush1.bf16.msra.mxu0 0
        %233 = vmatprep.subr.bf16.mxu0 0
        %234 = vmatpush1.bf16.msra.mxu0 0
        %235 = vmatprep.subr.bf16.mxu0 0
        %236 = vmatpush1.bf16.msra.mxu0 0
        %237 = vmatprep.subr.bf16.mxu0 0
        %238 = vmatpush1.bf16.msra.mxu0 0
        %239 = vmatprep.subr.bf16.mxu0 0
        %240 = vmatpush1.bf16.msra.mxu0 0
        %241 = vmatprep.subr.bf16.mxu0 0
        %242 = vmatpush1.bf16.msra.mxu0 0
        %243 = vmatprep.subr.bf16.mxu0 0
        %244 = vmatpush1.bf16.msra.mxu0 0
        %245 = vmatprep.subr.bf16.mxu0 0
        %246 = vmatpush1.bf16.msra.mxu0 0
        %247 = vmatprep.subr.bf16.mxu0 0
        %248 = vmatpush1.bf16.msra.mxu0 0
        %249 = vmatprep.subr.bf16.mxu0 0
        %250 = vmatpush1.bf16.msra.mxu0 0
        %251 = vmatprep.subr.bf16.mxu0 0
        %252 = vmatpush1.bf16.msra.mxu0 0
        %253 = vmatprep.subr.bf16.mxu0 0
        %254 = vmatpush1.bf16.msra.mxu0 0
        %255 = vmatprep.mubr.bf16.mxu0 0
        %256 = vmatmul.mubr.bf16.gmra.mrb[0].mxu0 %v217
        %v257 = vpop.f32.mrb[0].mxu0
        %v258 = vadd.f32 0.0, %v257
        %v259 = vpop.f32.mrb[0].mxu0
        %v260 = vpop.f32.mrb[0].mxu0
        %v261 = vadd.f32 0.0, %v260
        %v262 = vpop.f32.mrb[0].mxu0
        %263 = vdwg.mxu0
        %v264 = vrcp.pop %v209
        %v265 = vrcp.pop %v212
        %v266 = vmul.f32 %v258, %v264
        %v267 = vmul.f32 %v261, %v265
        %v268 = vpack.c.bf16 %v267, %v266
        %v270 = vunpack.c.l.b16 %v268
        %v271 = vunpack.c.h.b16 %v268
        %v272 = vpack.c.b16 %v270, %v270
        %v273 = vpack.c.b16 %v271, %v271
        %vm276 = vcmask 60416
        %277 = vst.msk [vmem:[%s134] sm:$0xf] %vm276, %v272
        %vm278 = vcmask 58368
        %279 = vst.msk [vmem:[%s134 + $0x4] sm:$0x3] %vm278, %v273
        %v280 = vld [vmem:[%s116] sm:$0xf]
        %v281 = vld [vmem:[%s116 + $0x4] sm:$0x3]
        %v284 = vunpack.c.l.b16 %v280
        %v285 = vunpack.c.l.b16 %v281
        %v286 = vpack.c.b16 %v285, %v284
        %287 = vrot.lane.b32.xlu0 %v286, 120
        %v288 = vpop.permute.xlu0 %287
        %289 = vrot.lane.b32.xlu0 %v286, 88
        %v290 = vpop.permute.xlu0 %289
        %v292 = vsel %vm145, %v288, 0
        %v295 = vsel %vm145, %v290, 0
        %297 = vmatprep.subr.bf16.mxu0 0
        %298 = vmatpush1.bf16.xpose.msra.mxu0 %v295
        %299 = vmatprep.subr.bf16.mxu0 0
        %300 = vmatpush1.bf16.xpose.msra.mxu0 0
        %301 = vmatprep.subr.bf16.mxu0 0
        %302 = vmatpush1.bf16.xpose.msra.mxu0 0
        %303 = vmatprep.subr.bf16.mxu0 0
        %304 = vmatpush1.bf16.xpose.msra.mxu0 0
        %305 = vmatprep.subr.bf16.mxu0 0
        %306 = vmatpush1.bf16.xpose.msra.mxu0 0
        %307 = vmatprep.subr.bf16.mxu0 0
        %308 = vmatpush1.bf16.xpose.msra.mxu0 0
        %309 = vmatprep.subr.bf16.mxu0 0
        %310 = vmatpush1.bf16.xpose.msra.mxu0 0
        %311 = vmatprep.subr.bf16.mxu0 0
        %312 = vmatpush1.bf16.xpose.msra.mxu0 0
        %313 = vmatprep.subr.bf16.mxu0 0
        %314 = vmatpush1.bf16.xpose.msra.mxu0 0
        %315 = vmatprep.subr.bf16.mxu0 0
        %316 = vmatpush1.bf16.xpose.msra.mxu0 0
        %317 = vmatprep.subr.bf16.mxu0 0
        %318 = vmatpush1.bf16.xpose.msra.mxu0 0
        %319 = vmatprep.subr.bf16.mxu0 0
        %320 = vmatpush1.bf16.xpose.msra.mxu0 0
        %321 = vmatprep.subr.bf16.mxu0 0
        %322 = vmatpush1.bf16.xpose.msra.mxu0 0
        %323 = vmatprep.subr.bf16.mxu0 0
        %324 = vmatpush1.bf16.xpose.msra.mxu0 0
        %325 = vmatprep.subr.bf16.mxu0 0
        %326 = vmatpush1.bf16.xpose.msra.mxu0 0
        %327 = vmatprep.subr.bf16.mxu0 0
        %328 = vmatpush1.bf16.xpose.msra.mxu0 0
        %329 = vmatprep.mubr.bf16.mxu0 0
        %330 = vmatmul.mubr.bf16.gmra.mrb[0].mxu0 %v292
        %v331 = vpop.f32.mrb[0].mxu0
        %v332 = vadd.f32 0.0, %v331
        %v333 = vpop.f32.mrb[0].mxu0
        %v334 = vpop.f32.mrb[0].mxu0
        %v335 = vadd.f32 0.0, %v334
        %v336 = vpop.f32.mrb[0].mxu0
        %337 = vdwg.mxu0
        %v338 = vsel %vm193, %v332, -inf
        %339 = vmax.xlane.f32.xlu0 %v338
        %v340 = vpop.xlane.xlu0 %339
        %v341 = vsel %vm197, %v335, -inf
        %342 = vmax.xlane.f32.xlu0 %v341
        %v343 = vpop.xlane.xlu0 %342
        %v344 = vsub.f32 %v332, %v340
        %v345 = vsub.f32 %v335, %v343
        %v346 = vmul.f32 %v344, 1.442695
        %v347 = vpow.pop %v346
        %v348 = vmul.f32 %v345, 1.442695
        %v349 = vpow.pop %v348
        %v350 = vsel %vm193, %v347, 0.0
        %351 = vadd.xlane.f32.xlu0 %v350
        %v352 = vpop.xlane.xlu0 %351
        %v353 = vsel %vm197, %v349, 0.0
        %354 = vadd.xlane.f32.xlu0 %v353
        %v355 = vpop.xlane.xlu0 %354
        %v356 = vpack.c.bf16 %v349, %v347
        %357 = vrot.lane.b32.xlu0 %v286, 56
        %v358 = vpop.permute.xlu0 %357
        %v360 = vsel %vm193, %v356, 0
        %v363 = vsel %vm219, %v358, 0
        %365 = vmatprep.subr.bf16.mxu0 0
        %366 = vmatpush1.bf16.msra.mxu0 %v363
        %367 = vmatprep.subr.bf16.mxu0 0
        %368 = vmatpush1.bf16.msra.mxu0 0
        %369 = vmatprep.subr.bf16.mxu0 0
        %370 = vmatpush1.bf16.msra.mxu0 0
        %371 = vmatprep.subr.bf16.mxu0 0
        %372 = vmatpush1.bf16.msra.mxu0 0
        %373 = vmatprep.subr.bf16.mxu0 0
        %374 = vmatpush1.bf16.msra.mxu0 0
        %375 = vmatprep.subr.bf16.mxu0 0
        %376 = vmatpush1.bf16.msra.mxu0 0
        %377 = vmatprep.subr.bf16.mxu0 0
        %378 = vmatpush1.bf16.msra.mxu0 0
        %379 = vmatprep.subr.bf16.mxu0 0
        %380 = vmatpush1.bf16.msra.mxu0 0
        %381 = vmatprep.subr.bf16.mxu0 0
        %382 = vmatpush1.bf16.msra.mxu0 0
        %383 = vmatprep.subr.bf16.mxu0 0
        %384 = vmatpush1.bf16.msra.mxu0 0
        %385 = vmatprep.subr.bf16.mxu0 0
        %386 = vmatpush1.bf16.msra.mxu0 0
        %387 = vmatprep.subr.bf16.mxu0 0
        %388 = vmatpush1.bf16.msra.mxu0 0
        %389 = vmatprep.subr.bf16.mxu0 0
        %390 = vmatpush1.bf16.msra.mxu0 0
        %391 = vmatprep.subr.bf16.mxu0 0
        %392 = vmatpush1.bf16.msra.mxu0 0
        %393 = vmatprep.subr.bf16.mxu0 0
        %394 = vmatpush1.bf16.msra.mxu0 0
        %395 = vmatprep.subr.bf16.mxu0 0
        %396 = vmatpush1.bf16.msra.mxu0 0
        %397 = vmatprep.mubr.bf16.mxu0 0
        %398 = vmatmul.mubr.bf16.gmra.mrb[0].mxu0 %v360
        %v399 = vpop.f32.mrb[0].mxu0
        %v400 = vadd.f32 0.0, %v399
        %v401 = vpop.f32.mrb[0].mxu0
        %v402 = vpop.f32.mrb[0].mxu0
        %v403 = vadd.f32 0.0, %v402
        %v404 = vpop.f32.mrb[0].mxu0
        %405 = vdwg.mxu0
        %v406 = vrcp.pop %v352
        %v407 = vrcp.pop %v355
        %v408 = vmul.f32 %v400, %v406
        %v409 = vmul.f32 %v403, %v407
        %v410 = vpack.c.bf16 %v409, %v408
        %v412 = vunpack.c.l.b16 %v410
        %v413 = vunpack.c.h.b16 %v410
        %v414 = vpack.c.b16 %v412, %v412
        %v415 = vpack.c.b16 %v413, %v413
        %416 = vrot.lane.b32.xlu0 %v414, 8
        %v417 = vpop.permute.xlu0 %416
        %418 = vrot.lane.b32.xlu0 %v415, 8
        %v419 = vpop.permute.xlu0 %418
        %vm422 = vcmask 126016
        %423 = vst.msk [vmem:[%s134] sm:$0xf] %vm422, %v417
        %vm424 = vcmask 123968
        %425 = vst.msk [vmem:[%s134 + $0x4] sm:$0x3] %vm424, %v419
        %v426 = vld [vmem:[%s116] sm:$0xf]
        %v427 = vld [vmem:[%s116 + $0x4] sm:$0x3]
        %v430 = vunpack.c.l.b16 %v426
        %v431 = vunpack.c.l.b16 %v427
        %v432 = vpack.c.b16 %v431, %v430
        %433 = vrot.lane.b32.xlu0 %v432, 112
        %v434 = vpop.permute.xlu0 %433
        %435 = vrot.lane.b32.xlu0 %v432, 80
        %v436 = vpop.permute.xlu0 %435
        %v438 = vsel %vm145, %v434, 0
        %v441 = vsel %vm145, %v436, 0
        %443 = vmatprep.subr.bf16.mxu0 0
        %444 = vmatpush1.bf16.xpose.msra.mxu0 %v441
        %445 = vmatprep.subr.bf16.mxu0 0
        %446 = vmatpush1.bf16.xpose.msra.mxu0 0
        %447 = vmatprep.subr.bf16.mxu0 0
        %448 = vmatpush1.bf16.xpose.msra.mxu0 0
        %449 = vmatprep.subr.bf16.mxu0 0
        %450 = vmatpush1.bf16.xpose.msra.mxu0 0
        %451 = vmatprep.subr.bf16.mxu0 0
        %452 = vmatpush1.bf16.xpose.msra.mxu0 0
        %453 = vmatprep.subr.bf16.mxu0 0
        %454 = vmatpush1.bf16.xpose.msra.mxu0 0
        %455 = vmatprep.subr.bf16.mxu0 0
        %456 = vmatpush1.bf16.xpose.msra.mxu0 0
        %457 = vmatprep.subr.bf16.mxu0 0
        %458 = vmatpush1.bf16.xpose.msra.mxu0 0
        %459 = vmatprep.subr.bf16.mxu0 0
        %460 = vmatpush1.bf16.xpose.msra.mxu0 0
        %461 = vmatprep.subr.bf16.mxu0 0
        %462 = vmatpush1.bf16.xpose.msra.mxu0 0
        %463 = vmatprep.subr.bf16.mxu0 0
        %464 = vmatpush1.bf16.xpose.msra.mxu0 0
        %465 = vmatprep.subr.bf16.mxu0 0
        %466 = vmatpush1.bf16.xpose.msra.mxu0 0
        %467 = vmatprep.subr.bf16.mxu0 0
        %468 = vmatpush1.bf16.xpose.msra.mxu0 0
        %469 = vmatprep.subr.bf16.mxu0 0
        %470 = vmatpush1.bf16.xpose.msra.mxu0 0
        %471 = vmatprep.subr.bf16.mxu0 0
        %472 = vmatpush1.bf16.xpose.msra.mxu0 0
        %473 = vmatprep.subr.bf16.mxu0 0
        %474 = vmatpush1.bf16.xpose.msra.mxu0 0
        %475 = vmatprep.mubr.bf16.mxu0 0
        %476 = vmatmul.mubr.bf16.gmra.mrb[0].mxu0 %v438
        %v477 = vpop.f32.mrb[0].mxu0
        %v478 = vadd.f32 0.0, %v477
        %v479 = vpop.f32.mrb[0].mxu0
        %v480 = vpop.f32.mrb[0].mxu0
        %v481 = vadd.f32 0.0, %v480
        %v482 = vpop.f32.mrb[0].mxu0
        %483 = vdwg.mxu0
        %v484 = vsel %vm193, %v478, -inf
        %485 = vmax.xlane.f32.xlu0 %v484
        %v486 = vpop.xlane.xlu0 %485
        %v487 = vsel %vm197, %v481, -inf
        %488 = vmax.xlane.f32.xlu0 %v487
        %v489 = vpop.xlane.xlu0 %488
        %v490 = vsub.f32 %v478, %v486
        %v491 = vsub.f32 %v481, %v489
        %v492 = vmul.f32 %v490, 1.442695
        %v493 = vpow.pop %v492
        %v494 = vmul.f32 %v491, 1.442695
        %v495 = vpow.pop %v494
        %v496 = vsel %vm193, %v493, 0.0
        %497 = vadd.xlane.f32.xlu0 %v496
        %v498 = vpop.xlane.xlu0 %497
        %v499 = vsel %vm197, %v495, 0.0
        %500 = vadd.xlane.f32.xlu0 %v499
        %v501 = vpop.xlane.xlu0 %500
        %v502 = vpack.c.bf16 %v495, %v493
        %503 = vrot.lane.b32.xlu0 %v432, 48
        %v504 = vpop.permute.xlu0 %503
        %v506 = vsel %vm193, %v502, 0
        %v509 = vsel %vm219, %v504, 0
        %511 = vmatprep.subr.bf16.mxu0 0
        %512 = vmatpush1.bf16.msra.mxu0 %v509
        %513 = vmatprep.subr.bf16.mxu0 0
        %514 = vmatpush1.bf16.msra.mxu0 0
        %515 = vmatprep.subr.bf16.mxu0 0
        %516 = vmatpush1.bf16.msra.mxu0 0
        %517 = vmatprep.subr.bf16.mxu0 0
        %518 = vmatpush1.bf16.msra.mxu0 0
        %519 = vmatprep.subr.bf16.mxu0 0
        %520 = vmatpush1.bf16.msra.mxu0 0
        %521 = vmatprep.subr.bf16.mxu0 0
        %522 = vmatpush1.bf16.msra.mxu0 0
        %523 = vmatprep.subr.bf16.mxu0 0
        %524 = vmatpush1.bf16.msra.mxu0 0
        %525 = vmatprep.subr.bf16.mxu0 0
        %526 = vmatpush1.bf16.msra.mxu0 0
        %527 = vmatprep.subr.bf16.mxu0 0
        %528 = vmatpush1.bf16.msra.mxu0 0
        %529 = vmatprep.subr.bf16.mxu0 0
        %530 = vmatpush1.bf16.msra.mxu0 0
        %531 = vmatprep.subr.bf16.mxu0 0
        %532 = vmatpush1.bf16.msra.mxu0 0
        %533 = vmatprep.subr.bf16.mxu0 0
        %534 = vmatpush1.bf16.msra.mxu0 0
        %535 = vmatprep.subr.bf16.mxu0 0
        %536 = vmatpush1.bf16.msra.mxu0 0
        %537 = vmatprep.subr.bf16.mxu0 0
        %538 = vmatpush1.bf16.msra.mxu0 0
        %539 = vmatprep.subr.bf16.mxu0 0
        %540 = vmatpush1.bf16.msra.mxu0 0
        %541 = vmatprep.subr.bf16.mxu0 0
        %542 = vmatpush1.bf16.msra.mxu0 0
        %543 = vmatprep.mubr.bf16.mxu0 0
        %544 = vmatmul.mubr.bf16.gmra.mrb[0].mxu0 %v506
        %v545 = vpop.f32.mrb[0].mxu0
        %v546 = vadd.f32 0.0, %v545
        %v547 = vpop.f32.mrb[0].mxu0
        %v548 = vpop.f32.mrb[0].mxu0
        %v549 = vadd.f32 0.0, %v548
        %v550 = vpop.f32.mrb[0].mxu0
        %551 = vdwg.mxu0
        %v552 = vrcp.pop %v498
        %v553 = vrcp.pop %v501
        %v554 = vmul.f32 %v546, %v552
        %v555 = vmul.f32 %v549, %v553
        %v556 = vpack.c.bf16 %v555, %v554
        %v558 = vunpack.c.l.b16 %v556
        %v559 = vunpack.c.h.b16 %v556
        %v560 = vpack.c.b16 %v558, %v558
        %v561 = vpack.c.b16 %v559, %v559
        %562 = vrot.lane.b32.xlu0 %v560, 16
        %v563 = vpop.permute.xlu0 %562
        %564 = vrot.lane.b32.xlu0 %v561, 16
        %v565 = vpop.permute.xlu0 %564
        %vm568 = vcmask 191616
        %569 = vst.msk [vmem:[%s134] sm:$0xf] %vm568, %v563
        %vm570 = vcmask 189568
        %571 = vst.msk [vmem:[%s134 + $0x4] sm:$0x3] %vm570, %v565
        %v572 = vld [vmem:[%s116] sm:$0xf]
        %v573 = vld [vmem:[%s116 + $0x4] sm:$0x3]
        %v576 = vunpack.c.l.b16 %v572
        %v577 = vunpack.c.l.b16 %v573
        %v578 = vpack.c.b16 %v577, %v576
        %579 = vrot.lane.b32.xlu0 %v578, 104
        %v580 = vpop.permute.xlu0 %579
        %581 = vrot.lane.b32.xlu0 %v578, 72
        %v582 = vpop.permute.xlu0 %581
        %v584 = vsel %vm145, %v580, 0
        %v587 = vsel %vm145, %v582, 0
        %589 = vmatprep.subr.bf16.mxu0 0
        %590 = vmatpush1.bf16.xpose.msra.mxu0 %v587
        %591 = vmatprep.subr.bf16.mxu0 0
        %592 = vmatpush1.bf16.xpose.msra.mxu0 0
        %593 = vmatprep.subr.bf16.mxu0 0
        %594 = vmatpush1.bf16.xpose.msra.mxu0 0
        %595 = vmatprep.subr.bf16.mxu0 0
        %596 = vmatpush1.bf16.xpose.msra.mxu0 0
        %597 = vmatprep.subr.bf16.mxu0 0
        %598 = vmatpush1.bf16.xpose.msra.mxu0 0
        %599 = vmatprep.subr.bf16.mxu0 0
        %600 = vmatpush1.bf16.xpose.msra.mxu0 0
        %601 = vmatprep.subr.bf16.mxu0 0
        %602 = vmatpush1.bf16.xpose.msra.mxu0 0
        %603 = vmatprep.subr.bf16.mxu0 0
        %604 = vmatpush1.bf16.xpose.msra.mxu0 0
        %605 = vmatprep.subr.bf16.mxu0 0
        %606 = vmatpush1.bf16.xpose.msra.mxu0 0
        %607 = vmatprep.subr.bf16.mxu0 0
        %608 = vmatpush1.bf16.xpose.msra.mxu0 0
        %609 = vmatprep.subr.bf16.mxu0 0
        %610 = vmatpush1.bf16.xpose.msra.mxu0 0
        %611 = vmatprep.subr.bf16.mxu0 0
        %612 = vmatpush1.bf16.xpose.msra.mxu0 0
        %613 = vmatprep.subr.bf16.mxu0 0
        %614 = vmatpush1.bf16.xpose.msra.mxu0 0
        %615 = vmatprep.subr.bf16.mxu0 0
        %616 = vmatpush1.bf16.xpose.msra.mxu0 0
        %617 = vmatprep.subr.bf16.mxu0 0
        %618 = vmatpush1.bf16.xpose.msra.mxu0 0
        %619 = vmatprep.subr.bf16.mxu0 0
        %620 = vmatpush1.bf16.xpose.msra.mxu0 0
        %621 = vmatprep.mubr.bf16.mxu0 0
        %622 = vmatmul.mubr.bf16.gmra.mrb[0].mxu0 %v584
        %v623 = vpop.f32.mrb[0].mxu0
        %v624 = vadd.f32 0.0, %v623
        %v625 = vpop.f32.mrb[0].mxu0
        %v626 = vpop.f32.mrb[0].mxu0
        %v627 = vadd.f32 0.0, %v626
        %v628 = vpop.f32.mrb[0].mxu0
        %629 = vdwg.mxu0
        %v630 = vsel %vm193, %v624, -inf
        %631 = vmax.xlane.f32.xlu0 %v630
        %v632 = vpop.xlane.xlu0 %631
        %v633 = vsel %vm197, %v627, -inf
        %634 = vmax.xlane.f32.xlu0 %v633
        %v635 = vpop.xlane.xlu0 %634
        %v636 = vsub.f32 %v624, %v632
        %v637 = vsub.f32 %v627, %v635
        %v638 = vmul.f32 %v636, 1.442695
        %v639 = vpow.pop %v638
        %v640 = vmul.f32 %v637, 1.442695
        %v641 = vpow.pop %v640
        %v642 = vsel %vm193, %v639, 0.0
        %643 = vadd.xlane.f32.xlu0 %v642
        %v644 = vpop.xlane.xlu0 %643
        %v645 = vsel %vm197, %v641, 0.0
        %646 = vadd.xlane.f32.xlu0 %v645
        %v647 = vpop.xlane.xlu0 %646
        %v648 = vpack.c.bf16 %v641, %v639
        %649 = vrot.lane.b32.xlu0 %v578, 40
        %v650 = vpop.permute.xlu0 %649
        %v652 = vsel %vm193, %v648, 0
        %v655 = vsel %vm219, %v650, 0
        %657 = vmatprep.subr.bf16.mxu0 0
        %658 = vmatpush1.bf16.msra.mxu0 %v655
        %659 = vmatprep.subr.bf16.mxu0 0
        %660 = vmatpush1.bf16.msra.mxu0 0
        %661 = vmatprep.subr.bf16.mxu0 0
        %662 = vmatpush1.bf16.msra.mxu0 0
        %663 = vmatprep.subr.bf16.mxu0 0
        %664 = vmatpush1.bf16.msra.mxu0 0
        %665 = vmatprep.subr.bf16.mxu0 0
        %666 = vmatpush1.bf16.msra.mxu0 0
        %667 = vmatprep.subr.bf16.mxu0 0
        %668 = vmatpush1.bf16.msra.mxu0 0
        %669 = vmatprep.subr.bf16.mxu0 0
        %670 = vmatpush1.bf16.msra.mxu0 0
        %671 = vmatprep.subr.bf16.mxu0 0
        %672 = vmatpush1.bf16.msra.mxu0 0
        %673 = vmatprep.subr.bf16.mxu0 0
        %674 = vmatpush1.bf16.msra.mxu0 0
        %675 = vmatprep.subr.bf16.mxu0 0
        %676 = vmatpush1.bf16.msra.mxu0 0
        %677 = vmatprep.subr.bf16.mxu0 0
        %678 = vmatpush1.bf16.msra.mxu0 0
        %679 = vmatprep.subr.bf16.mxu0 0
        %680 = vmatpush1.bf16.msra.mxu0 0
        %681 = vmatprep.subr.bf16.mxu0 0
        %682 = vmatpush1.bf16.msra.mxu0 0
        %683 = vmatprep.subr.bf16.mxu0 0
        %684 = vmatpush1.bf16.msra.mxu0 0
        %685 = vmatprep.subr.bf16.mxu0 0
        %686 = vmatpush1.bf16.msra.mxu0 0
        %687 = vmatprep.subr.bf16.mxu0 0
        %688 = vmatpush1.bf16.msra.mxu0 0
        %689 = vmatprep.mubr.bf16.mxu0 0
        %690 = vmatmul.mubr.bf16.gmra.mrb[0].mxu0 %v652
        %v691 = vpop.f32.mrb[0].mxu0
        %v692 = vadd.f32 0.0, %v691
        %v693 = vpop.f32.mrb[0].mxu0
        %v694 = vpop.f32.mrb[0].mxu0
        %v695 = vadd.f32 0.0, %v694
        %v696 = vpop.f32.mrb[0].mxu0
        %697 = vdwg.mxu0
        %v698 = vrcp.pop %v644
        %v699 = vrcp.pop %v647
        %v700 = vmul.f32 %v692, %v698
        %v701 = vmul.f32 %v695, %v699
        %v702 = vpack.c.bf16 %v701, %v700
        %v704 = vunpack.c.l.b16 %v702
        %v705 = vunpack.c.h.b16 %v702
        %v706 = vpack.c.b16 %v704, %v704
        %v707 = vpack.c.b16 %v705, %v705
        %708 = vrot.lane.b32.xlu0 %v706, 24
        %v709 = vpop.permute.xlu0 %708
        %710 = vrot.lane.b32.xlu0 %v707, 24
        %v711 = vpop.permute.xlu0 %710
        %vm714 = vcmask 257216
        %715 = vst.msk [vmem:[%s134] sm:$0xf] %vm714, %v709
        %vm716 = vcmask 255168
        %717 = vst.msk [vmem:[%s134 + $0x4] sm:$0x3] %vm716, %v711
        %s718 = sand.u32 %s52, 1
        %s719 = scalar_lea.sflag [#allocation4], %s718
        %s720 = sand.u32 %s52, 1
        %s721 = smul.addr %s720, 8
        %s722 = scalar_lea.vmem [#allocation5], %s721
        // Predicated region
        $region29: #{vision_encoder_forward.20} parent=23 // pred_check
          %p723 = pneg %p62
        $region30: #{vision_encoder_forward.20} parent=23 // pred_check_branch
          %725 = sbr.rel (%p723) target = $region32
        $region31: #{vision_encoder_forward.20} parent=23 // pred_region
          %s727 = ssub.s32 128, 128
          %728 = vsyncadd %s719, %s727
          %s729 = smul.addr %s18, 2
          %s730 = smul.addr %s729, 64
          %s731 = scalar_lea.hbm %s1, %s730
          %s732 = sshll.u32 %s722, 4
          %s733 = int_to_ptr.vmem [resolvable:$true] %s732
          %738 = dma.vmem_to_hbm [thread:$0]  %s733, 128, %s731, %s719, 64, 64, 4
        $region32: #{vision_encoder_forward.20} parent=23 // pred_fallthru
          _
      $region24: #{vision_encoder_forward.20} parent=5 // pred_fallthru
        _
      %p739 = scmp.le.s32.totalorder 2, %s13
      // Predicated region
      $region33: #{vision_encoder_forward.20} parent=5 // pred_check
        %p740 = pneg %p739
      $region34: #{vision_encoder_forward.20} parent=5 // pred_check_branch
        %742 = sbr.rel (%p740) target = $region36
      $region35: #{vision_encoder_forward.20} parent=5 // pred_region
        %s743 = ssub.s32 %s13, 2
        // Predicated region
        $region37: #{vision_encoder_forward.20} parent=35 // pred_check
          %p744 = pneg %p68
        $region38: #{vision_encoder_forward.20} parent=35 // pred_check_branch
          %746 = sbr.rel (%p744) target = $region40
        $region39: #{vision_encoder_forward.20} parent=35 // pred_region
          %s747 = sand.u32 %s53, 1
          %s748 = scalar_lea.sflag [#allocation4], %s747
          %s749 = sand.u32 %s53, 1
          %s750 = smul.addr %s749, 8
          %s751 = scalar_lea.vmem [#allocation5], %s750
          %752 = dma.done %s748, 128
        $region40: #{vision_encoder_forward.20} parent=35 // pred_fallthru
          _
      $region36: #{vision_encoder_forward.20} parent=5 // pred_fallthru
        _
    $region6: #{vision_encoder_forward.20} parent=1 // loop_footer
      %s17 = sadd.s32 1, %s13
    $region7: #{vision_encoder_forward.20} parent=1 // loop_footer_branch
      %12 = sbr.rel target = $region3
    $region8: #{vision_encoder_forward.20} parent=1 // loop_exit
      _
    %753 = vsyncpa [#allocation3], 1
    %s754 = scalar_lea.sflag [#allocation3], 1
    %755 = vsyncpa %s754, 1
    %756 = vsyncpa [#allocation4], 1
    %s757 = scalar_lea.sflag [#allocation4], 1
    %758 = vsyncpa %s757, 1

// kernel: vision_encoder_forward.35
$region0: #{vision_encoder_forward.35}
  #allocation0 [shape = 'u32[]', space=smem, size = 0x4, offset = 0x4, fixed_abs, tag = 'smem constant byte address 0x4 - core index']
  #allocation1 [shape = 'u32[144,128]{1,0:T(1,128)}', space=vmem, size = 0x12000, scoped, tag = 'internal scratch']
  #allocation2 [shape = 'bf16[2,32]{1,0:T(2,128)(2,1)}', space=vmem, size = 0x200, scoped, tag = 'scratch operand']
  %s0 = inlined_call_operand.hbm [shape: bf16[2,32], index: 0, kind: input, shape index: {}]
  %s1 = inlined_call_operand.hbm [shape: f32[1,32], index: 1, kind: input, shape index: {}]
  %s2 = inlined_call_operand.hbm [shape: f32[1,32], index: 2, kind: input, shape index: {}]
  %s3 = inlined_call_operand.hbm [shape: bf16[32,16], index: 3, kind: input, shape index: {}]
  %s4 = inlined_call_operand.hbm [shape: f32[1,16], index: 4, kind: input, shape index: {}]
  %s5 = inlined_call_operand.hbm [shape: bf16[2,16], index: 5, kind: output, shape index: {}]
  %s6 = sld [smem:[#allocation0]]
  $region54: #{vision_encoder_forward.35} parent=0
    _
  %s8 = ssub.s32 1, %s6
  %s9 = scalar_select 0, %s8, %s6
  $region1: #{vision_encoder_forward.35} parent=0
    #allocation3 [shape = 'u8[512]{0}', space=vmem, size = 0x400, scoped, tag = 'input window, operand 0, single buffered']
    #allocation4 [shape = 's32[1]{0}', space=sflag, size = 0x4, scoped, tag = 'scoped memory for vision_encoder_forward.35']
    #allocation5 [shape = 's32[1]{0}', space=sflag, size = 0x4, scoped, tag = 'scoped memory for vision_encoder_forward.35']
    #allocation6 [shape = 'u8[512]{0}', space=vmem, size = 0x400, scoped, tag = 'input window, operand 1, single buffered']
    #allocation7 [shape = 's32[1]{0}', space=sflag, size = 0x4, scoped, tag = 'scoped memory for vision_encoder_forward.35']
    #allocation8 [shape = 'u8[512]{0}', space=vmem, size = 0x400, scoped, tag = 'input window, operand 2, single buffered']
    #allocation9 [shape = 'u8[8192]{0}', space=vmem, size = 0x2000, scoped, tag = 'input window, operand 3, single buffered']
    #allocation10 [shape = 's32[1]{0}', space=sflag, size = 0x4, scoped, tag = 'scoped memory for vision_encoder_forward.35']
    #allocation11 [shape = 'u8[512]{0}', space=vmem, size = 0x400, scoped, tag = 'input window, operand 4, single buffered']
    #allocation12 [shape = 'u8[512]{0}', space=vmem, size = 0x400, scoped, tag = 'output window, operand 0, single buffered']
    %10 = vsyncpa [#allocation4], 0
    %11 = vsyncpa [#allocation7], 0
    %12 = vsyncpa [#allocation10], 0
    %13 = vsyncpa [#allocation5], 0
    // Predicated region
    $region2: #{vision_encoder_forward.35} parent=1 // pred_check
      _
    $region3: #{vision_encoder_forward.35} parent=1 // pred_check_branch
      %15 = sbr.rel (0) target = $region5
    $region4: #{vision_encoder_forward.35} parent=1 // pred_region
      %s17 = ssub.s32 16, 16
      %18 = vsyncadd [#allocation4], %s17
      %s20 = sshll.u32 [#allocation3], 4
      %s21 = int_to_ptr.vmem [resolvable:$true] %s20
      %23 = dma.hbm_to_vmem [thread:$0]  %s0, 16, %s21, [#allocation4]
    $region5: #{vision_encoder_forward.35} parent=1 // pred_fallthru
      _
    // Predicated region
    $region6: #{vision_encoder_forward.35} parent=1 // pred_check
      _
    $region7: #{vision_encoder_forward.35} parent=1 // pred_check_branch
      %25 = sbr.rel (0) target = $region9
    $region8: #{vision_encoder_forward.35} parent=1 // pred_region
      %s27 = ssub.s32 16, 16
      %28 = vsyncadd [#allocation7], %s27
      %s30 = sshll.u32 [#allocation6], 4
      %s31 = int_to_ptr.vmem [resolvable:$true] %s30
      %33 = dma.hbm_to_vmem [thread:$0]  %s1, 16, %s31, [#allocation7]
    $region9: #{vision_encoder_forward.35} parent=1 // pred_fallthru
      _
    // Predicated region
    $region10: #{vision_encoder_forward.35} parent=1 // pred_check
      _
    $region11: #{vision_encoder_forward.35} parent=1 // pred_check_branch
      %35 = sbr.rel (0) target = $region13
    $region12: #{vision_encoder_forward.35} parent=1 // pred_region
      %s37 = ssub.s32 16, 16
      %38 = vsyncadd [#allocation7], %s37
      %s40 = sshll.u32 [#allocation8], 4
      %s41 = int_to_ptr.vmem [resolvable:$true] %s40
      %43 = dma.hbm_to_vmem [thread:$0]  %s2, 16, %s41, [#allocation7]
    $region13: #{vision_encoder_forward.35} parent=1 // pred_fallthru
      _
    // Predicated region
    $region14: #{vision_encoder_forward.35} parent=1 // pred_check
      _
    $region15: #{vision_encoder_forward.35} parent=1 // pred_check_branch
      %45 = sbr.rel (0) target = $region17
    $region16: #{vision_encoder_forward.35} parent=1 // pred_region
      %s47 = ssub.s32 256, 256
      %48 = vsyncadd [#allocation10], %s47
      %s49 = sshll.u32 [#allocation9], 4
      %s50 = int_to_ptr.vmem [resolvable:$true] %s49
      %55 = dma.hbm_to_vmem [thread:$0]  %s3, 256, %s50, [#allocation10], 64, 64, 4
    $region17: #{vision_encoder_forward.35} parent=1 // pred_fallthru
      _
    // Predicated region
    $region18: #{vision_encoder_forward.35} parent=1 // pred_check
      _
    $region19: #{vision_encoder_forward.35} parent=1 // pred_check_branch
      %57 = sbr.rel (0) target = $region21
    $region20: #{vision_encoder_forward.35} parent=1 // pred_region
      %s59 = ssub.s32 16, 16
      %60 = vsyncadd [#allocation10], %s59
      %s62 = sshll.u32 [#allocation11], 4
      %s63 = int_to_ptr.vmem [resolvable:$true] %s62
      %65 = dma.hbm_to_vmem [thread:$0]  %s4, 16, %s63, [#allocation10]
    $region21: #{vision_encoder_forward.35} parent=1 // pred_fallthru
      _
    // Predicated region
    $region22: #{vision_encoder_forward.35} parent=1 // pred_check
      _
    $region23: #{vision_encoder_forward.35} parent=1 // pred_check_branch
      %67 = sbr.rel (0) target = $region25
    $region24: #{vision_encoder_forward.35} parent=1 // pred_region
      %68 = dma.done [#allocation4], 16
    $region25: #{vision_encoder_forward.35} parent=1 // pred_fallthru
      _
    // Predicated region
    $region26: #{vision_encoder_forward.35} parent=1 // pred_check
      _
    $region27: #{vision_encoder_forward.35} parent=1 // pred_check_branch
      %70 = sbr.rel (0) target = $region29
    $region28: #{vision_encoder_forward.35} parent=1 // pred_region
      %71 = dma.done [#allocation7], 16
    $region29: #{vision_encoder_forward.35} parent=1 // pred_fallthru
      _
    // Predicated region
    $region30: #{vision_encoder_forward.35} parent=1 // pred_check
      _
    $region31: #{vision_encoder_forward.35} parent=1 // pred_check_branch
      %73 = sbr.rel (0) target = $region33
    $region32: #{vision_encoder_forward.35} parent=1 // pred_region
      %74 = dma.done [#allocation7], 16
    $region33: #{vision_encoder_forward.35} parent=1 // pred_fallthru
      _
    // Predicated region
    $region34: #{vision_encoder_forward.35} parent=1 // pred_check
      _
    $region35: #{vision_encoder_forward.35} parent=1 // pred_check_branch
      %76 = sbr.rel (0) target = $region37
    $region36: #{vision_encoder_forward.35} parent=1 // pred_region
      %77 = dma.done [#allocation10], 256
    $region37: #{vision_encoder_forward.35} parent=1 // pred_fallthru
      _
    // Predicated region
    $region38: #{vision_encoder_forward.35} parent=1 // pred_check
      _
    $region39: #{vision_encoder_forward.35} parent=1 // pred_check_branch
      %79 = sbr.rel (0) target = $region41
    $region40: #{vision_encoder_forward.35} parent=1 // pred_region
      %80 = dma.done [#allocation10], 16
    $region41: #{vision_encoder_forward.35} parent=1 // pred_fallthru
      _
    %p82 = scmp.eq.s32.totalorder 0, 0
    // Predicated region
    $region42: #{vision_encoder_forward.35} parent=1 // pred_check
      %p83 = pneg %p82
    $region43: #{vision_encoder_forward.35} parent=1 // pred_check_branch
      %85 = sbr.rel (%p83) target = $region45
    $region44: #{vision_encoder_forward.35} parent=1 // pred_region
      %v86 = vld [vmem:[#allocation3] sm:$0x1]
      %v87 = vunpack.c.l.bf16 %v86
      %vm88 = vcmask 254976
      %v89 = vsel %vm88, %v87, 0.0
      %90 = vadd.xlane.f32.xlu0 %v89
      %v91 = vpop.xlane.xlu0 %90
      %v92 = vrcp.pop 32.0
      %v93 = vmul.f32 %v91, %v92
      %v94 = vsub.f32 %v87, %v93
      %v95 = vmul.f32 %v94, %v94
      %v96 = vsel %vm88, %v95, 0.0
      %97 = vadd.xlane.f32.xlu0 %v96
      %v98 = vpop.xlane.xlu0 %97
      %v99 = vmul.f32 %v98, %v92
      %v100 = vadd.f32 %v99, 1e-05
      %v101 = vrsqrt.pop %v100
      %v102 = vmul.f32 %v94, %v101
      %v103 = vld [vmem:[#allocation6] sm:$0x1]
      %v105 = vlaneseq
      %v106 = vshrl.u32 %v105, 7
      %v107 = vsub.s32 0, %v106
      %v108 = vrot.slane %v103, %v107
      %v110 = vmul.f32 %v102, %v108
      %v111 = vld [vmem:[#allocation8] sm:$0x1]
      %v113 = vlaneseq
      %v114 = vshrl.u32 %v113, 7
      %v115 = vsub.s32 0, %v114
      %v116 = vrot.slane %v111, %v115
      %v118 = vadd.f32 %v110, %v116
      %v119 = vpack.c.bf16 %v118, %v118
      %vm120 = vcmask 253952
      %121 = vst.msk [vmem:[#allocation2] sm:$0x1] %vm120, %v119
    $region45: #{vision_encoder_forward.35} parent=1 // pred_fallthru
      _
    %v122 = vld [vmem:[#allocation2] sm:$0x1]
    %v123 = vld [vmem:[#allocation9] sm:$0xf]
    %v124 = vld [vmem:[#allocation9 + $0x4] sm:$0xf]
    %v125 = vld [vmem:[#allocation9 + $0x8] sm:$0xf]
    %v126 = vld [vmem:[#allocation9 + $0xc] sm:$0xf]
    %v127 = vld [vmem:[#allocation11] sm:$0x1]
    %v129 = vlaneseq
    %v130 = vshrl.u32 %v129, 7
    %v131 = vsub.s32 0, %v130
    %v132 = vrot.slane %v127, %v131
    %v138 = vunpack.c.l.b16 %v123
    %v139 = vunpack.c.l.b16 %v124
    %v140 = vunpack.c.l.b16 %v125
    %v141 = vunpack.c.l.b16 %v126
    %v142 = vpack.c.b16 %v139, %v138
    %v143 = vpack.c.b16 %v141, %v140
    %vm146 = vcmask 261120
    %v148 = vsel %vm146, %v122, 0
    %150 = vmatprep.subr.bf16.mxu0 0
    %151 = vmatpush1.bf16.msra.mxu0 %v142
    %152 = vmatprep.subr.bf16.mxu0 0
    %153 = vmatpush1.bf16.msra.mxu0 %v143
    %154 = vmatprep.subr.bf16.mxu0 0
    %155 = vmatpush1.bf16.msra.mxu0 0
    %156 = vmatprep.subr.bf16.mxu0 0
    %157 = vmatpush1.bf16.msra.mxu0 0
    %158 = vmatprep.subr.bf16.mxu0 0
    %159 = vmatpush1.bf16.msra.mxu0 0
    %160 = vmatprep.subr.bf16.mxu0 0
    %161 = vmatpush1.bf16.msra.mxu0 0
    %162 = vmatprep.subr.bf16.mxu0 0
    %163 = vmatpush1.bf16.msra.mxu0 0
    %164 = vmatprep.subr.bf16.mxu0 0
    %165 = vmatpush1.bf16.msra.mxu0 0
    %166 = vmatprep.subr.bf16.mxu0 0
    %167 = vmatpush1.bf16.msra.mxu0 0
    %168 = vmatprep.subr.bf16.mxu0 0
    %169 = vmatpush1.bf16.msra.mxu0 0
    %170 = vmatprep.subr.bf16.mxu0 0
    %171 = vmatpush1.bf16.msra.mxu0 0
    %172 = vmatprep.subr.bf16.mxu0 0
    %173 = vmatpush1.bf16.msra.mxu0 0
    %174 = vmatprep.subr.bf16.mxu0 0
    %175 = vmatpush1.bf16.msra.mxu0 0
    %176 = vmatprep.subr.bf16.mxu0 0
    %177 = vmatpush1.bf16.msra.mxu0 0
    %178 = vmatprep.subr.bf16.mxu0 0
    %179 = vmatpush1.bf16.msra.mxu0 0
    %180 = vmatprep.subr.bf16.mxu0 0
    %181 = vmatpush1.bf16.msra.mxu0 0
    %182 = vmatprep.mubr.bf16.mxu0 0
    %183 = vmatmul.mubr.bf16.gmra.mrb[0].mxu0 %v148
    %v184 = vpop.f32.mrb[0].mxu0
    %v185 = vadd.f32 %v132, %v184
    %v186 = vpop.f32.mrb[0].mxu0
    %v187 = vpop.f32.mrb[0].mxu0
    %v188 = vpop.f32.mrb[0].mxu0
    %189 = vdwg.mxu0
    %v190 = vpack.c.bf16 %v185, %v185
    %vm191 = vcmask 122880
    %192 = vst.msk [vmem:[#allocation12] sm:$0x1] %vm191, %v190
    // Predicated region
    $region46: #{vision_encoder_forward.35} parent=1 // pred_check
      _
    $region47: #{vision_encoder_forward.35} parent=1 // pred_check_branch
      %194 = sbr.rel (0) target = $region49
    $region48: #{vision_encoder_forward.35} parent=1 // pred_region
      %s196 = ssub.s32 16, 16
      %197 = vsyncadd [#allocation5], %s196
      %s199 = sshll.u32 [#allocation12], 4
      %s200 = int_to_ptr.vmem [resolvable:$true] %s199
      %202 = dma.vmem_to_hbm [thread:$0]  %s200, 16, %s5, [#allocation5]
    $region49: #{vision_encoder_forward.35} parent=1 // pred_fallthru
      _
    // Predicated region
    $region50: #{vision_encoder_forward.35} parent=1 // pred_check
      _
    $region51: #{vision_encoder_forward.35} parent=1 // pred_check_branch
      %204 = sbr.rel (0) target = $region53
    $region52: #{vision_encoder_forward.35} parent=1 // pred_region
      %205 = dma.done [#allocation5], 16
    $region53: #{vision_encoder_forward.35} parent=1 // pred_fallthru
      _
    %206 = vsyncpa [#allocation4], 1
    %207 = vsyncpa [#allocation7], 1
    %208 = vsyncpa [#allocation10], 1
    %209 = vsyncpa [#allocation5], 1

// kernel: vision_encoder_forward.22
$region0: #{vision_encoder_forward.22}
  #allocation0 [shape = 'u32[]', space=smem, size = 0x4, offset = 0x4, fixed_abs, tag = 'smem constant byte address 0x4 - core index']
  #allocation1 [shape = 'u32[144,128]{1,0:T(1,128)}', space=vmem, size = 0x12000, scoped, tag = 'internal scratch']
  #allocation2 [shape = 'bf16[24,32]{1,0:T(8,128)(2,1)}', space=vmem, size = 0x1800, scoped, tag = 'scratch operand']
  #allocation3 [shape = 'f32[24,32]{1,0:T(8,128)}', space=vmem, size = 0x3000, scoped, tag = 'scratch operand']
  %s0 = inlined_call_operand.hbm [shape: bf16[24,32], index: 0, kind: input, shape index: {}]
  %s1 = inlined_call_operand.hbm [shape: f32[1,32], index: 1, kind: input, shape index: {}]
  %s2 = inlined_call_operand.hbm [shape: f32[1,32], index: 2, kind: input, shape index: {}]
  %s3 = inlined_call_operand.hbm [shape: bf16[32,128], index: 3, kind: input, shape index: {}]
  %s4 = inlined_call_operand.hbm [shape: f32[1,128], index: 4, kind: input, shape index: {}]
  %s5 = inlined_call_operand.hbm [shape: bf16[128,32], index: 5, kind: input, shape index: {}]
  %s6 = inlined_call_operand.hbm [shape: f32[1,32], index: 6, kind: input, shape index: {}]
  %s7 = inlined_call_operand.hbm [shape: bf16[24,32], index: 7, kind: output, shape index: {}]
  %s8 = sld [smem:[#allocation0]]
  $region74: #{vision_encoder_forward.22} parent=0
    _
  %s10 = ssub.s32 1, %s8
  %s11 = scalar_select 0, %s10, %s8
  $region1: #{vision_encoder_forward.22} parent=0
    #allocation4 [shape = 'u8[6144]{0}', space=vmem, size = 0x1800, scoped, tag = 'input window, operand 0, single buffered']
    #allocation5 [shape = 's32[1]{0}', space=sflag, size = 0x4, scoped, tag = 'scoped memory for vision_encoder_forward.22']
    #allocation6 [shape = 's32[1]{0}', space=sflag, size = 0x4, scoped, tag = 'scoped memory for vision_encoder_forward.22']
    #allocation7 [shape = 'u8[512]{0}', space=vmem, size = 0x400, scoped, tag = 'input window, operand 1, single buffered']
    #allocation8 [shape = 's32[1]{0}', space=sflag, size = 0x4, scoped, tag = 'scoped memory for vision_encoder_forward.22']
    #allocation9 [shape = 'u8[512]{0}', space=vmem, size = 0x400, scoped, tag = 'input window, operand 2, single buffered']
    #allocation10 [shape = 'u8[8192]{0}', space=vmem, size = 0x2000, scoped, tag = 'input window, operand 3, single buffered']
    #allocation11 [shape = 's32[1]{0}', space=sflag, size = 0x4, scoped, tag = 'scoped memory for vision_encoder_forward.22']
    #allocation12 [shape = 'u8[512]{0}', space=vmem, size = 0x400, scoped, tag = 'input window, operand 4, single buffered']
    #allocation13 [shape = 'u8[32768]{0}', space=vmem, size = 0x8000, scoped, tag = 'input window, operand 5, single buffered']
    #allocation14 [shape = 's32[1]{0}', space=sflag, size = 0x4, scoped, tag = 'scoped memory for vision_encoder_forward.22']
    #allocation15 [shape = 'u8[512]{0}', space=vmem, size = 0x400, scoped, tag = 'input window, operand 6, single buffered']
    #allocation16 [shape = 'u8[6144]{0}', space=vmem, size = 0x1800, scoped, tag = 'output window, operand 0, single buffered']
    %12 = vsyncpa [#allocation5], 0
    %13 = vsyncpa [#allocation8], 0
    %14 = vsyncpa [#allocation11], 0
    %15 = vsyncpa [#allocation14], 0
    %16 = vsyncpa [#allocation6], 0
    // Predicated region
    $region2: #{vision_encoder_forward.22} parent=1 // pred_check
      _
    $region3: #{vision_encoder_forward.22} parent=1 // pred_check_branch
      %18 = sbr.rel (0) target = $region5
    $region4: #{vision_encoder_forward.22} parent=1 // pred_region
      %s20 = ssub.s32 192, 192
      %21 = vsyncadd [#allocation5], %s20
      %s22 = sshll.u32 [#allocation4], 4
      %s23 = int_to_ptr.vmem [resolvable:$true] %s22
      %28 = dma.hbm_to_vmem [thread:$0]  %s0, 192, %s23, [#allocation5], 64, 64, 4
    $region5: #{vision_encoder_forward.22} parent=1 // pred_fallthru
      _
    // Predicated region
    $region6: #{vision_encoder_forward.22} parent=1 // pred_check
      _
    $region7: #{vision_encoder_forward.22} parent=1 // pred_check_branch
      %30 = sbr.rel (0) target = $region9
    $region8: #{vision_encoder_forward.22} parent=1 // pred_region
      %s32 = ssub.s32 16, 16
      %33 = vsyncadd [#allocation8], %s32
      %s35 = sshll.u32 [#allocation7], 4
      %s36 = int_to_ptr.vmem [resolvable:$true] %s35
      %38 = dma.hbm_to_vmem [thread:$0]  %s1, 16, %s36, [#allocation8]
    $region9: #{vision_encoder_forward.22} parent=1 // pred_fallthru
      _
    // Predicated region
    $region10: #{vision_encoder_forward.22} parent=1 // pred_check
      _
    $region11: #{vision_encoder_forward.22} parent=1 // pred_check_branch
      %40 = sbr.rel (0) target = $region13
    $region12: #{vision_encoder_forward.22} parent=1 // pred_region
      %s42 = ssub.s32 16, 16
      %43 = vsyncadd [#allocation8], %s42
      %s45 = sshll.u32 [#allocation9], 4
      %s46 = int_to_ptr.vmem [resolvable:$true] %s45
      %48 = dma.hbm_to_vmem [thread:$0]  %s2, 16, %s46, [#allocation8]
    $region13: #{vision_encoder_forward.22} parent=1 // pred_fallthru
      _
    // Predicated region
    $region14: #{vision_encoder_forward.22} parent=1 // pred_check
      _
    $region15: #{vision_encoder_forward.22} parent=1 // pred_check_branch
      %50 = sbr.rel (0) target = $region17
    $region16: #{vision_encoder_forward.22} parent=1 // pred_region
      %s52 = ssub.s32 256, 256
      %53 = vsyncadd [#allocation11], %s52
      %s54 = sshll.u32 [#allocation10], 4
      %s55 = int_to_ptr.vmem [resolvable:$true] %s54
      %60 = dma.hbm_to_vmem [thread:$0]  %s3, 256, %s55, [#allocation11], 64, 64, 4
    $region17: #{vision_encoder_forward.22} parent=1 // pred_fallthru
      _
    // Predicated region
    $region18: #{vision_encoder_forward.22} parent=1 // pred_check
      _
    $region19: #{vision_encoder_forward.22} parent=1 // pred_check_branch
      %62 = sbr.rel (0) target = $region21
    $region20: #{vision_encoder_forward.22} parent=1 // pred_region
      %s64 = ssub.s32 16, 16
      %65 = vsyncadd [#allocation11], %s64
      %s67 = sshll.u32 [#allocation12], 4
      %s68 = int_to_ptr.vmem [resolvable:$true] %s67
      %70 = dma.hbm_to_vmem [thread:$0]  %s4, 16, %s68, [#allocation11]
    $region21: #{vision_encoder_forward.22} parent=1 // pred_fallthru
      _
    // Predicated region
    $region22: #{vision_encoder_forward.22} parent=1 // pred_check
      _
    $region23: #{vision_encoder_forward.22} parent=1 // pred_check_branch
      %72 = sbr.rel (0) target = $region25
    $region24: #{vision_encoder_forward.22} parent=1 // pred_region
      %s74 = ssub.s32 1024, 1024
      %75 = vsyncadd [#allocation14], %s74
      %s76 = sshll.u32 [#allocation13], 4
      %s77 = int_to_ptr.vmem [resolvable:$true] %s76
      %82 = dma.hbm_to_vmem [thread:$0]  %s5, 1024, %s77, [#allocation14], 64, 64, 4
    $region25: #{vision_encoder_forward.22} parent=1 // pred_fallthru
      _
    // Predicated region
    $region26: #{vision_encoder_forward.22} parent=1 // pred_check
      _
    $region27: #{vision_encoder_forward.22} parent=1 // pred_check_branch
      %84 = sbr.rel (0) target = $region29
    $region28: #{vision_encoder_forward.22} parent=1 // pred_region
      %s86 = ssub.s32 16, 16
      %87 = vsyncadd [#allocation14], %s86
      %s89 = sshll.u32 [#allocation15], 4
      %s90 = int_to_ptr.vmem [resolvable:$true] %s89
      %92 = dma.hbm_to_vmem [thread:$0]  %s6, 16, %s90, [#allocation14]
    $region29: #{vision_encoder_forward.22} parent=1 // pred_fallthru
      _
    // Predicated region
    $region30: #{vision_encoder_forward.22} parent=1 // pred_check
      _
    $region31: #{vision_encoder_forward.22} parent=1 // pred_check_branch
      %94 = sbr.rel (0) target = $region33
    $region32: #{vision_encoder_forward.22} parent=1 // pred_region
      %95 = dma.done [#allocation5], 192
    $region33: #{vision_encoder_forward.22} parent=1 // pred_fallthru
      _
    // Predicated region
    $region34: #{vision_encoder_forward.22} parent=1 // pred_check
      _
    $region35: #{vision_encoder_forward.22} parent=1 // pred_check_branch
      %97 = sbr.rel (0) target = $region37
    $region36: #{vision_encoder_forward.22} parent=1 // pred_region
      %98 = dma.done [#allocation8], 16
    $region37: #{vision_encoder_forward.22} parent=1 // pred_fallthru
      _
    // Predicated region
    $region38: #{vision_encoder_forward.22} parent=1 // pred_check
      _
    $region39: #{vision_encoder_forward.22} parent=1 // pred_check_branch
      %100 = sbr.rel (0) target = $region41
    $region40: #{vision_encoder_forward.22} parent=1 // pred_region
      %101 = dma.done [#allocation8], 16
    $region41: #{vision_encoder_forward.22} parent=1 // pred_fallthru
      _
    // Predicated region
    $region42: #{vision_encoder_forward.22} parent=1 // pred_check
      _
    $region43: #{vision_encoder_forward.22} parent=1 // pred_check_branch
      %103 = sbr.rel (0) target = $region45
    $region44: #{vision_encoder_forward.22} parent=1 // pred_region
      %104 = dma.done [#allocation11], 256
    $region45: #{vision_encoder_forward.22} parent=1 // pred_fallthru
      _
    // Predicated region
    $region46: #{vision_encoder_forward.22} parent=1 // pred_check
      _
    $region47: #{vision_encoder_forward.22} parent=1 // pred_check_branch
      %106 = sbr.rel (0) target = $region49
    $region48: #{vision_encoder_forward.22} parent=1 // pred_region
      %107 = dma.done [#allocation11], 16
    $region49: #{vision_encoder_forward.22} parent=1 // pred_fallthru
      _
    // Predicated region
    $region50: #{vision_encoder_forward.22} parent=1 // pred_check
      _
    $region51: #{vision_encoder_forward.22} parent=1 // pred_check_branch
      %109 = sbr.rel (0) target = $region53
    $region52: #{vision_encoder_forward.22} parent=1 // pred_region
      %110 = dma.done [#allocation14], 1024
    $region53: #{vision_encoder_forward.22} parent=1 // pred_fallthru
      _
    // Predicated region
    $region54: #{vision_encoder_forward.22} parent=1 // pred_check
      _
    $region55: #{vision_encoder_forward.22} parent=1 // pred_check_branch
      %112 = sbr.rel (0) target = $region57
    $region56: #{vision_encoder_forward.22} parent=1 // pred_region
      %113 = dma.done [#allocation14], 16
    $region57: #{vision_encoder_forward.22} parent=1 // pred_fallthru
      _
    %p115 = scmp.eq.s32.totalorder 0, 0
    // Predicated region
    $region58: #{vision_encoder_forward.22} parent=1 // pred_check
      %p116 = pneg %p115
    $region59: #{vision_encoder_forward.22} parent=1 // pred_check_branch
      %118 = sbr.rel (%p116) target = $region61
    $region60: #{vision_encoder_forward.22} parent=1 // pred_region
      %v119 = vld [vmem:[#allocation4] sm:$0xf]
      %v120 = vld [vmem:[#allocation4 + $0x4] sm:$0xf]
      %v121 = vld [vmem:[#allocation4 + $0x8] sm:$0xf]
      %v122 = vunpack.c.l.bf16 %v119
      %v123 = vunpack.c.l.bf16 %v120
      %v124 = vunpack.c.l.bf16 %v121
      %vm125 = vcmask 261120
      %v126 = vsel %vm125, %v122, 0.0
      %127 = vadd.xlane.f32.xlu0 %v126
      %v128 = vpop.xlane.xlu0 %127
      %v129 = vsel %vm125, %v123, 0.0
      %130 = vadd.xlane.f32.xlu0 %v129
      %v131 = vpop.xlane.xlu0 %130
      %v132 = vsel %vm125, %v124, 0.0
      %133 = vadd.xlane.f32.xlu0 %v132
      %v134 = vpop.xlane.xlu0 %133
      %v135 = vrcp.pop 32.0
      %v136 = vmul.f32 %v128, %v135
      %v137 = vmul.f32 %v131, %v135
      %v138 = vmul.f32 %v134, %v135
      %v139 = vsub.f32 %v122, %v136
      %v140 = vsub.f32 %v123, %v137
      %v141 = vsub.f32 %v124, %v138
      %v142 = vmul.f32 %v139, %v139
      %v143 = vmul.f32 %v140, %v140
      %v144 = vmul.f32 %v141, %v141
      %v145 = vsel %vm125, %v142, 0.0
      %146 = vadd.xlane.f32.xlu0 %v145
      %v147 = vpop.xlane.xlu0 %146
      %v148 = vsel %vm125, %v143, 0.0
      %149 = vadd.xlane.f32.xlu0 %v148
      %v150 = vpop.xlane.xlu0 %149
      %v151 = vsel %vm125, %v144, 0.0
      %152 = vadd.xlane.f32.xlu0 %v151
      %v153 = vpop.xlane.xlu0 %152
      %v154 = vmul.f32 %v147, %v135
      %v155 = vmul.f32 %v150, %v135
      %v156 = vmul.f32 %v153, %v135
      %v157 = vadd.f32 %v154, 1e-05
      %v158 = vadd.f32 %v155, 1e-05
      %v159 = vadd.f32 %v156, 1e-05
      %v160 = vrsqrt.pop %v157
      %v161 = vrsqrt.pop %v158
      %v162 = vrsqrt.pop %v159
      %v163 = vmul.f32 %v139, %v160
      %v164 = vmul.f32 %v140, %v161
      %v165 = vmul.f32 %v141, %v162
      %v166 = vld [vmem:[#allocation7] sm:$0x1]
      %v168 = vlaneseq
      %v169 = vshrl.u32 %v168, 7
      %v170 = vsub.s32 0, %v169
      %v171 = vrot.slane %v166, %v170
      %v173 = vmul.f32 %v163, %v171
      %v174 = vmul.f32 %v164, %v171
      %v175 = vmul.f32 %v165, %v171
      %v176 = vld [vmem:[#allocation9] sm:$0x1]
      %v178 = vlaneseq
      %v179 = vshrl.u32 %v178, 7
      %v180 = vsub.s32 0, %v179
      %v181 = vrot.slane %v176, %v180
      %v183 = vadd.f32 %v173, %v181
      %v184 = vadd.f32 %v174, %v181
      %v185 = vadd.f32 %v175, %v181
      %v186 = vpack.c.bf16 %v184, %v183
      %v187 = vpack.c.bf16 %v185, %v185
      %v190 = vunpack.c.l.b16 %v186
      %v191 = vunpack.c.h.b16 %v186
      %v192 = vunpack.c.l.b16 %v187
      %v193 = vpack.c.b16 %v190, %v190
      %v194 = vpack.c.b16 %v191, %v191
      %v195 = vpack.c.b16 %v192, %v192
      %vm199 = vcmask 257024
      %200 = vst.msk [vmem:[#allocation2] sm:$0xf] %vm199, %v193
      %201 = vst.msk [vmem:[#allocation2 + $0x4] sm:$0xf] %vm199, %v194
      %202 = vst.msk [vmem:[#allocation2 + $0x8] sm:$0xf] %vm199, %v195
      %203 = vst.msk [vmem:[#allocation3] sm:$0xff] %vm125, 0.0
      %204 = vst.msk [vmem:[#allocation3 + $0x8] sm:$0xff] %vm125, 0.0
      %205 = vst.msk [vmem:[#allocation3 + $0x10] sm:$0xff] %vm125, 0.0
    $region61: #{vision_encoder_forward.22} parent=1 // pred_fallthru
      _
    %v206 = vld [vmem:[#allocation2] sm:$0xf]
    %v207 = vld [vmem:[#allocation2 + $0x4] sm:$0xf]
    %v208 = vld [vmem:[#allocation2 + $0x8] sm:$0xf]
    %v209 = vld [vmem:[#allocation10] sm:$0xf]
    %v210 = vld [vmem:[#allocation10 + $0x4] sm:$0xf]
    %v211 = vld [vmem:[#allocation10 + $0x8] sm:$0xf]
    %v212 = vld [vmem:[#allocation10 + $0xc] sm:$0xf]
    %v213 = vld [vmem:[#allocation12] sm:$0x1]
    %v215 = vlaneseq
    %v216 = vshrl.u32 %v215, 7
    %v217 = vsub.s32 0, %v216
    %v218 = vrot.slane %v213, %v217
    %v223 = vunpack.c.l.b16 %v206
    %v224 = vunpack.c.l.b16 %v207
    %v225 = vunpack.c.l.b16 %v208
    %v226 = vpack.c.b16 %v224, %v223
    %v227 = vpack.c.b16 %v225, %v225
    %v232 = vunpack.c.l.b16 %v209
    %v233 = vunpack.c.l.b16 %v210
    %v234 = vunpack.c.l.b16 %v211
    %v235 = vunpack.c.l.b16 %v212
    %v236 = vpack.c.b16 %v233, %v232
    %v237 = vpack.c.b16 %v235, %v234
    %vm240 = vcmask 261120
    %v242 = vsel %vm240, %v226, 0
    %v245 = vsel %vm240, %v227, 0
    %247 = vmatprep.subr.bf16.mxu0 0
    %248 = vmatpush1.bf16.msra.mxu0 %v236
    %249 = vmatprep.subr.bf16.mxu0 0
    %250 = vmatpush1.bf16.msra.mxu0 %v237
    %251 = vmatprep.subr.bf16.mxu0 0
    %252 = vmatpush1.bf16.msra.mxu0 0
    %253 = vmatprep.subr.bf16.mxu0 0
    %254 = vmatpush1.bf16.msra.mxu0 0
    %255 = vmatprep.subr.bf16.mxu0 0
    %256 = vmatpush1.bf16.msra.mxu0 0
    %257 = vmatprep.subr.bf16.mxu0 0
    %258 = vmatpush1.bf16.msra.mxu0 0
    %259 = vmatprep.subr.bf16.mxu0 0
    %260 = vmatpush1.bf16.msra.mxu0 0
    %261 = vmatprep.subr.bf16.mxu0 0
    %262 = vmatpush1.bf16.msra.mxu0 0
    %263 = vmatprep.subr.bf16.mxu0 0
    %264 = vmatpush1.bf16.msra.mxu0 0
    %265 = vmatprep.subr.bf16.mxu0 0
    %266 = vmatpush1.bf16.msra.mxu0 0
    %267 = vmatprep.subr.bf16.mxu0 0
    %268 = vmatpush1.bf16.msra.mxu0 0
    %269 = vmatprep.subr.bf16.mxu0 0
    %270 = vmatpush1.bf16.msra.mxu0 0
    %271 = vmatprep.subr.bf16.mxu0 0
    %272 = vmatpush1.bf16.msra.mxu0 0
    %273 = vmatprep.subr.bf16.mxu0 0
    %274 = vmatpush1.bf16.msra.mxu0 0
    %275 = vmatprep.subr.bf16.mxu0 0
    %276 = vmatpush1.bf16.msra.mxu0 0
    %277 = vmatprep.subr.bf16.mxu0 0
    %278 = vmatpush1.bf16.msra.mxu0 0
    %279 = vmatprep.mubr.bf16.mxu0 0
    %280 = vmatmul.mubr.bf16.gmra.mrb[0].mxu0 %v242
    %v281 = vpop.f32.mrb[0].mxu0
    %v282 = vadd.f32 %v218, %v281
    %v283 = vpop.f32.mrb[0].mxu0
    %v284 = vpop.f32.mrb[0].mxu0
    %v285 = vadd.f32 %v218, %v284
    %v286 = vpop.f32.mrb[0].mxu0
    %287 = vmatprep.mubr.bf16.mxu0 0
    %288 = vmatmul.mubr.bf16.gmra.mrb[0].mxu0 %v245
    %v289 = vpop.f32.mrb[0].mxu0
    %v290 = vadd.f32 %v218, %v289
    %v291 = vpop.f32.mrb[0].mxu0
    %v292 = vpop.f32.mrb[0].mxu0
    %v293 = vpop.f32.mrb[0].mxu0
    %294 = vdwg.mxu0
    %v295 = vmul.f32 %v282, 1.702
    %v296 = vmul.f32 %v285, 1.702
    %v297 = vmul.f32 %v290, 1.702
    %v298 = vxor.u32 %v295, 2147483648
    %v299 = vxor.u32 %v296, 2147483648
    %v300 = vxor.u32 %v297, 2147483648
    %v301 = vmul.f32 %v298, 1.442695
    %v302 = vpow.pop %v301
    %v303 = vmul.f32 %v299, 1.442695
    %v304 = vpow.pop %v303
    %v305 = vmul.f32 %v300, 1.442695
    %v306 = vpow.pop %v305
    %v307 = vadd.f32 %v302, 1.0
    %v308 = vadd.f32 %v304, 1.0
    %v309 = vadd.f32 %v306, 1.0
    %v310 = vrcp.pop %v307
    %v311 = vmul.f32 1.0, %v310
    %v312 = vrcp.pop %v308
    %v313 = vmul.f32 1.0, %v312
    %v314 = vrcp.pop %v309
    %v315 = vmul.f32 1.0, %v314
    %v316 = vmul.f32 %v282, %v311
    %v317 = vmul.f32 %v285, %v313
    %v318 = vmul.f32 %v290, %v315
    %v319 = vld [vmem:[#allocation3] sm:$0xff]
    %v320 = vld [vmem:[#allocation3 + $0x8] sm:$0xff]
    %v321 = vld [vmem:[#allocation3 + $0x10] sm:$0xff]
    %v322 = vpack.c.bf16 %v317, %v316
    %v323 = vpack.c.bf16 %v318, %v318
    %v324 = vld [vmem:[#allocation13] sm:$0xf]
    %v325 = vld [vmem:[#allocation13 + $0x4] sm:$0xf]
    %v326 = vld [vmem:[#allocation13 + $0x8] sm:$0xf]
    %v327 = vld [vmem:[#allocation13 + $0xc] sm:$0xf]
    %v328 = vld [vmem:[#allocation13 + $0x10] sm:$0xf]
    %v329 = vld [vmem:[#allocation13 + $0x14] sm:$0xf]
    %v330 = vld [vmem:[#allocation13 + $0x18] sm:$0xf]
    %v331 = vld [vmem:[#allocation13 + $0x1c] sm:$0xf]
    %v332 = vld [vmem:[#allocation13 + $0x20] sm:$0xf]
    %v333 = vld [vmem:[#allocation13 + $0x24] sm:$0xf]
    %v334 = vld [vmem:[#allocation13 + $0x28] sm:$0xf]
    %v335 = vld [vmem:[#allocation13 + $0x2c] sm:$0xf]
    %v336 = vld [vmem:[#allocation13 + $0x30] sm:$0xf]
    %v337 = vld [vmem:[#allocation13 + $0x34] sm:$0xf]
    %v338 = vld [vmem:[#allocation13 + $0x38] sm:$0xf]
    %v339 = vld [vmem:[#allocation13 + $0x3c] sm:$0xf]
    %v356 = vunpack.c.l.b16 %v324
    %v357 = vunpack.c.l.b16 %v325
    %v358 = vunpack.c.l.b16 %v326
    %v359 = vunpack.c.l.b16 %v327
    %v360 = vunpack.c.l.b16 %v328
    %v361 = vunpack.c.l.b16 %v329
    %v362 = vunpack.c.l.b16 %v330
    %v363 = vunpack.c.l.b16 %v331
    %v364 = vunpack.c.l.b16 %v332
    %v365 = vunpack.c.l.b16 %v333
    %v366 = vunpack.c.l.b16 %v334
    %v367 = vunpack.c.l.b16 %v335
    %v368 = vunpack.c.l.b16 %v336
    %v369 = vunpack.c.l.b16 %v337
    %v370 = vunpack.c.l.b16 %v338
    %v371 = vunpack.c.l.b16 %v339
    %v372 = vpack.c.b16 %v357, %v356
    %v373 = vpack.c.b16 %v359, %v358
    %v374 = vpack.c.b16 %v361, %v360
    %v375 = vpack.c.b16 %v363, %v362
    %v376 = vpack.c.b16 %v365, %v364
    %v377 = vpack.c.b16 %v367, %v366
    %v378 = vpack.c.b16 %v369, %v368
    %v379 = vpack.c.b16 %v371, %v370
    %388 = vmatprep.subr.bf16.mxu0 0
    %389 = vmatpush1.bf16.msra.mxu0 %v372
    %390 = vmatprep.subr.bf16.mxu0 0
    %391 = vmatpush1.bf16.msra.mxu0 %v373
    %392 = vmatprep.subr.bf16.mxu0 0
    %393 = vmatpush1.bf16.msra.mxu0 %v374
    %394 = vmatprep.subr.bf16.mxu0 0
    %395 = vmatpush1.bf16.msra.mxu0 %v375
    %396 = vmatprep.subr.bf16.mxu0 0
    %397 = vmatpush1.bf16.msra.mxu0 %v376
    %398 = vmatprep.subr.bf16.mxu0 0
    %399 = vmatpush1.bf16.msra.mxu0 %v377
    %400 = vmatprep.subr.bf16.mxu0 0
    %401 = vmatpush1.bf16.msra.mxu0 %v378
    %402 = vmatprep.subr.bf16.mxu0 0
    %403 = vmatpush1.bf16.msra.mxu0 %v379
    %404 = vmatprep.subr.bf16.mxu0 0
    %405 = vmatpush1.bf16.msra.mxu0 0
    %406 = vmatprep.subr.bf16.mxu0 0
    %407 = vmatpush1.bf16.msra.mxu0 0
    %408 = vmatprep.subr.bf16.mxu0 0
    %409 = vmatpush1.bf16.msra.mxu0 0
    %410 = vmatprep.subr.bf16.mxu0 0
    %411 = vmatpush1.bf16.msra.mxu0 0
    %412 = vmatprep.subr.bf16.mxu0 0
    %413 = vmatpush1.bf16.msra.mxu0 0
    %414 = vmatprep.subr.bf16.mxu0 0
    %415 = vmatpush1.bf16.msra.mxu0 0
    %416 = vmatprep.subr.bf16.mxu0 0
    %417 = vmatpush1.bf16.msra.mxu0 0
    %418 = vmatprep.subr.bf16.mxu0 0
    %419 = vmatpush1.bf16.msra.mxu0 0
    %420 = vmatprep.mubr.bf16.mxu0 0
    %421 = vmatmul.mubr.bf16.gmra.mrb[0].mxu0 %v322
    %v422 = vpop.f32.mrb[0].mxu0
    %v423 = vadd.f32 0.0, %v422
    %v424 = vpop.f32.mrb[0].mxu0
    %v425 = vpop.f32.mrb[0].mxu0
    %v426 = vadd.f32 0.0, %v425
    %v427 = vpop.f32.mrb[0].mxu0
    %428 = vmatprep.mubr.bf16.mxu0 0
    %429 = vmatmul.mubr.bf16.gmra.mrb[0].mxu0 %v323
    %v430 = vpop.f32.mrb[0].mxu0
    %v431 = vadd.f32 0.0, %v430
    %v432 = vpop.f32.mrb[0].mxu0
    %v433 = vpop.f32.mrb[0].mxu0
    %v434 = vpop.f32.mrb[0].mxu0
    %435 = vdwg.mxu0
    %v436 = vadd.f32 %v319, %v423
    %v437 = vadd.f32 %v320, %v426
    %v438 = vadd.f32 %v321, %v431
    %439 = vst.msk [vmem:[#allocation3] sm:$0xff] %vm240, %v436
    %440 = vst.msk [vmem:[#allocation3 + $0x8] sm:$0xff] %vm240, %v437
    %441 = vst.msk [vmem:[#allocation3 + $0x10] sm:$0xff] %vm240, %v438
    // Predicated region
    $region62: #{vision_encoder_forward.22} parent=1 // pred_check
      %p442 = pneg %p115
    $region63: #{vision_encoder_forward.22} parent=1 // pred_check_branch
      %444 = sbr.rel (%p442) target = $region65
    $region64: #{vision_encoder_forward.22} parent=1 // pred_region
      %v445 = vld [vmem:[#allocation3] sm:$0xff]
      %v446 = vld [vmem:[#allocation3 + $0x8] sm:$0xff]
      %v447 = vld [vmem:[#allocation3 + $0x10] sm:$0xff]
      %v448 = vld [vmem:[#allocation15] sm:$0x1]
      %v450 = vlaneseq
      %v451 = vshrl.u32 %v450, 7
      %v452 = vsub.s32 0, %v451
      %v453 = vrot.slane %v448, %v452
      %v455 = vadd.f32 %v445, %v453
      %v456 = vadd.f32 %v446, %v453
      %v457 = vadd.f32 %v447, %v453
      %v458 = vld [vmem:[#allocation4] sm:$0xf]
      %v459 = vld [vmem:[#allocation4 + $0x4] sm:$0xf]
      %v460 = vld [vmem:[#allocation4 + $0x8] sm:$0xf]
      %v461 = vunpack.c.l.bf16 %v458
      %v462 = vunpack.c.l.bf16 %v459
      %v463 = vunpack.c.l.bf16 %v460
      %v464 = vadd.f32 %v455, %v461
      %v465 = vadd.f32 %v456, %v462
      %v466 = vadd.f32 %v457, %v463
      %v467 = vpack.c.bf16 %v465, %v464
      %v468 = vpack.c.bf16 %v466, %v466
      %v471 = vunpack.c.l.b16 %v467
      %v472 = vunpack.c.h.b16 %v467
      %v473 = vunpack.c.l.b16 %v468
      %v474 = vpack.c.b16 %v471, %v471
      %v475 = vpack.c.b16 %v472, %v472
      %v476 = vpack.c.b16 %v473, %v473
      %vm480 = vcmask 257024
      %481 = vst.msk [vmem:[#allocation16] sm:$0xf] %vm480, %v474
      %482 = vst.msk [vmem:[#allocation16 + $0x4] sm:$0xf] %vm480, %v475
      %483 = vst.msk [vmem:[#allocation16 + $0x8] sm:$0xf] %vm480, %v476
    $region65: #{vision_encoder_forward.22} parent=1 // pred_fallthru
      _
    // Predicated region
    $region66: #{vision_encoder_forward.22} parent=1 // pred_check
      _
    $region67: #{vision_encoder_forward.22} parent=1 // pred_check_branch
      %485 = sbr.rel (0) target = $region69
    $region68: #{vision_encoder_forward.22} parent=1 // pred_region
      %s487 = ssub.s32 192, 192
      %488 = vsyncadd [#allocation6], %s487
      %s489 = sshll.u32 [#allocation16], 4
      %s490 = int_to_ptr.vmem [resolvable:$true] %s489
      %495 = dma.vmem_to_hbm [thread:$0]  %s490, 192, %s7, [#allocation6], 64, 64, 4
    $region69: #{vision_encoder_forward.22} parent=1 // pred_fallthru
      _
    // Predicated region
    $region70: #{vision_encoder_forward.22} parent=1 // pred_check
      _
    $region71: #{vision_encoder_forward.22} parent=1 // pred_check_branch
      %497 = sbr.rel (0) target = $region73
    $region72: #{vision_encoder_forward.22} parent=1 // pred_region
      %498 = dma.done [#allocation6], 192
    $region73: #{vision_encoder_forward.22} parent=1 // pred_fallthru
      _
    %499 = vsyncpa [#allocation5], 1
    %500 = vsyncpa [#allocation8], 1
    %501 = vsyncpa [#allocation11], 1
    %502 = vsyncpa [#allocation14], 1
    %503 = vsyncpa [#allocation6], 1

</llo_original>
